<compile_context>
chip_gen: v5e
topology: v5e:2x2
jax: 0.10.0
libtpu: 0.0.40
codegen_flags: <defaults>
</compile_context>

<pallas_src>
import functools

import jax
import jax.numpy as jnp
from jax.experimental import pallas as pl
from jax.experimental.pallas import tpu as pltpu


_LANES = 128  # lane-dense EC output width (true cout lives in the first lanes)


# ----------------------------------------------------------------------------
# In-kernel helpers
# ----------------------------------------------------------------------------
def _zero_halo(pad_ref, h, w):
    """Zero only the 1-pixel conv halo of an (h+2, w+2, c) padded field."""
    c = pad_ref.shape[-1]
    z_row = jnp.zeros((1, w + 2, c), pad_ref.dtype)
    z_col = jnp.zeros((h + 2, 1, c), pad_ref.dtype)
    pad_ref[0:1, :, :] = z_row
    pad_ref[h + 1:h + 2, :, :] = z_row
    pad_ref[:, 0:1, :] = z_col
    pad_ref[:, w + 1:w + 2, :] = z_col


def _im2col_into(pad_ref, patch_ref, h, w, c):
    """Scatter the 9 shifted 3x3 windows of an (h+2, w+2, c) zero-padded field
    into an (h, w, 9*c) patch tensor (dense tap packing, K = 9*c)."""
    for tap in range(9):
        dh, dw = divmod(tap, 3)
        patch_ref[:, :, tap * c:(tap + 1) * c] = pad_ref[dh:dh + h, dw:dw + w, :]


# ----------------------------------------------------------------------------
# Fused kernel: EA conv -> EB conv+pool -> EC conv (+ eb-as-bias) per sample
# ----------------------------------------------------------------------------
def _fused_kernel(mask_ref, img_ref, key_ref, w_ea_ref, b_ea_ref,
                  w_eb_ref, b_eb_ref, w_eca_ref, w_ecb_ref, b_ec_ref,
                  out_ref,
                  pad_a, patch_a, pad_b, patch_b, pad_c, patch_c,
                  *, TH, TW, KH, KW, C1, C2, KC, COUT):
    f32 = jnp.float32
    THW, KHW = TH * TW, KH * KW

    # Re-establish the zero conv halos every step (thin slabs only).  The pad
    # interiors are fully rewritten each step; the patch buffers are fully
    # overwritten by _im2col_into, so they need no zeroing at all.
    _zero_halo(pad_a, TH, TW)
    _zero_halo(pad_b, KH, KW)
    _zero_halo(pad_c, TH, TW)

    # ---- EA branch: 3x3 conv (C1 -> C1) + ReLU, one im2col matmul ----------
    pad_a[1:TH + 1, 1:TW + 1, :] = img_ref[...]
    _im2col_into(pad_a, patch_a, TH, TW, C1)
    ea = jnp.dot(patch_a[...].reshape(THW, 9 * C1), w_ea_ref[...],
                 preferred_element_type=f32)
    ea = jnp.maximum(ea + b_ea_ref[...], 0.0)                    # (THW, C1)

    # ---- EB branch: 3x3 conv (KC -> C2) + ReLU + global mean pool ----------
    pad_b[1:KH + 1, 1:KW + 1, :] = key_ref[...]
    _im2col_into(pad_b, patch_b, KH, KW, KC)
    eb = jnp.dot(patch_b[...].reshape(KHW, 9 * KC), w_eb_ref[...],
                 preferred_element_type=f32)
    eb = jnp.maximum(eb + b_eb_ref[...], 0.0)                    # (KHW, C2)
    eb_vec = jnp.mean(eb, axis=0, keepdims=True)                 # (1, C2)

    # ---- EC head, ea part: 3x3 conv over the ea channels only (K = 9*C1) ---
    pad_c[1:TH + 1, 1:TW + 1, :] = ea.reshape(TH, TW, C1)
    _im2col_into(pad_c, patch_c, TH, TW, C1)
    ec = jnp.dot(patch_c[...].reshape(THW, 9 * C1), w_eca_ref[...],
                 preferred_element_type=f32)                     # (THW, COUT)

    # ---- EC head, eb part: spatially constant field -> per-tap rank-1 bias -
    # contrib[0, t*COUT + o] = sum_c eb_vec[c] * w_ec[tap t, C1 + c, o]
    # mask[p, t] = 1 iff tap t of output pixel p falls inside the image
    # (exact SAME-padding edge handling without materializing the eb field).
    contrib = jnp.dot(eb_vec, w_ecb_ref[...], preferred_element_type=f32)
    mask = mask_ref[...]                                         # (THW, 9)
    for t in range(9):
        ec = ec + mask[:, t:t + 1] * contrib[:, t * COUT:(t + 1) * COUT]

    out_ref[...] = (ec + b_ec_ref[...]).astype(out_ref.dtype)


# ----------------------------------------------------------------------------
# Host-side helpers
# ----------------------------------------------------------------------------
def pixel_unshuffle_to_nhwc(x, r):
    """(N,C,H,W) -> (N,H//r,W//r,C*r*r) in a single transpose.  Channel order
    (c, i, j) matches torch.PixelUnshuffle followed by NCHW->NHWC."""
    n, c, h, w = x.shape
    th, tw = h // r, w // r
    x = x.reshape(n, c, th, r, tw, r)
    x = x.transpose(0, 2, 4, 1, 3, 5)
    return x.reshape(n, th, tw, c * r * r)


def _make_tap_mask(th, tw):
    """(th*tw, 9) f32: mask[p, t] = 1 iff 3x3 tap t at output pixel p reads an
    in-bounds input pixel (SAME padding, pad=1)."""
    h = jnp.arange(th, dtype=jnp.int32)[:, None]
    w = jnp.arange(tw, dtype=jnp.int32)[None, :]
    cols = []
    for t in range(9):
        dh, dw = divmod(t, 3)
        vh = (h + dh - 1 >= 0) & (h + dh - 1 <= th - 1)
        vw = (w + dw - 1 >= 0) & (w + dw - 1 <= tw - 1)
        cols.append((vh & vw).astype(jnp.float32).reshape(th * tw, 1))
    return jnp.concatenate(cols, axis=1)


def init_params(key, *, key_channels, input_dims, target_dims):
    c = 3
    c1 = (3 * input_dims[0] * input_dims[1]) // (target_dims[0] * target_dims[1])
    c2 = 48
    k = jax.random.split(key, 6)

    def conv_init(kk, shape):
        fan_in = shape[0] * shape[1] * shape[2]
        return jax.random.normal(kk, shape, jnp.float32) / jnp.sqrt(float(fan_in))

    params = {
        "w_ea": conv_init(k[0], (3, 3, c1, c1)),
        "b_ea": 0.02 * jax.random.normal(k[1], (c1,), jnp.float32),
        "w_eb": conv_init(k[2], (3, 3, key_channels, c2)),
        "b_eb": 0.02 * jax.random.normal(k[3], (c2,), jnp.float32),
        "w_ec": conv_init(k[4], (3, 3, c1 + c2, c)),
        "b_ec": 0.02 * jax.random.normal(k[5], (c,), jnp.float32),
    }
    meta = dict(c=c, c1=c1, c2=c2, r=input_dims[0] // target_dims[0])
    return params, meta


# ----------------------------------------------------------------------------
# Forward pass (single fused pallas_call, grid over batch)
# ----------------------------------------------------------------------------
@functools.partial(jax.jit, static_argnames=("r",))
def watermark_extraction_forward(image_nchw, key_nchw, params, r):
    f32 = jnp.float32
    ea_in = pixel_unshuffle_to_nhwc(image_nchw.astype(f32), r)     # (N,th,tw,c1)
    key_nhwc = jnp.transpose(key_nchw.astype(f32), (0, 2, 3, 1))   # (N,kh,kw,kc)

    N, th, tw, c1 = ea_in.shape
    _, kh, kw, kc = key_nhwc.shape
    c2 = params["w_eb"].shape[-1]
    c = params["w_ec"].shape[-1]
    thw = th * tw

    # Weight layout plumbing: dense tap-major flattening (K = 9*cin) and a
    # lane-dense (128-wide) EC output with zero weights/bias in padding lanes.
    w_ea = params["w_ea"].reshape(9 * c1, c1).astype(f32)          # (9*c1, c1)
    w_eb = params["w_eb"].reshape(9 * kc, c2).astype(f32)          # (9*kc, c2)
    w_ec_pad = jnp.pad(params["w_ec"],
                       ((0, 0), (0, 0), (0, 0), (0, _LANES - c)))  # (3,3,c1+c2,128)
    w_eca = w_ec_pad[:, :, :c1, :].reshape(9 * c1, _LANES).astype(f32)
    w_ecb = (w_ec_pad[:, :, c1:, :]
             .reshape(9, c2, _LANES).transpose(1, 0, 2)
             .reshape(c2, 9 * _LANES).astype(f32))                 # (c2, 9*128)
    b_ea = params["b_ea"].reshape(1, c1).astype(f32)
    b_eb = params["b_eb"].reshape(1, c2).astype(f32)
    b_ec = jnp.pad(params["b_ec"], (0, _LANES - c)).reshape(1, _LANES).astype(f32)

    tap_mask = _make_tap_mask(th, tw)                              # (thw, 9)

    kern = functools.partial(
        _fused_kernel, TH=th, TW=tw, KH=kh, KW=kw,
        C1=c1, C2=c2, KC=kc, COUT=_LANES)

    out = pl.pallas_call(
        kern,
        out_shape=jax.ShapeDtypeStruct((N, thw, _LANES), f32),
        grid=(N,),
        in_specs=[
            pl.BlockSpec((thw, 9), lambda n: (0, 0)),              # tap mask
            pl.BlockSpec((None, th, tw, c1), lambda n: (n, 0, 0, 0)),
            pl.BlockSpec((None, kh, kw, kc), lambda n: (n, 0, 0, 0)),
            pl.BlockSpec((9 * c1, c1), lambda n: (0, 0)),          # w_ea
            pl.BlockSpec((1, c1), lambda n: (0, 0)),               # b_ea
            pl.BlockSpec((9 * kc, c2), lambda n: (0, 0)),          # w_eb
            pl.BlockSpec((1, c2), lambda n: (0, 0)),               # b_eb
            pl.BlockSpec((9 * c1, _LANES), lambda n: (0, 0)),      # w_ec (ea part)
            pl.BlockSpec((c2, 9 * _LANES), lambda n: (0, 0)),      # w_ec (eb part)
            pl.BlockSpec((1, _LANES), lambda n: (0, 0)),           # b_ec
        ],
        out_specs=pl.BlockSpec((None, thw, _LANES), lambda n: (n, 0, 0)),
        scratch_shapes=[
            pltpu.VMEM((th + 2, tw + 2, c1), f32),        # padded EA input
            pltpu.VMEM((th, tw, 9 * c1), f32),            # EA im2col patches
            pltpu.VMEM((kh + 2, kw + 2, kc), f32),        # padded key
            pltpu.VMEM((kh, kw, 9 * kc), f32),            # EB im2col patches
            pltpu.VMEM((th + 2, tw + 2, c1), f32),        # padded ea (EC input)
            pltpu.VMEM((th, tw, 9 * c1), f32),            # EC im2col patches
        ],
        compiler_params=pltpu.CompilerParams(
            dimension_semantics=("parallel",)),
    )(tap_mask, ea_in, key_nhwc, w_ea, b_ea, w_eb, b_eb, w_eca, w_ecb, b_ec)

    ec = out[:, :, :c].reshape(N, th, tw, c)      # drop zero lane padding
    return jnp.transpose(ec, (0, 3, 1, 2))        # back to NCHW


# ----------------------------------------------------------------------------
# Pure-JAX reference (for validation)
# ----------------------------------------------------------------------------
def _conv3x3_same(x_nhwc, w_hwio, b):
    y = jax.lax.conv_general_dilated(
        x_nhwc, w_hwio, window_strides=(1, 1), padding="SAME",
        dimension_numbers=("NHWC", "HWIO", "NHWC"),
        preferred_element_type=jnp.float32)
    return y + b.reshape(1, 1, 1, -1)


def reference_forward(image_nchw, key_nchw, params, r):
    f32 = jnp.float32
    ea_in = pixel_unshuffle_to_nhwc(image_nchw.astype(f32), r)
    ea = jax.nn.relu(_conv3x3_same(ea_in, params["w_ea"], params["b_ea"]))
    key_nhwc = jnp.transpose(key_nchw.astype(f32), (0, 2, 3, 1))
    eb = jax.nn.relu(_conv3x3_same(key_nhwc, params["w_eb"], params["b_eb"]))
    eb_vec = jnp.mean(eb, axis=(1, 2))                            # (N, c2)
    eb_full = jnp.broadcast_to(eb_vec[:, None, None, :],
                               ea.shape[:3] + (eb_vec.shape[-1],))
    cat = jnp.concatenate([ea, eb_full], axis=-1)
    ec = _conv3x3_same(cat, params["w_ec"], params["b_ec"])
    return jnp.transpose(ec, (0, 3, 1, 2))


# ----------------------------------------------------------------------------
if __name__ == "__main__":
    # Small, consistent shapes: input 32x32, target 8x8 -> c1 = 3*32*32/64 = 48.
    batch = 2
    key_channels = 1
    input_dims = [32, 32]
    target_dims = [8, 8]

    root = jax.random.PRNGKey(0)
    k_param, k_img, k_key = jax.random.split(root, 3)

    params, meta = init_params(
        k_param, key_channels=key_channels,
        input_dims=input_dims, target_dims=target_dims)

    image = jax.random.uniform(
        k_img, (batch, 3, input_dims[0], input_dims[1]), jnp.float32)
    key_in = jax.random.uniform(
        k_key, (batch, key_channels, target_dims[0], target_dims[1]), jnp.float32)

    out = watermark_extraction_forward(image, key_in, params, meta["r"])
    out = jax.block_until_ready(out)

    assert out.shape == (batch, meta["c"], target_dims[0], target_dims[1]), out.shape
    assert bool(jnp.all(jnp.isfinite(out)))

    # Validate against a pure-JAX reference (tolerance covers TPU matmul
    # default-precision accumulation-order differences only).
    ref = reference_forward(image, key_in, params, meta["r"])
    max_err = float(jnp.max(jnp.abs(out - ref)))
    assert max_err < 2e-2, f"max abs err vs reference: {max_err}"

    print("KERNEL_OK")
</pallas_src>

<mosaic_0001>
module attributes {stable_mosaic.version = 11 : i64} {
  func.func @_fused_kernel(%arg0: i32, %arg1: memref<64x9xf32, #tpu.memory_space<vmem>>, %arg2: memref<1x8x8x48xf32, #tpu.memory_space<vmem>>, %arg3: memref<1x8x8x1xf32, #tpu.memory_space<vmem>>, %arg4: memref<432x48xf32, #tpu.memory_space<vmem>>, %arg5: memref<1x48xf32, #tpu.memory_space<vmem>>, %arg6: memref<9x48xf32, #tpu.memory_space<vmem>>, %arg7: memref<1x48xf32, #tpu.memory_space<vmem>>, %arg8: memref<432x128xf32, #tpu.memory_space<vmem>>, %arg9: memref<48x1152xf32, #tpu.memory_space<vmem>>, %arg10: memref<1x128xf32, #tpu.memory_space<vmem>>, %arg11: memref<1x64x128xf32, #tpu.memory_space<vmem>>, %arg12: memref<10x10x48xf32, #tpu.memory_space<vmem>>, %arg13: memref<8x8x432xf32, #tpu.memory_space<vmem>>, %arg14: memref<10x10x1xf32, #tpu.memory_space<vmem>>, %arg15: memref<8x8x9xf32, #tpu.memory_space<vmem>>, %arg16: memref<10x10x48xf32, #tpu.memory_space<vmem>>, %arg17: memref<8x8x432xf32, #tpu.memory_space<vmem>>) attributes {dimension_semantics = [#tpu.dimension_semantics<parallel>], iteration_bounds = array<i64: 2>, scalar_prefetch = 0 : i64, scratch_operands = 6 : i64, tpu.core_type = #tpu.core_type<tc>, window_params = [{pipeline_mode = #tpu.pipeline_mode<synchronous>, transform_indices = @transform_0, window_bounds = array<i64: 64, 9>}, {transform_indices = @transform_1, window_bounds = array<i64: 1, 8, 8, 48>}, {transform_indices = @transform_2, window_bounds = array<i64: 1, 8, 8, 1>}, {pipeline_mode = #tpu.pipeline_mode<synchronous>, transform_indices = @transform_3, window_bounds = array<i64: 432, 48>}, {pipeline_mode = #tpu.pipeline_mode<synchronous>, transform_indices = @transform_4, window_bounds = array<i64: 1, 48>}, {pipeline_mode = #tpu.pipeline_mode<synchronous>, transform_indices = @transform_5, window_bounds = array<i64: 9, 48>}, {pipeline_mode = #tpu.pipeline_mode<synchronous>, transform_indices = @transform_6, window_bounds = array<i64: 1, 48>}, {pipeline_mode = #tpu.pipeline_mode<synchronous>, transform_indices = @transform_7, window_bounds = array<i64: 432, 128>}, {pipeline_mode = #tpu.pipeline_mode<synchronous>, transform_indices = @transform_8, window_bounds = array<i64: 48, 1152>}, {pipeline_mode = #tpu.pipeline_mode<synchronous>, transform_indices = @transform_9, window_bounds = array<i64: 1, 128>}, {transform_indices = @transform_10, window_bounds = array<i64: 1, 64, 128>}]} {
    %cst = arith.constant 0.000000e+00 : f32
    %0 = vector.broadcast %cst : f32 to vector<1x10x48xf32>
    %cst_0 = arith.constant 0.000000e+00 : f32
    %1 = vector.broadcast %cst_0 : f32 to vector<10x1x48xf32>
    %c0 = arith.constant 0 : index
    %c0_1 = arith.constant 0 : index
    %c0_2 = arith.constant 0 : index
    %2 = vector.load %arg12[%c0, %c0_1, %c0_2] : memref<10x10x48xf32, #tpu.memory_space<vmem>>, vector<1x10x48xf32>
    tpu.vector_store %arg12[%c0, %c0_1, %c0_2], %0 {strides = array<i32>} : memref<10x10x48xf32, #tpu.memory_space<vmem>>, vector<1x10x48xf32>,
    %c9 = arith.constant 9 : index
    %c0_3 = arith.constant 0 : index
    %c0_4 = arith.constant 0 : index
    %3 = vector.load %arg12[%c9, %c0_3, %c0_4] : memref<10x10x48xf32, #tpu.memory_space<vmem>>, vector<1x10x48xf32>
    tpu.vector_store %arg12[%c9, %c0_3, %c0_4], %0 {strides = array<i32>} : memref<10x10x48xf32, #tpu.memory_space<vmem>>, vector<1x10x48xf32>,
    %c0_5 = arith.constant 0 : index
    %c0_6 = arith.constant 0 : index
    %c0_7 = arith.constant 0 : index
    %4 = vector.load %arg12[%c0_5, %c0_6, %c0_7] : memref<10x10x48xf32, #tpu.memory_space<vmem>>, vector<10x1x48xf32>
    tpu.vector_store %arg12[%c0_5, %c0_6, %c0_7], %1 {strides = array<i32>} : memref<10x10x48xf32, #tpu.memory_space<vmem>>, vector<10x1x48xf32>,
    %c0_8 = arith.constant 0 : index
    %c9_9 = arith.constant 9 : index
    %c0_10 = arith.constant 0 : index
    %5 = vector.load %arg12[%c0_8, %c9_9, %c0_10] : memref<10x10x48xf32, #tpu.memory_space<vmem>>, vector<10x1x48xf32>
    tpu.vector_store %arg12[%c0_8, %c9_9, %c0_10], %1 {strides = array<i32>} : memref<10x10x48xf32, #tpu.memory_space<vmem>>, vector<10x1x48xf32>,
    %cst_11 = arith.constant 0.000000e+00 : f32
    %6 = vector.broadcast %cst_11 : f32 to vector<1x10x1xf32>
    %cst_12 = arith.constant 0.000000e+00 : f32
    %7 = vector.broadcast %cst_12 : f32 to vector<10x1x1xf32>
    %c0_13 = arith.constant 0 : index
    %c0_14 = arith.constant 0 : index
    %c0_15 = arith.constant 0 : index
    %8 = vector.load %arg14[%c0_13, %c0_14, %c0_15] : memref<10x10x1xf32, #tpu.memory_space<vmem>>, vector<1x10x1xf32>
    tpu.vector_store %arg14[%c0_13, %c0_14, %c0_15], %6 {strides = array<i32>} : memref<10x10x1xf32, #tpu.memory_space<vmem>>, vector<1x10x1xf32>,
    %c9_16 = arith.constant 9 : index
    %c0_17 = arith.constant 0 : index
    %c0_18 = arith.constant 0 : index
    %9 = vector.load %arg14[%c9_16, %c0_17, %c0_18] : memref<10x10x1xf32, #tpu.memory_space<vmem>>, vector<1x10x1xf32>
    tpu.vector_store %arg14[%c9_16, %c0_17, %c0_18], %6 {strides = array<i32>} : memref<10x10x1xf32, #tpu.memory_space<vmem>>, vector<1x10x1xf32>,
    %c0_19 = arith.constant 0 : index
    %c0_20 = arith.constant 0 : index
    %c0_21 = arith.constant 0 : index
    %10 = vector.load %arg14[%c0_19, %c0_20, %c0_21] : memref<10x10x1xf32, #tpu.memory_space<vmem>>, vector<10x1x1xf32>
    tpu.vector_store %arg14[%c0_19, %c0_20, %c0_21], %7 {strides = array<i32>} : memref<10x10x1xf32, #tpu.memory_space<vmem>>, vector<10x1x1xf32>,
    %c0_22 = arith.constant 0 : index
    %c9_23 = arith.constant 9 : index
    %c0_24 = arith.constant 0 : index
    %11 = vector.load %arg14[%c0_22, %c9_23, %c0_24] : memref<10x10x1xf32, #tpu.memory_space<vmem>>, vector<10x1x1xf32>
    tpu.vector_store %arg14[%c0_22, %c9_23, %c0_24], %7 {strides = array<i32>} : memref<10x10x1xf32, #tpu.memory_space<vmem>>, vector<10x1x1xf32>,
    %cst_25 = arith.constant 0.000000e+00 : f32
    %12 = vector.broadcast %cst_25 : f32 to vector<1x10x48xf32>
    %cst_26 = arith.constant 0.000000e+00 : f32
    %13 = vector.broadcast %cst_26 : f32 to vector<10x1x48xf32>
    %c0_27 = arith.constant 0 : index
    %c0_28 = arith.constant 0 : index
    %c0_29 = arith.constant 0 : index
    %14 = vector.load %arg16[%c0_27, %c0_28, %c0_29] : memref<10x10x48xf32, #tpu.memory_space<vmem>>, vector<1x10x48xf32>
    tpu.vector_store %arg16[%c0_27, %c0_28, %c0_29], %12 {strides = array<i32>} : memref<10x10x48xf32, #tpu.memory_space<vmem>>, vector<1x10x48xf32>,
    %c9_30 = arith.constant 9 : index
    %c0_31 = arith.constant 0 : index
    %c0_32 = arith.constant 0 : index
    %15 = vector.load %arg16[%c9_30, %c0_31, %c0_32] : memref<10x10x48xf32, #tpu.memory_space<vmem>>, vector<1x10x48xf32>
    tpu.vector_store %arg16[%c9_30, %c0_31, %c0_32], %12 {strides = array<i32>} : memref<10x10x48xf32, #tpu.memory_space<vmem>>, vector<1x10x48xf32>,
    %c0_33 = arith.constant 0 : index
    %c0_34 = arith.constant 0 : index
    %c0_35 = arith.constant 0 : index
    %16 = vector.load %arg16[%c0_33, %c0_34, %c0_35] : memref<10x10x48xf32, #tpu.memory_space<vmem>>, vector<10x1x48xf32>
    tpu.vector_store %arg16[%c0_33, %c0_34, %c0_35], %13 {strides = array<i32>} : memref<10x10x48xf32, #tpu.memory_space<vmem>>, vector<10x1x48xf32>,
    %c0_36 = arith.constant 0 : index
    %c9_37 = arith.constant 9 : index
    %c0_38 = arith.constant 0 : index
    %17 = vector.load %arg16[%c0_36, %c9_37, %c0_38] : memref<10x10x48xf32, #tpu.memory_space<vmem>>, vector<10x1x48xf32>
    tpu.vector_store %arg16[%c0_36, %c9_37, %c0_38], %13 {strides = array<i32>} : memref<10x10x48xf32, #tpu.memory_space<vmem>>, vector<10x1x48xf32>,
    %c0_39 = arith.constant 0 : index
    %c0_40 = arith.constant 0 : index
    %c0_41 = arith.constant 0 : index
    %c0_42 = arith.constant 0 : index
    %18 = vector.load %arg2[%c0_39, %c0_40, %c0_41, %c0_42] : memref<1x8x8x48xf32, #tpu.memory_space<vmem>>, vector<1x8x8x48xf32>
    %19 = vector.shape_cast %18 : vector<1x8x8x48xf32> to vector<8x8x48xf32>
    %c1 = arith.constant 1 : index
    %c1_43 = arith.constant 1 : index
    %c0_44 = arith.constant 0 : index
    %20 = vector.load %arg12[%c1, %c1_43, %c0_44] : memref<10x10x48xf32, #tpu.memory_space<vmem>>, vector<8x8x48xf32>
    tpu.vector_store %arg12[%c1, %c1_43, %c0_44], %19 {strides = array<i32>} : memref<10x10x48xf32, #tpu.memory_space<vmem>>, vector<8x8x48xf32>,
    %c0_45 = arith.constant 0 : index
    %c0_46 = arith.constant 0 : index
    %c0_47 = arith.constant 0 : index
    %21 = vector.load %arg12[%c0_45, %c0_46, %c0_47] : memref<10x10x48xf32, #tpu.memory_space<vmem>>, vector<8x8x48xf32>
    %c0_48 = arith.constant 0 : index
    %c0_49 = arith.constant 0 : index
    %c0_50 = arith.constant 0 : index
    %22 = vector.load %arg13[%c0_48, %c0_49, %c0_50] : memref<8x8x432xf32, #tpu.memory_space<vmem>>, vector<8x8x48xf32>
    tpu.vector_store %arg13[%c0_48, %c0_49, %c0_50], %21 {strides = array<i32>} : memref<8x8x432xf32, #tpu.memory_space<vmem>>, vector<8x8x48xf32>,
    %c0_51 = arith.constant 0 : index
    %c1_52 = arith.constant 1 : index
    %c0_53 = arith.constant 0 : index
    %23 = vector.load %arg12[%c0_51, %c1_52, %c0_53] : memref<10x10x48xf32, #tpu.memory_space<vmem>>, vector<8x8x48xf32>
    %c0_54 = arith.constant 0 : index
    %c0_55 = arith.constant 0 : index
    %c48 = arith.constant 48 : index
    %24 = vector.load %arg13[%c0_54, %c0_55, %c48] : memref<8x8x432xf32, #tpu.memory_space<vmem>>, vector<8x8x48xf32>
    tpu.vector_store %arg13[%c0_54, %c0_55, %c48], %23 {strides = array<i32>} : memref<8x8x432xf32, #tpu.memory_space<vmem>>, vector<8x8x48xf32>,
    %c0_56 = arith.constant 0 : index
    %c2 = arith.constant 2 : index
    %c0_57 = arith.constant 0 : index
    %25 = vector.load %arg12[%c0_56, %c2, %c0_57] : memref<10x10x48xf32, #tpu.memory_space<vmem>>, vector<8x8x48xf32>
    %c0_58 = arith.constant 0 : index
    %c0_59 = arith.constant 0 : index
    %c96 = arith.constant 96 : index
    %26 = vector.load %arg13[%c0_58, %c0_59, %c96] : memref<8x8x432xf32, #tpu.memory_space<vmem>>, vector<8x8x48xf32>
    tpu.vector_store %arg13[%c0_58, %c0_59, %c96], %25 {strides = array<i32>} : memref<8x8x432xf32, #tpu.memory_space<vmem>>, vector<8x8x48xf32>,
    %c1_60 = arith.constant 1 : index
    %c0_61 = arith.constant 0 : index
    %c0_62 = arith.constant 0 : index
    %27 = vector.load %arg12[%c1_60, %c0_61, %c0_62] : memref<10x10x48xf32, #tpu.memory_space<vmem>>, vector<8x8x48xf32>
    %c0_63 = arith.constant 0 : index
    %c0_64 = arith.constant 0 : index
    %c144 = arith.constant 144 : index
    %28 = vector.load %arg13[%c0_63, %c0_64, %c144] : memref<8x8x432xf32, #tpu.memory_space<vmem>>, vector<8x8x48xf32>
    tpu.vector_store %arg13[%c0_63, %c0_64, %c144], %27 {strides = array<i32>} : memref<8x8x432xf32, #tpu.memory_space<vmem>>, vector<8x8x48xf32>,
    %c1_65 = arith.constant 1 : index
    %c1_66 = arith.constant 1 : index
    %c0_67 = arith.constant 0 : index
    %29 = vector.load %arg12[%c1_65, %c1_66, %c0_67] : memref<10x10x48xf32, #tpu.memory_space<vmem>>, vector<8x8x48xf32>
    %c0_68 = arith.constant 0 : index
    %c0_69 = arith.constant 0 : index
    %c192 = arith.constant 192 : index
    %30 = vector.load %arg13[%c0_68, %c0_69, %c192] : memref<8x8x432xf32, #tpu.memory_space<vmem>>, vector<8x8x48xf32>
    tpu.vector_store %arg13[%c0_68, %c0_69, %c192], %29 {strides = array<i32>} : memref<8x8x432xf32, #tpu.memory_space<vmem>>, vector<8x8x48xf32>,
    %c1_70 = arith.constant 1 : index
    %c2_71 = arith.constant 2 : index
    %c0_72 = arith.constant 0 : index
    %31 = vector.load %arg12[%c1_70, %c2_71, %c0_72] : memref<10x10x48xf32, #tpu.memory_space<vmem>>, vector<8x8x48xf32>
    %c0_73 = arith.constant 0 : index
    %c0_74 = arith.constant 0 : index
    %c240 = arith.constant 240 : index
    %32 = vector.load %arg13[%c0_73, %c0_74, %c240] : memref<8x8x432xf32, #tpu.memory_space<vmem>>, vector<8x8x48xf32>
    tpu.vector_store %arg13[%c0_73, %c0_74, %c240], %31 {strides = array<i32>} : memref<8x8x432xf32, #tpu.memory_space<vmem>>, vector<8x8x48xf32>,
    %c2_75 = arith.constant 2 : index
    %c0_76 = arith.constant 0 : index
    %c0_77 = arith.constant 0 : index
    %33 = vector.load %arg12[%c2_75, %c0_76, %c0_77] : memref<10x10x48xf32, #tpu.memory_space<vmem>>, vector<8x8x48xf32>
    %c0_78 = arith.constant 0 : index
    %c0_79 = arith.constant 0 : index
    %c288 = arith.constant 288 : index
    %34 = vector.load %arg13[%c0_78, %c0_79, %c288] : memref<8x8x432xf32, #tpu.memory_space<vmem>>, vector<8x8x48xf32>
    tpu.vector_store %arg13[%c0_78, %c0_79, %c288], %33 {strides = array<i32>} : memref<8x8x432xf32, #tpu.memory_space<vmem>>, vector<8x8x48xf32>,
    %c2_80 = arith.constant 2 : index
    %c1_81 = arith.constant 1 : index
    %c0_82 = arith.constant 0 : index
    %35 = vector.load %arg12[%c2_80, %c1_81, %c0_82] : memref<10x10x48xf32, #tpu.memory_space<vmem>>, vector<8x8x48xf32>
    %c0_83 = arith.constant 0 : index
    %c0_84 = arith.constant 0 : index
    %c336 = arith.constant 336 : index
    %36 = vector.load %arg13[%c0_83, %c0_84, %c336] : memref<8x8x432xf32, #tpu.memory_space<vmem>>, vector<8x8x48xf32>
    tpu.vector_store %arg13[%c0_83, %c0_84, %c336], %35 {strides = array<i32>} : memref<8x8x432xf32, #tpu.memory_space<vmem>>, vector<8x8x48xf32>,
    %c2_85 = arith.constant 2 : index
    %c2_86 = arith.constant 2 : index
    %c0_87 = arith.constant 0 : index
    %37 = vector.load %arg12[%c2_85, %c2_86, %c0_87] : memref<10x10x48xf32, #tpu.memory_space<vmem>>, vector<8x8x48xf32>
    %c0_88 = arith.constant 0 : index
    %c0_89 = arith.constant 0 : index
    %c384 = arith.constant 384 : index
    %38 = vector.load %arg13[%c0_88, %c0_89, %c384] : memref<8x8x432xf32, #tpu.memory_space<vmem>>, vector<8x8x48xf32>
    tpu.vector_store %arg13[%c0_88, %c0_89, %c384], %37 {strides = array<i32>} : memref<8x8x432xf32, #tpu.memory_space<vmem>>, vector<8x8x48xf32>,
    %c0_90 = arith.constant 0 : index
    %c0_91 = arith.constant 0 : index
    %c0_92 = arith.constant 0 : index
    %39 = vector.load %arg13[%c0_90, %c0_91, %c0_92] : memref<8x8x432xf32, #tpu.memory_space<vmem>>, vector<8x8x432xf32>
    %40 = vector.shape_cast %39 : vector<8x8x432xf32> to vector<64x432xf32>
    %c0_93 = arith.constant 0 : index
    %c0_94 = arith.constant 0 : index
    %41 = vector.load %arg4[%c0_93, %c0_94] : memref<432x48xf32, #tpu.memory_space<vmem>>, vector<432x48xf32>
    %cst_95 = arith.constant dense<0.000000e+00> : vector<64x48xf32>
    %42 = tpu.matmul %40, %41, %cst_95 {dimension_numbers = #tpu.dot_dimension_numbers<[1], [0], [0], [1], [0, 0, 1, 1], [], []>} : vector<64x432xf32>, vector<432x48xf32>, vector<64x48xf32> -> vector<64x48xf32>
    %c0_96 = arith.constant 0 : index
    %c0_97 = arith.constant 0 : index
    %43 = vector.load %arg5[%c0_96, %c0_97] : memref<1x48xf32, #tpu.memory_space<vmem>>, vector<1x48xf32>
    %44 = vector.broadcast %43 : vector<1x48xf32> to vector<64x48xf32>
    %45 = arith.addf %42, %44 : vector<64x48xf32>
    %cst_98 = arith.constant 0.000000e+00 : f32
    %46 = vector.broadcast %cst_98 : f32 to vector<64x48xf32>
    %47 = arith.maximumf %45, %46 : vector<64x48xf32>
    %c0_99 = arith.constant 0 : index
    %c0_100 = arith.constant 0 : index
    %c0_101 = arith.constant 0 : index
    %c0_102 = arith.constant 0 : index
    %48 = vector.load %arg3[%c0_99, %c0_100, %c0_101, %c0_102] : memref<1x8x8x1xf32, #tpu.memory_space<vmem>>, vector<1x8x8x1xf32>
    %49 = vector.shape_cast %48 : vector<1x8x8x1xf32> to vector<8x8x1xf32>
    %c1_103 = arith.constant 1 : index
    %c1_104 = arith.constant 1 : index
    %c0_105 = arith.constant 0 : index
    %50 = vector.load %arg14[%c1_103, %c1_104, %c0_105] : memref<10x10x1xf32, #tpu.memory_space<vmem>>, vector<8x8x1xf32>
    tpu.vector_store %arg14[%c1_103, %c1_104, %c0_105], %49 {strides = array<i32>} : memref<10x10x1xf32, #tpu.memory_space<vmem>>, vector<8x8x1xf32>,
    %c0_106 = arith.constant 0 : index
    %c0_107 = arith.constant 0 : index
    %c0_108 = arith.constant 0 : index
    %51 = vector.load %arg14[%c0_106, %c0_107, %c0_108] : memref<10x10x1xf32, #tpu.memory_space<vmem>>, vector<8x8x1xf32>
    %c0_109 = arith.constant 0 : index
    %c0_110 = arith.constant 0 : index
    %c0_111 = arith.constant 0 : index
    %52 = vector.load %arg15[%c0_109, %c0_110, %c0_111] : memref<8x8x9xf32, #tpu.memory_space<vmem>>, vector<8x8x1xf32>
    tpu.vector_store %arg15[%c0_109, %c0_110, %c0_111], %51 {strides = array<i32>} : memref<8x8x9xf32, #tpu.memory_space<vmem>>, vector<8x8x1xf32>,
    %c0_112 = arith.constant 0 : index
    %c1_113 = arith.constant 1 : index
    %c0_114 = arith.constant 0 : index
    %53 = vector.load %arg14[%c0_112, %c1_113, %c0_114] : memref<10x10x1xf32, #tpu.memory_space<vmem>>, vector<8x8x1xf32>
    %c0_115 = arith.constant 0 : index
    %c0_116 = arith.constant 0 : index
    %c1_117 = arith.constant 1 : index
    %54 = vector.load %arg15[%c0_115, %c0_116, %c1_117] : memref<8x8x9xf32, #tpu.memory_space<vmem>>, vector<8x8x1xf32>
    tpu.vector_store %arg15[%c0_115, %c0_116, %c1_117], %53 {strides = array<i32>} : memref<8x8x9xf32, #tpu.memory_space<vmem>>, vector<8x8x1xf32>,
    %c0_118 = arith.constant 0 : index
    %c2_119 = arith.constant 2 : index
    %c0_120 = arith.constant 0 : index
    %55 = vector.load %arg14[%c0_118, %c2_119, %c0_120] : memref<10x10x1xf32, #tpu.memory_space<vmem>>, vector<8x8x1xf32>
    %c0_121 = arith.constant 0 : index
    %c0_122 = arith.constant 0 : index
    %c2_123 = arith.constant 2 : index
    %56 = vector.load %arg15[%c0_121, %c0_122, %c2_123] : memref<8x8x9xf32, #tpu.memory_space<vmem>>, vector<8x8x1xf32>
    tpu.vector_store %arg15[%c0_121, %c0_122, %c2_123], %55 {strides = array<i32>} : memref<8x8x9xf32, #tpu.memory_space<vmem>>, vector<8x8x1xf32>,
    %c1_124 = arith.constant 1 : index
    %c0_125 = arith.constant 0 : index
    %c0_126 = arith.constant 0 : index
    %57 = vector.load %arg14[%c1_124, %c0_125, %c0_126] : memref<10x10x1xf32, #tpu.memory_space<vmem>>, vector<8x8x1xf32>
    %c0_127 = arith.constant 0 : index
    %c0_128 = arith.constant 0 : index
    %c3 = arith.constant 3 : index
    %58 = vector.load %arg15[%c0_127, %c0_128, %c3] : memref<8x8x9xf32, #tpu.memory_space<vmem>>, vector<8x8x1xf32>
    tpu.vector_store %arg15[%c0_127, %c0_128, %c3], %57 {strides = array<i32>} : memref<8x8x9xf32, #tpu.memory_space<vmem>>, vector<8x8x1xf32>,
    %c1_129 = arith.constant 1 : index
    %c1_130 = arith.constant 1 : index
    %c0_131 = arith.constant 0 : index
    %59 = vector.load %arg14[%c1_129, %c1_130, %c0_131] : memref<10x10x1xf32, #tpu.memory_space<vmem>>, vector<8x8x1xf32>
    %c0_132 = arith.constant 0 : index
    %c0_133 = arith.constant 0 : index
    %c4 = arith.constant 4 : index
    %60 = vector.load %arg15[%c0_132, %c0_133, %c4] : memref<8x8x9xf32, #tpu.memory_space<vmem>>, vector<8x8x1xf32>
    tpu.vector_store %arg15[%c0_132, %c0_133, %c4], %59 {strides = array<i32>} : memref<8x8x9xf32, #tpu.memory_space<vmem>>, vector<8x8x1xf32>,
    %c1_134 = arith.constant 1 : index
    %c2_135 = arith.constant 2 : index
    %c0_136 = arith.constant 0 : index
    %61 = vector.load %arg14[%c1_134, %c2_135, %c0_136] : memref<10x10x1xf32, #tpu.memory_space<vmem>>, vector<8x8x1xf32>
    %c0_137 = arith.constant 0 : index
    %c0_138 = arith.constant 0 : index
    %c5 = arith.constant 5 : index
    %62 = vector.load %arg15[%c0_137, %c0_138, %c5] : memref<8x8x9xf32, #tpu.memory_space<vmem>>, vector<8x8x1xf32>
    tpu.vector_store %arg15[%c0_137, %c0_138, %c5], %61 {strides = array<i32>} : memref<8x8x9xf32, #tpu.memory_space<vmem>>, vector<8x8x1xf32>,
    %c2_139 = arith.constant 2 : index
    %c0_140 = arith.constant 0 : index
    %c0_141 = arith.constant 0 : index
    %63 = vector.load %arg14[%c2_139, %c0_140, %c0_141] : memref<10x10x1xf32, #tpu.memory_space<vmem>>, vector<8x8x1xf32>
    %c0_142 = arith.constant 0 : index
    %c0_143 = arith.constant 0 : index
    %c6 = arith.constant 6 : index
    %64 = vector.load %arg15[%c0_142, %c0_143, %c6] : memref<8x8x9xf32, #tpu.memory_space<vmem>>, vector<8x8x1xf32>
    tpu.vector_store %arg15[%c0_142, %c0_143, %c6], %63 {strides = array<i32>} : memref<8x8x9xf32, #tpu.memory_space<vmem>>, vector<8x8x1xf32>,
    %c2_144 = arith.constant 2 : index
    %c1_145 = arith.constant 1 : index
    %c0_146 = arith.constant 0 : index
    %65 = vector.load %arg14[%c2_144, %c1_145, %c0_146] : memref<10x10x1xf32, #tpu.memory_space<vmem>>, vector<8x8x1xf32>
    %c0_147 = arith.constant 0 : index
    %c0_148 = arith.constant 0 : index
    %c7 = arith.constant 7 : index
    %66 = vector.load %arg15[%c0_147, %c0_148, %c7] : memref<8x8x9xf32, #tpu.memory_space<vmem>>, vector<8x8x1xf32>
    tpu.vector_store %arg15[%c0_147, %c0_148, %c7], %65 {strides = array<i32>} : memref<8x8x9xf32, #tpu.memory_space<vmem>>, vector<8x8x1xf32>,
    %c2_149 = arith.constant 2 : index
    %c2_150 = arith.constant 2 : index
    %c0_151 = arith.constant 0 : index
    %67 = vector.load %arg14[%c2_149, %c2_150, %c0_151] : memref<10x10x1xf32, #tpu.memory_space<vmem>>, vector<8x8x1xf32>
    %c0_152 = arith.constant 0 : index
    %c0_153 = arith.constant 0 : index
    %c8 = arith.constant 8 : index
    %68 = vector.load %arg15[%c0_152, %c0_153, %c8] : memref<8x8x9xf32, #tpu.memory_space<vmem>>, vector<8x8x1xf32>
    tpu.vector_store %arg15[%c0_152, %c0_153, %c8], %67 {strides = array<i32>} : memref<8x8x9xf32, #tpu.memory_space<vmem>>, vector<8x8x1xf32>,
    %c0_154 = arith.constant 0 : index
    %c0_155 = arith.constant 0 : index
    %c0_156 = arith.constant 0 : index
    %69 = vector.load %arg15[%c0_154, %c0_155, %c0_156] : memref<8x8x9xf32, #tpu.memory_space<vmem>>, vector<8x8x9xf32>
    %70 = vector.shape_cast %69 : vector<8x8x9xf32> to vector<64x9xf32>
    %c0_157 = arith.constant 0 : index
    %c0_158 = arith.constant 0 : index
    %71 = vector.load %arg6[%c0_157, %c0_158] : memref<9x48xf32, #tpu.memory_space<vmem>>, vector<9x48xf32>
    %cst_159 = arith.constant dense<0.000000e+00> : vector<64x48xf32>
    %72 = tpu.matmul %70, %71, %cst_159 {dimension_numbers = #tpu.dot_dimension_numbers<[1], [0], [0], [1], [0, 0, 1, 1], [], []>} : vector<64x9xf32>, vector<9x48xf32>, vector<64x48xf32> -> vector<64x48xf32>
    %c0_160 = arith.constant 0 : index
    %c0_161 = arith.constant 0 : index
    %73 = vector.load %arg7[%c0_160, %c0_161] : memref<1x48xf32, #tpu.memory_space<vmem>>, vector<1x48xf32>
    %74 = vector.broadcast %73 : vector<1x48xf32> to vector<64x48xf32>
    %75 = arith.addf %72, %74 : vector<64x48xf32>
    %cst_162 = arith.constant 0.000000e+00 : f32
    %76 = vector.broadcast %cst_162 : f32 to vector<64x48xf32>
    %77 = arith.maximumf %75, %76 : vector<64x48xf32>
    %cst_163 = arith.constant dense<0.000000e+00> : vector<48xf32>
    %78 = vector.multi_reduction <add>, %77, %cst_163 [0] : vector<64x48xf32> to vector<48xf32>
    %79 = vector.shape_cast %78 : vector<48xf32> to vector<1x48xf32>
    %cst_164 = arith.constant 6.400000e+01 : f32
    %80 = vector.broadcast %cst_164 : f32 to vector<1x48xf32>
    %81 = arith.divf %79, %80 : vector<1x48xf32>
    %82 = vector.shape_cast %47 : vector<64x48xf32> to vector<8x8x48xf32>
    %c1_165 = arith.constant 1 : index
    %c1_166 = arith.constant 1 : index
    %c0_167 = arith.constant 0 : index
    %83 = vector.load %arg16[%c1_165, %c1_166, %c0_167] : memref<10x10x48xf32, #tpu.memory_space<vmem>>, vector<8x8x48xf32>
    tpu.vector_store %arg16[%c1_165, %c1_166, %c0_167], %82 {strides = array<i32>} : memref<10x10x48xf32, #tpu.memory_space<vmem>>, vector<8x8x48xf32>,
    %c0_168 = arith.constant 0 : index
    %c0_169 = arith.constant 0 : index
    %c0_170 = arith.constant 0 : index
    %84 = vector.load %arg16[%c0_168, %c0_169, %c0_170] : memref<10x10x48xf32, #tpu.memory_space<vmem>>, vector<8x8x48xf32>
    %c0_171 = arith.constant 0 : index
    %c0_172 = arith.constant 0 : index
    %c0_173 = arith.constant 0 : index
    %85 = vector.load %arg17[%c0_171, %c0_172, %c0_173] : memref<8x8x432xf32, #tpu.memory_space<vmem>>, vector<8x8x48xf32>
    tpu.vector_store %arg17[%c0_171, %c0_172, %c0_173], %84 {strides = array<i32>} : memref<8x8x432xf32, #tpu.memory_space<vmem>>, vector<8x8x48xf32>,
    %c0_174 = arith.constant 0 : index
    %c1_175 = arith.constant 1 : index
    %c0_176 = arith.constant 0 : index
    %86 = vector.load %arg16[%c0_174, %c1_175, %c0_176] : memref<10x10x48xf32, #tpu.memory_space<vmem>>, vector<8x8x48xf32>
    %c0_177 = arith.constant 0 : index
    %c0_178 = arith.constant 0 : index
    %c48_179 = arith.constant 48 : index
    %87 = vector.load %arg17[%c0_177, %c0_178, %c48_179] : memref<8x8x432xf32, #tpu.memory_space<vmem>>, vector<8x8x48xf32>
    tpu.vector_store %arg17[%c0_177, %c0_178, %c48_179], %86 {strides = array<i32>} : memref<8x8x432xf32, #tpu.memory_space<vmem>>, vector<8x8x48xf32>,
    %c0_180 = arith.constant 0 : index
    %c2_181 = arith.constant 2 : index
    %c0_182 = arith.constant 0 : index
    %88 = vector.load %arg16[%c0_180, %c2_181, %c0_182] : memref<10x10x48xf32, #tpu.memory_space<vmem>>, vector<8x8x48xf32>
    %c0_183 = arith.constant 0 : index
    %c0_184 = arith.constant 0 : index
    %c96_185 = arith.constant 96 : index
    %89 = vector.load %arg17[%c0_183, %c0_184, %c96_185] : memref<8x8x432xf32, #tpu.memory_space<vmem>>, vector<8x8x48xf32>
    tpu.vector_store %arg17[%c0_183, %c0_184, %c96_185], %88 {strides = array<i32>} : memref<8x8x432xf32, #tpu.memory_space<vmem>>, vector<8x8x48xf32>,
    %c1_186 = arith.constant 1 : index
    %c0_187 = arith.constant 0 : index
    %c0_188 = arith.constant 0 : index
    %90 = vector.load %arg16[%c1_186, %c0_187, %c0_188] : memref<10x10x48xf32, #tpu.memory_space<vmem>>, vector<8x8x48xf32>
    %c0_189 = arith.constant 0 : index
    %c0_190 = arith.constant 0 : index
    %c144_191 = arith.constant 144 : index
    %91 = vector.load %arg17[%c0_189, %c0_190, %c144_191] : memref<8x8x432xf32, #tpu.memory_space<vmem>>, vector<8x8x48xf32>
    tpu.vector_store %arg17[%c0_189, %c0_190, %c144_191], %90 {strides = array<i32>} : memref<8x8x432xf32, #tpu.memory_space<vmem>>, vector<8x8x48xf32>,
    %c1_192 = arith.constant 1 : index
    %c1_193 = arith.constant 1 : index
    %c0_194 = arith.constant 0 : index
    %92 = vector.load %arg16[%c1_192, %c1_193, %c0_194] : memref<10x10x48xf32, #tpu.memory_space<vmem>>, vector<8x8x48xf32>
    %c0_195 = arith.constant 0 : index
    %c0_196 = arith.constant 0 : index
    %c192_197 = arith.constant 192 : index
    %93 = vector.load %arg17[%c0_195, %c0_196, %c192_197] : memref<8x8x432xf32, #tpu.memory_space<vmem>>, vector<8x8x48xf32>
    tpu.vector_store %arg17[%c0_195, %c0_196, %c192_197], %92 {strides = array<i32>} : memref<8x8x432xf32, #tpu.memory_space<vmem>>, vector<8x8x48xf32>,
    %c1_198 = arith.constant 1 : index
    %c2_199 = arith.constant 2 : index
    %c0_200 = arith.constant 0 : index
    %94 = vector.load %arg16[%c1_198, %c2_199, %c0_200] : memref<10x10x48xf32, #tpu.memory_space<vmem>>, vector<8x8x48xf32>
    %c0_201 = arith.constant 0 : index
    %c0_202 = arith.constant 0 : index
    %c240_203 = arith.constant 240 : index
    %95 = vector.load %arg17[%c0_201, %c0_202, %c240_203] : memref<8x8x432xf32, #tpu.memory_space<vmem>>, vector<8x8x48xf32>
    tpu.vector_store %arg17[%c0_201, %c0_202, %c240_203], %94 {strides = array<i32>} : memref<8x8x432xf32, #tpu.memory_space<vmem>>, vector<8x8x48xf32>,
    %c2_204 = arith.constant 2 : index
    %c0_205 = arith.constant 0 : index
    %c0_206 = arith.constant 0 : index
    %96 = vector.load %arg16[%c2_204, %c0_205, %c0_206] : memref<10x10x48xf32, #tpu.memory_space<vmem>>, vector<8x8x48xf32>
    %c0_207 = arith.constant 0 : index
    %c0_208 = arith.constant 0 : index
    %c288_209 = arith.constant 288 : index
    %97 = vector.load %arg17[%c0_207, %c0_208, %c288_209] : memref<8x8x432xf32, #tpu.memory_space<vmem>>, vector<8x8x48xf32>
    tpu.vector_store %arg17[%c0_207, %c0_208, %c288_209], %96 {strides = array<i32>} : memref<8x8x432xf32, #tpu.memory_space<vmem>>, vector<8x8x48xf32>,
    %c2_210 = arith.constant 2 : index
    %c1_211 = arith.constant 1 : index
    %c0_212 = arith.constant 0 : index
    %98 = vector.load %arg16[%c2_210, %c1_211, %c0_212] : memref<10x10x48xf32, #tpu.memory_space<vmem>>, vector<8x8x48xf32>
    %c0_213 = arith.constant 0 : index
    %c0_214 = arith.constant 0 : index
    %c336_215 = arith.constant 336 : index
    %99 = vector.load %arg17[%c0_213, %c0_214, %c336_215] : memref<8x8x432xf32, #tpu.memory_space<vmem>>, vector<8x8x48xf32>
    tpu.vector_store %arg17[%c0_213, %c0_214, %c336_215], %98 {strides = array<i32>} : memref<8x8x432xf32, #tpu.memory_space<vmem>>, vector<8x8x48xf32>,
    %c2_216 = arith.constant 2 : index
    %c2_217 = arith.constant 2 : index
    %c0_218 = arith.constant 0 : index
    %100 = vector.load %arg16[%c2_216, %c2_217, %c0_218] : memref<10x10x48xf32, #tpu.memory_space<vmem>>, vector<8x8x48xf32>
    %c0_219 = arith.constant 0 : index
    %c0_220 = arith.constant 0 : index
    %c384_221 = arith.constant 384 : index
    %101 = vector.load %arg17[%c0_219, %c0_220, %c384_221] : memref<8x8x432xf32, #tpu.memory_space<vmem>>, vector<8x8x48xf32>
    tpu.vector_store %arg17[%c0_219, %c0_220, %c384_221], %100 {strides = array<i32>} : memref<8x8x432xf32, #tpu.memory_space<vmem>>, vector<8x8x48xf32>,
    %c0_222 = arith.constant 0 : index
    %c0_223 = arith.constant 0 : index
    %c0_224 = arith.constant 0 : index
    %102 = vector.load %arg17[%c0_222, %c0_223, %c0_224] : memref<8x8x432xf32, #tpu.memory_space<vmem>>, vector<8x8x432xf32>
    %103 = vector.shape_cast %102 : vector<8x8x432xf32> to vector<64x432xf32>
    %c0_225 = arith.constant 0 : index
    %c0_226 = arith.constant 0 : index
    %104 = vector.load %arg8[%c0_225, %c0_226] : memref<432x128xf32, #tpu.memory_space<vmem>>, vector<432x128xf32>
    %cst_227 = arith.constant dense<0.000000e+00> : vector<64x128xf32>
    %105 = tpu.matmul %103, %104, %cst_227 {dimension_numbers = #tpu.dot_dimension_numbers<[1], [0], [0], [1], [0, 0, 1, 1], [], []>} : vector<64x432xf32>, vector<432x128xf32>, vector<64x128xf32> -> vector<64x128xf32>
    %c0_228 = arith.constant 0 : index
    %c0_229 = arith.constant 0 : index
    %106 = vector.load %arg9[%c0_228, %c0_229] : memref<48x1152xf32, #tpu.memory_space<vmem>>, vector<48x1152xf32>
    %cst_230 = arith.constant dense<0.000000e+00> : vector<1x1152xf32>
    %107 = tpu.matmul %81, %106, %cst_230 {dimension_numbers = #tpu.dot_dimension_numbers<[1], [0], [0], [1], [0, 0, 1, 1], [], []>} : vector<1x48xf32>, vector<48x1152xf32>, vector<1x1152xf32> -> vector<1x1152xf32>
    %c0_231 = arith.constant 0 : index
    %c0_232 = arith.constant 0 : index
    %108 = vector.load %arg1[%c0_231, %c0_232] : memref<64x9xf32, #tpu.memory_space<vmem>>, vector<64x9xf32>
    %109 = vector.extract_strided_slice %108 {offsets = [0, 0], sizes = [64, 1], strides = [1, 1]} : vector<64x9xf32> to vector<64x1xf32>
    %110 = vector.extract_strided_slice %107 {offsets = [0, 0], sizes = [1, 128], strides = [1, 1]} : vector<1x1152xf32> to vector<1x128xf32>
    %111 = vector.broadcast %109 : vector<64x1xf32> to vector<64x128xf32>
    %112 = vector.broadcast %110 : vector<1x128xf32> to vector<64x128xf32>
    %113 = arith.mulf %111, %112 : vector<64x128xf32>
    %114 = arith.addf %105, %113 : vector<64x128xf32>
    %115 = vector.extract_strided_slice %108 {offsets = [0, 1], sizes = [64, 1], strides = [1, 1]} : vector<64x9xf32> to vector<64x1xf32>
    %116 = vector.extract_strided_slice %107 {offsets = [0, 128], sizes = [1, 128], strides = [1, 1]} : vector<1x1152xf32> to vector<1x128xf32>
    %117 = vector.broadcast %115 : vector<64x1xf32> to vector<64x128xf32>
    %118 = vector.broadcast %116 : vector<1x128xf32> to vector<64x128xf32>
    %119 = arith.mulf %117, %118 : vector<64x128xf32>
    %120 = arith.addf %114, %119 : vector<64x128xf32>
    %121 = vector.extract_strided_slice %108 {offsets = [0, 2], sizes = [64, 1], strides = [1, 1]} : vector<64x9xf32> to vector<64x1xf32>
    %122 = vector.extract_strided_slice %107 {offsets = [0, 256], sizes = [1, 128], strides = [1, 1]} : vector<1x1152xf32> to vector<1x128xf32>
    %123 = vector.broadcast %121 : vector<64x1xf32> to vector<64x128xf32>
    %124 = vector.broadcast %122 : vector<1x128xf32> to vector<64x128xf32>
    %125 = arith.mulf %123, %124 : vector<64x128xf32>
    %126 = arith.addf %120, %125 : vector<64x128xf32>
    %127 = vector.extract_strided_slice %108 {offsets = [0, 3], sizes = [64, 1], strides = [1, 1]} : vector<64x9xf32> to vector<64x1xf32>
    %128 = vector.extract_strided_slice %107 {offsets = [0, 384], sizes = [1, 128], strides = [1, 1]} : vector<1x1152xf32> to vector<1x128xf32>
    %129 = vector.broadcast %127 : vector<64x1xf32> to vector<64x128xf32>
    %130 = vector.broadcast %128 : vector<1x128xf32> to vector<64x128xf32>
    %131 = arith.mulf %129, %130 : vector<64x128xf32>
    %132 = arith.addf %126, %131 : vector<64x128xf32>
    %133 = vector.extract_strided_slice %108 {offsets = [0, 4], sizes = [64, 1], strides = [1, 1]} : vector<64x9xf32> to vector<64x1xf32>
    %134 = vector.extract_strided_slice %107 {offsets = [0, 512], sizes = [1, 128], strides = [1, 1]} : vector<1x1152xf32> to vector<1x128xf32>
    %135 = vector.broadcast %133 : vector<64x1xf32> to vector<64x128xf32>
    %136 = vector.broadcast %134 : vector<1x128xf32> to vector<64x128xf32>
    %137 = arith.mulf %135, %136 : vector<64x128xf32>
    %138 = arith.addf %132, %137 : vector<64x128xf32>
    %139 = vector.extract_strided_slice %108 {offsets = [0, 5], sizes = [64, 1], strides = [1, 1]} : vector<64x9xf32> to vector<64x1xf32>
    %140 = vector.extract_strided_slice %107 {offsets = [0, 640], sizes = [1, 128], strides = [1, 1]} : vector<1x1152xf32> to vector<1x128xf32>
    %141 = vector.broadcast %139 : vector<64x1xf32> to vector<64x128xf32>
    %142 = vector.broadcast %140 : vector<1x128xf32> to vector<64x128xf32>
    %143 = arith.mulf %141, %142 : vector<64x128xf32>
    %144 = arith.addf %138, %143 : vector<64x128xf32>
    %145 = vector.extract_strided_slice %108 {offsets = [0, 6], sizes = [64, 1], strides = [1, 1]} : vector<64x9xf32> to vector<64x1xf32>
    %146 = vector.extract_strided_slice %107 {offsets = [0, 768], sizes = [1, 128], strides = [1, 1]} : vector<1x1152xf32> to vector<1x128xf32>
    %147 = vector.broadcast %145 : vector<64x1xf32> to vector<64x128xf32>
    %148 = vector.broadcast %146 : vector<1x128xf32> to vector<64x128xf32>
    %149 = arith.mulf %147, %148 : vector<64x128xf32>
    %150 = arith.addf %144, %149 : vector<64x128xf32>
    %151 = vector.extract_strided_slice %108 {offsets = [0, 7], sizes = [64, 1], strides = [1, 1]} : vector<64x9xf32> to vector<64x1xf32>
    %152 = vector.extract_strided_slice %107 {offsets = [0, 896], sizes = [1, 128], strides = [1, 1]} : vector<1x1152xf32> to vector<1x128xf32>
    %153 = vector.broadcast %151 : vector<64x1xf32> to vector<64x128xf32>
    %154 = vector.broadcast %152 : vector<1x128xf32> to vector<64x128xf32>
    %155 = arith.mulf %153, %154 : vector<64x128xf32>
    %156 = arith.addf %150, %155 : vector<64x128xf32>
    %157 = vector.extract_strided_slice %108 {offsets = [0, 8], sizes = [64, 1], strides = [1, 1]} : vector<64x9xf32> to vector<64x1xf32>
    %158 = vector.extract_strided_slice %107 {offsets = [0, 1024], sizes = [1, 128], strides = [1, 1]} : vector<1x1152xf32> to vector<1x128xf32>
    %159 = vector.broadcast %157 : vector<64x1xf32> to vector<64x128xf32>
    %160 = vector.broadcast %158 : vector<1x128xf32> to vector<64x128xf32>
    %161 = arith.mulf %159, %160 : vector<64x128xf32>
    %162 = arith.addf %156, %161 : vector<64x128xf32>
    %c0_233 = arith.constant 0 : index
    %c0_234 = arith.constant 0 : index
    %163 = vector.load %arg10[%c0_233, %c0_234] : memref<1x128xf32, #tpu.memory_space<vmem>>, vector<1x128xf32>
    %164 = vector.broadcast %163 : vector<1x128xf32> to vector<64x128xf32>
    %165 = arith.addf %162, %164 : vector<64x128xf32>
    %c0_235 = arith.constant 0 : index
    %c0_236 = arith.constant 0 : index
    %c0_237 = arith.constant 0 : index
    %166 = vector.load %arg11[%c0_235, %c0_236, %c0_237] : memref<1x64x128xf32, #tpu.memory_space<vmem>>, vector<1x64x128xf32>
    %167 = vector.shape_cast %166 : vector<1x64x128xf32> to vector<64x128xf32>
    %168 = vector.shape_cast %165 : vector<64x128xf32> to vector<1x64x128xf32>
    tpu.vector_store %arg11[%c0_235, %c0_236, %c0_237], %168 {strides = array<i32>} : memref<1x64x128xf32, #tpu.memory_space<vmem>>, vector<1x64x128xf32>,
    return
  }
  func.func @transform_0(%arg0: i32) -> (i32, i32) {
    %c0_i32 = arith.constant 0 : i32
    %c0_i32_0 = arith.constant 0 : i32
    %c0_i32_1 = arith.constant 0 : i32
    return %c0_i32, %c0_i32_0 : i32, i32
  }
  func.func @transform_1(%arg0: i32) -> (i32, i32, i32, i32) {
    %c0_i32 = arith.constant 0 : i32
    %c0_i32_0 = arith.constant 0 : i32
    %c0_i32_1 = arith.constant 0 : i32
    %c0_i32_2 = arith.constant 0 : i32
    return %arg0, %c0_i32, %c0_i32_0, %c0_i32_1 : i32, i32, i32, i32
  }
  func.func @transform_2(%arg0: i32) -> (i32, i32, i32, i32) {
    %c0_i32 = arith.constant 0 : i32
    %c0_i32_0 = arith.constant 0 : i32
    %c0_i32_1 = arith.constant 0 : i32
    %c0_i32_2 = arith.constant 0 : i32
    return %arg0, %c0_i32, %c0_i32_0, %c0_i32_1 : i32, i32, i32, i32
  }
  func.func @transform_3(%arg0: i32) -> (i32, i32) {
    %c0_i32 = arith.constant 0 : i32
    %c0_i32_0 = arith.constant 0 : i32
    %c0_i32_1 = arith.constant 0 : i32
    return %c0_i32, %c0_i32_0 : i32, i32
  }
  func.func @transform_4(%arg0: i32) -> (i32, i32) {
    %c0_i32 = arith.constant 0 : i32
    %c0_i32_0 = arith.constant 0 : i32
    %c0_i32_1 = arith.constant 0 : i32
    return %c0_i32, %c0_i32_0 : i32, i32
  }
  func.func @transform_5(%arg0: i32) -> (i32, i32) {
    %c0_i32 = arith.constant 0 : i32
    %c0_i32_0 = arith.constant 0 : i32
    %c0_i32_1 = arith.constant 0 : i32
    return %c0_i32, %c0_i32_0 : i32, i32
  }
  func.func @transform_6(%arg0: i32) -> (i32, i32) {
    %c0_i32 = arith.constant 0 : i32
    %c0_i32_0 = arith.constant 0 : i32
    %c0_i32_1 = arith.constant 0 : i32
    return %c0_i32, %c0_i32_0 : i32, i32
  }
  func.func @transform_7(%arg0: i32) -> (i32, i32) {
    %c0_i32 = arith.constant 0 : i32
    %c0_i32_0 = arith.constant 0 : i32
    %c0_i32_1 = arith.constant 0 : i32
    return %c0_i32, %c0_i32_0 : i32, i32
  }
  func.func @transform_8(%arg0: i32) -> (i32, i32) {
    %c0_i32 = arith.constant 0 : i32
    %c0_i32_0 = arith.constant 0 : i32
    %c0_i32_1 = arith.constant 0 : i32
    return %c0_i32, %c0_i32_0 : i32, i32
  }
  func.func @transform_9(%arg0: i32) -> (i32, i32) {
    %c0_i32 = arith.constant 0 : i32
    %c0_i32_0 = arith.constant 0 : i32
    %c0_i32_1 = arith.constant 0 : i32
    return %c0_i32, %c0_i32_0 : i32, i32
  }
  func.func @transform_10(%arg0: i32) -> (i32, i32, i32) {
    %c0_i32 = arith.constant 0 : i32
    %c0_i32_0 = arith.constant 0 : i32
    %c0_i32_1 = arith.constant 0 : i32
    return %arg0, %c0_i32, %c0_i32_0 : i32, i32, i32
  }
}

</mosaic_0001>

<llo_original>
// kernel: watermark_extraction_forward.1
$region0: #{watermark_extraction_forward.1}
  #allocation0 [shape = 'u32[]', space=smem, size = 0x4, offset = 0x4, fixed_abs, tag = 'smem constant byte address 0x4 - core index']
  #allocation1 [shape = 'u32[72,128]{1,0:T(1,128)}', space=vmem, size = 0x9000, scoped, tag = 'internal scratch']
  #allocation2 [shape = 'f32[10,10,48]{2,1,0:T(8,128)}', space=vmem, size = 0x14000, scoped, tag = 'scratch operand']
  #allocation3 [shape = 'f32[8,8,432]{2,1,0:T(8,128)}', space=vmem, size = 0x20000, scoped, tag = 'scratch operand']
  #allocation4 [shape = 'f32[10,10,1]{2,1,0:T(8,128)}', space=vmem, size = 0x14000, scoped, tag = 'scratch operand']
  #allocation5 [shape = 'f32[8,8,9]{2,1,0:T(8,128)}', space=vmem, size = 0x8000, scoped, tag = 'scratch operand']
  #allocation6 [shape = 'f32[10,10,48]{2,1,0:T(8,128)}', space=vmem, size = 0x14000, scoped, tag = 'scratch operand']
  #allocation7 [shape = 'f32[8,8,432]{2,1,0:T(8,128)}', space=vmem, size = 0x20000, scoped, tag = 'scratch operand']
  %s0 = inlined_call_operand.vmem [shape: f32[64,9], index: 0, kind: input, shape index: {}]
  %s1 = inlined_call_operand.vmem [shape: f32[2,8,8,48], index: 1, kind: input, shape index: {}]
  %s2 = inlined_call_operand.vmem [shape: f32[2,8,8,1], index: 2, kind: input, shape index: {}]
  %s3 = inlined_call_operand.vmem [shape: f32[432,48], index: 3, kind: input, shape index: {}]
  %s4 = inlined_call_operand.vmem [shape: f32[1,48], index: 4, kind: input, shape index: {}]
  %s5 = inlined_call_operand.vmem [shape: f32[9,48], index: 5, kind: input, shape index: {}]
  %s6 = inlined_call_operand.vmem [shape: f32[1,48], index: 6, kind: input, shape index: {}]
  %s7 = inlined_call_operand.vmem [shape: f32[432,128], index: 7, kind: input, shape index: {}]
  %s8 = inlined_call_operand.vmem [shape: f32[48,1152], index: 8, kind: input, shape index: {}]
  %s9 = inlined_call_operand.vmem [shape: f32[1,128], index: 9, kind: input, shape index: {}]
  %s10 = inlined_call_operand.vmem [shape: f32[2,64,128], index: 10, kind: output, shape index: {}]
  %s11 = sld [smem:[#allocation0]]
  $region73: #{watermark_extraction_forward.1} parent=0
    _
  %s13 = ssub.s32 1, %s11
  %s14 = scalar_select 0, %s13, %s11
  loop: start=0, step=1, limit=4
  $region2: #{watermark_extraction_forward.1} parent=0 // loop_pre_header
    _
  $region3: #{watermark_extraction_forward.1} parent=0 // loop_header
    %s16 = sphi 0, %s20
    %p17 = scmp.ge.s32.totalorder %s16, 4
    %s24 = sphi 0, %s24
    %s26 = sphi 0, %s24
    %s27 = sphi 0, %s26
    %s41 = sphi 0, %s27
    %s47 = sphi 0, %s49
    %s50 = sphi 0, %s47
    %s51 = sphi 0, %s50
    %s67 = sphi 0, %s51
    %s73 = sphi 0, %s75
    %s76 = sphi 0, %s73
    %s77 = sphi 0, %s76
    %s93 = sphi 0, %s77
    %s97 = sphi 0, %s97
    %s99 = sphi 0, %s97
    %s100 = sphi 0, %s99
    %s114 = sphi 0, %s100
    %s118 = sphi 0, %s118
    %s120 = sphi 0, %s118
    %s121 = sphi 0, %s120
    %s135 = sphi 0, %s121
    %s139 = sphi 0, %s139
    %s141 = sphi 0, %s139
    %s142 = sphi 0, %s141
    %s156 = sphi 0, %s142
    %s160 = sphi 0, %s160
    %s162 = sphi 0, %s160
    %s163 = sphi 0, %s162
    %s177 = sphi 0, %s163
    %s181 = sphi 0, %s181
    %s183 = sphi 0, %s181
    %s184 = sphi 0, %s183
    %s198 = sphi 0, %s184
    %s202 = sphi 0, %s202
    %s204 = sphi 0, %s202
    %s205 = sphi 0, %s204
    %s219 = sphi 0, %s205
    %s223 = sphi 0, %s223
    %s225 = sphi 0, %s223
    %s226 = sphi 0, %s225
    %s240 = sphi 0, %s226
    %s246 = sphi 0, %s248
    %s249 = sphi 0, %s246
    %s250 = sphi 0, %s249
    %s266 = sphi 0, %s250
  $region4: #{watermark_extraction_forward.1} parent=0 // loop_header_branch
    %19 = sbr.rel (%p17) target = $region8
  $region5: #{watermark_extraction_forward.1} parent=0 // loop_body
    %s21 = ssub.s32 %s16, 1
    %s22 = ssub.s32 %s16, 2
    %s23 = sadd.s32 %s16, 1
    %s25 = sadd.s32 %s24, 1
    %p28 = scmp.eq.s32.totalorder %s16, 1
    %p29 = scmp.ne.s32.totalorder %s24, %s26
    %p30 = scmp.eq.s32.totalorder %s16, 0
    %p31 = por %p29, %p30
    %p32 = scmp.ne.s32.totalorder %s24, %s26
    %p33 = scmp.eq.s32.totalorder %s21, 1
    %p34 = por %p32, %p33
    %p35 = scmp.ne.s32.totalorder %s26, %s27
    %p36 = scmp.eq.s32.totalorder %s21, 0
    %p37 = por %p35, %p36
    %p38 = scmp.ne.s32.totalorder %s26, %s27
    %p39 = scmp.eq.s32.totalorder %s22, 1
    %p40 = por %p38, %p39
    %p42 = scmp.ne.s32.totalorder %s27, %s41
    %p43 = scmp.eq.s32.totalorder %s22, 0
    %p44 = por %p42, %p43
    %s45 = ssub.s32 %s16, %s23
    %p46 = scmp.eq.s32.totalorder %s45, 0
    %s48 = sadd.s32 %s47, 1
    %s49 = scalar_select %p46, %s47, %s48
    %p52 = pneg %p46
    %p53 = scmp.eq.s32.totalorder %s16, 1
    %p54 = por %p52, %p53
    %p55 = scmp.ne.s32.totalorder %s47, %s50
    %p56 = scmp.eq.s32.totalorder %s16, 0
    %p57 = por %p55, %p56
    %p58 = scmp.ne.s32.totalorder %s47, %s50
    %p59 = scmp.eq.s32.totalorder %s21, 1
    %p60 = por %p58, %p59
    %p61 = scmp.ne.s32.totalorder %s50, %s51
    %p62 = scmp.eq.s32.totalorder %s21, 0
    %p63 = por %p61, %p62
    %p64 = scmp.ne.s32.totalorder %s50, %s51
    %p65 = scmp.eq.s32.totalorder %s22, 1
    %p66 = por %p64, %p65
    %p68 = scmp.ne.s32.totalorder %s51, %s67
    %p69 = scmp.eq.s32.totalorder %s22, 0
    %p70 = por %p68, %p69
    %s71 = ssub.s32 %s16, %s23
    %p72 = scmp.eq.s32.totalorder %s71, 0
    %s74 = sadd.s32 %s73, 1
    %s75 = scalar_select %p72, %s73, %s74
    %p78 = pneg %p72
    %p79 = scmp.eq.s32.totalorder %s16, 1
    %p80 = por %p78, %p79
    %p81 = scmp.ne.s32.totalorder %s73, %s76
    %p82 = scmp.eq.s32.totalorder %s16, 0
    %p83 = por %p81, %p82
    %p84 = scmp.ne.s32.totalorder %s73, %s76
    %p85 = scmp.eq.s32.totalorder %s21, 1
    %p86 = por %p84, %p85
    %p87 = scmp.ne.s32.totalorder %s76, %s77
    %p88 = scmp.eq.s32.totalorder %s21, 0
    %p89 = por %p87, %p88
    %p90 = scmp.ne.s32.totalorder %s76, %s77
    %p91 = scmp.eq.s32.totalorder %s22, 1
    %p92 = por %p90, %p91
    %p94 = scmp.ne.s32.totalorder %s77, %s93
    %p95 = scmp.eq.s32.totalorder %s22, 0
    %p96 = por %p94, %p95
    %s98 = sadd.s32 %s97, 1
    %p101 = scmp.eq.s32.totalorder %s16, 1
    %p102 = scmp.ne.s32.totalorder %s97, %s99
    %p103 = scmp.eq.s32.totalorder %s16, 0
    %p104 = por %p102, %p103
    %p105 = scmp.ne.s32.totalorder %s97, %s99
    %p106 = scmp.eq.s32.totalorder %s21, 1
    %p107 = por %p105, %p106
    %p108 = scmp.ne.s32.totalorder %s99, %s100
    %p109 = scmp.eq.s32.totalorder %s21, 0
    %p110 = por %p108, %p109
    %p111 = scmp.ne.s32.totalorder %s99, %s100
    %p112 = scmp.eq.s32.totalorder %s22, 1
    %p113 = por %p111, %p112
    %p115 = scmp.ne.s32.totalorder %s100, %s114
    %p116 = scmp.eq.s32.totalorder %s22, 0
    %p117 = por %p115, %p116
    %s119 = sadd.s32 %s118, 1
    %p122 = scmp.eq.s32.totalorder %s16, 1
    %p123 = scmp.ne.s32.totalorder %s118, %s120
    %p124 = scmp.eq.s32.totalorder %s16, 0
    %p125 = por %p123, %p124
    %p126 = scmp.ne.s32.totalorder %s118, %s120
    %p127 = scmp.eq.s32.totalorder %s21, 1
    %p128 = por %p126, %p127
    %p129 = scmp.ne.s32.totalorder %s120, %s121
    %p130 = scmp.eq.s32.totalorder %s21, 0
    %p131 = por %p129, %p130
    %p132 = scmp.ne.s32.totalorder %s120, %s121
    %p133 = scmp.eq.s32.totalorder %s22, 1
    %p134 = por %p132, %p133
    %p136 = scmp.ne.s32.totalorder %s121, %s135
    %p137 = scmp.eq.s32.totalorder %s22, 0
    %p138 = por %p136, %p137
    %s140 = sadd.s32 %s139, 1
    %p143 = scmp.eq.s32.totalorder %s16, 1
    %p144 = scmp.ne.s32.totalorder %s139, %s141
    %p145 = scmp.eq.s32.totalorder %s16, 0
    %p146 = por %p144, %p145
    %p147 = scmp.ne.s32.totalorder %s139, %s141
    %p148 = scmp.eq.s32.totalorder %s21, 1
    %p149 = por %p147, %p148
    %p150 = scmp.ne.s32.totalorder %s141, %s142
    %p151 = scmp.eq.s32.totalorder %s21, 0
    %p152 = por %p150, %p151
    %p153 = scmp.ne.s32.totalorder %s141, %s142
    %p154 = scmp.eq.s32.totalorder %s22, 1
    %p155 = por %p153, %p154
    %p157 = scmp.ne.s32.totalorder %s142, %s156
    %p158 = scmp.eq.s32.totalorder %s22, 0
    %p159 = por %p157, %p158
    %s161 = sadd.s32 %s160, 1
    %p164 = scmp.eq.s32.totalorder %s16, 1
    %p165 = scmp.ne.s32.totalorder %s160, %s162
    %p166 = scmp.eq.s32.totalorder %s16, 0
    %p167 = por %p165, %p166
    %p168 = scmp.ne.s32.totalorder %s160, %s162
    %p169 = scmp.eq.s32.totalorder %s21, 1
    %p170 = por %p168, %p169
    %p171 = scmp.ne.s32.totalorder %s162, %s163
    %p172 = scmp.eq.s32.totalorder %s21, 0
    %p173 = por %p171, %p172
    %p174 = scmp.ne.s32.totalorder %s162, %s163
    %p175 = scmp.eq.s32.totalorder %s22, 1
    %p176 = por %p174, %p175
    %p178 = scmp.ne.s32.totalorder %s163, %s177
    %p179 = scmp.eq.s32.totalorder %s22, 0
    %p180 = por %p178, %p179
    %s182 = sadd.s32 %s181, 1
    %p185 = scmp.eq.s32.totalorder %s16, 1
    %p186 = scmp.ne.s32.totalorder %s181, %s183
    %p187 = scmp.eq.s32.totalorder %s16, 0
    %p188 = por %p186, %p187
    %p189 = scmp.ne.s32.totalorder %s181, %s183
    %p190 = scmp.eq.s32.totalorder %s21, 1
    %p191 = por %p189, %p190
    %p192 = scmp.ne.s32.totalorder %s183, %s184
    %p193 = scmp.eq.s32.totalorder %s21, 0
    %p194 = por %p192, %p193
    %p195 = scmp.ne.s32.totalorder %s183, %s184
    %p196 = scmp.eq.s32.totalorder %s22, 1
    %p197 = por %p195, %p196
    %p199 = scmp.ne.s32.totalorder %s184, %s198
    %p200 = scmp.eq.s32.totalorder %s22, 0
    %p201 = por %p199, %p200
    %s203 = sadd.s32 %s202, 1
    %p206 = scmp.eq.s32.totalorder %s16, 1
    %p207 = scmp.ne.s32.totalorder %s202, %s204
    %p208 = scmp.eq.s32.totalorder %s16, 0
    %p209 = por %p207, %p208
    %p210 = scmp.ne.s32.totalorder %s202, %s204
    %p211 = scmp.eq.s32.totalorder %s21, 1
    %p212 = por %p210, %p211
    %p213 = scmp.ne.s32.totalorder %s204, %s205
    %p214 = scmp.eq.s32.totalorder %s21, 0
    %p215 = por %p213, %p214
    %p216 = scmp.ne.s32.totalorder %s204, %s205
    %p217 = scmp.eq.s32.totalorder %s22, 1
    %p218 = por %p216, %p217
    %p220 = scmp.ne.s32.totalorder %s205, %s219
    %p221 = scmp.eq.s32.totalorder %s22, 0
    %p222 = por %p220, %p221
    %s224 = sadd.s32 %s223, 1
    %p227 = scmp.eq.s32.totalorder %s16, 1
    %p228 = scmp.ne.s32.totalorder %s223, %s225
    %p229 = scmp.eq.s32.totalorder %s16, 0
    %p230 = por %p228, %p229
    %p231 = scmp.ne.s32.totalorder %s223, %s225
    %p232 = scmp.eq.s32.totalorder %s21, 1
    %p233 = por %p231, %p232
    %p234 = scmp.ne.s32.totalorder %s225, %s226
    %p235 = scmp.eq.s32.totalorder %s21, 0
    %p236 = por %p234, %p235
    %p237 = scmp.ne.s32.totalorder %s225, %s226
    %p238 = scmp.eq.s32.totalorder %s22, 1
    %p239 = por %p237, %p238
    %p241 = scmp.ne.s32.totalorder %s226, %s240
    %p242 = scmp.eq.s32.totalorder %s22, 0
    %p243 = por %p241, %p242
    %s244 = ssub.s32 %s16, %s23
    %p245 = scmp.eq.s32.totalorder %s244, 0
    %s247 = sadd.s32 %s246, 1
    %s248 = scalar_select %p245, %s246, %s247
    %p251 = pneg %p245
    %p252 = scmp.eq.s32.totalorder %s16, 1
    %p253 = por %p251, %p252
    %p254 = scmp.ne.s32.totalorder %s246, %s249
    %p255 = scmp.eq.s32.totalorder %s16, 0
    %p256 = por %p254, %p255
    %p257 = scmp.ne.s32.totalorder %s246, %s249
    %p258 = scmp.eq.s32.totalorder %s21, 1
    %p259 = por %p257, %p258
    %p260 = scmp.ne.s32.totalorder %s249, %s250
    %p261 = scmp.eq.s32.totalorder %s21, 0
    %p262 = por %p260, %p261
    %p263 = scmp.ne.s32.totalorder %s249, %s250
    %p264 = scmp.eq.s32.totalorder %s22, 1
    %p265 = por %p263, %p264
    %p267 = scmp.ne.s32.totalorder %s250, %s266
    %p268 = scmp.eq.s32.totalorder %s22, 0
    %p269 = por %p267, %p268
    %p270 = scmp.le.s32.totalorder 1, %s16
    %p271 = scmp.lt.s32.totalorder %s16, 3
    %p272 = pnand %p270, %p271
    %p273 = pneg %p272
    // Predicated region
    $region9: #{watermark_extraction_forward.1} parent=5 // pred_check
      _
    $region10: #{watermark_extraction_forward.1} parent=5 // pred_check_branch
      %275 = sbr.rel (%p272) target = $region12
    $region11: #{watermark_extraction_forward.1} parent=5 // pred_region
      %s276 = ssub.s32 %s16, 1
      // Predicated region
      $region13: #{watermark_extraction_forward.1} parent=11 // pred_check
        %p277 = pneg %p37
      $region14: #{watermark_extraction_forward.1} parent=11 // pred_check_branch
        %279 = sbr.rel (%p277) target = $region16
      $region15: #{watermark_extraction_forward.1} parent=11 // pred_region
        _
      $region16: #{watermark_extraction_forward.1} parent=11 // pred_fallthru
        _
      // Predicated region
      $region17: #{watermark_extraction_forward.1} parent=11 // pred_check
        %p280 = pneg %p110
      $region18: #{watermark_extraction_forward.1} parent=11 // pred_check_branch
        %282 = sbr.rel (%p280) target = $region20
      $region19: #{watermark_extraction_forward.1} parent=11 // pred_region
        _
      $region20: #{watermark_extraction_forward.1} parent=11 // pred_fallthru
        _
      // Predicated region
      $region21: #{watermark_extraction_forward.1} parent=11 // pred_check
        %p283 = pneg %p131
      $region22: #{watermark_extraction_forward.1} parent=11 // pred_check_branch
        %285 = sbr.rel (%p283) target = $region24
      $region23: #{watermark_extraction_forward.1} parent=11 // pred_region
        _
      $region24: #{watermark_extraction_forward.1} parent=11 // pred_fallthru
        _
      // Predicated region
      $region25: #{watermark_extraction_forward.1} parent=11 // pred_check
        %p286 = pneg %p152
      $region26: #{watermark_extraction_forward.1} parent=11 // pred_check_branch
        %288 = sbr.rel (%p286) target = $region28
      $region27: #{watermark_extraction_forward.1} parent=11 // pred_region
        _
      $region28: #{watermark_extraction_forward.1} parent=11 // pred_fallthru
        _
      // Predicated region
      $region29: #{watermark_extraction_forward.1} parent=11 // pred_check
        %p289 = pneg %p173
      $region30: #{watermark_extraction_forward.1} parent=11 // pred_check_branch
        %291 = sbr.rel (%p289) target = $region32
      $region31: #{watermark_extraction_forward.1} parent=11 // pred_region
        _
      $region32: #{watermark_extraction_forward.1} parent=11 // pred_fallthru
        _
      // Predicated region
      $region33: #{watermark_extraction_forward.1} parent=11 // pred_check
        %p292 = pneg %p194
      $region34: #{watermark_extraction_forward.1} parent=11 // pred_check_branch
        %294 = sbr.rel (%p292) target = $region36
      $region35: #{watermark_extraction_forward.1} parent=11 // pred_region
        _
      $region36: #{watermark_extraction_forward.1} parent=11 // pred_fallthru
        _
      // Predicated region
      $region37: #{watermark_extraction_forward.1} parent=11 // pred_check
        %p295 = pneg %p215
      $region38: #{watermark_extraction_forward.1} parent=11 // pred_check_branch
        %297 = sbr.rel (%p295) target = $region40
      $region39: #{watermark_extraction_forward.1} parent=11 // pred_region
        _
      $region40: #{watermark_extraction_forward.1} parent=11 // pred_fallthru
        _
      // Predicated region
      $region41: #{watermark_extraction_forward.1} parent=11 // pred_check
        %p298 = pneg %p236
      $region42: #{watermark_extraction_forward.1} parent=11 // pred_check_branch
        %300 = sbr.rel (%p298) target = $region44
      $region43: #{watermark_extraction_forward.1} parent=11 // pred_region
        _
      $region44: #{watermark_extraction_forward.1} parent=11 // pred_fallthru
        _
    $region12: #{watermark_extraction_forward.1} parent=5 // pred_fallthru
      _
    %p301 = scmp.lt.s32.totalorder %s16, 2
    // Predicated region
    $region45: #{watermark_extraction_forward.1} parent=5 // pred_check
      %p302 = pneg %p301
    $region46: #{watermark_extraction_forward.1} parent=5 // pred_check_branch
      %304 = sbr.rel (%p302) target = $region48
    $region47: #{watermark_extraction_forward.1} parent=5 // pred_region
      // Predicated region
      $region49: #{watermark_extraction_forward.1} parent=47 // pred_check
        %p305 = pneg %p57
      $region50: #{watermark_extraction_forward.1} parent=47 // pred_check_branch
        %307 = sbr.rel (%p305) target = $region52
      $region51: #{watermark_extraction_forward.1} parent=47 // pred_region
        %p308 = scmp.lt.s32.totalorder %s16, 1
        %s309 = scalar_select %p308, %s16, 1
        %s310 = smul.addr %s309, 8
        %s311 = smul.addr %s310, 8
        %s312 = scalar_lea.vmem %s1, %s311
      $region52: #{watermark_extraction_forward.1} parent=47 // pred_fallthru
        _
      // Predicated region
      $region53: #{watermark_extraction_forward.1} parent=47 // pred_check
        %p313 = pneg %p83
      $region54: #{watermark_extraction_forward.1} parent=47 // pred_check_branch
        %315 = sbr.rel (%p313) target = $region56
      $region55: #{watermark_extraction_forward.1} parent=47 // pred_region
        %p316 = scmp.lt.s32.totalorder %s16, 1
        %s317 = scalar_select %p316, %s16, 1
        %s318 = smul.addr %s317, 8
        %s319 = smul.addr %s318, 8
        %s320 = scalar_lea.vmem %s2, %s319
      $region56: #{watermark_extraction_forward.1} parent=47 // pred_fallthru
        _
    $region48: #{watermark_extraction_forward.1} parent=5 // pred_fallthru
      _
    %p321 = scmp.le.s32.totalorder 1, %s16
    %p322 = scmp.lt.s32.totalorder %s16, 3
    %p323 = pnand %p321, %p322
    %p324 = pneg %p323
    // Predicated region
    $region57: #{watermark_extraction_forward.1} parent=5 // pred_check
      _
    $region58: #{watermark_extraction_forward.1} parent=5 // pred_check_branch
      %326 = sbr.rel (%p323) target = $region60
    $region59: #{watermark_extraction_forward.1} parent=5 // pred_region
      %s327 = ssub.s32 %s16, 1
      %p328 = pneg %p37
      %p329 = pneg %p34
      %p330 = scmp.lt.s32.totalorder %s21, 1
      %s331 = scalar_select %p330, %s21, 1
      %s332 = smul.addr %s331, 8
      %s333 = smul.addr %s332, 8
      %s334 = scalar_lea.vmem %s1, %s333
      %p335 = pneg %p63
      %p336 = pneg %p60
      %p337 = scmp.lt.s32.totalorder %s21, 1
      %s338 = scalar_select %p337, %s21, 1
      %s339 = smul.addr %s338, 8
      %s340 = smul.addr %s339, 8
      %s341 = scalar_lea.vmem %s2, %s340
      %p342 = pneg %p89
      %p343 = pneg %p86
      %p344 = pneg %p110
      %p345 = pneg %p107
      %p346 = pneg %p131
      %p347 = pneg %p128
      %p348 = pneg %p152
      %p349 = pneg %p149
      %p350 = pneg %p173
      %p351 = pneg %p170
      %p352 = pneg %p194
      %p353 = pneg %p191
      %p354 = pneg %p215
      %p355 = pneg %p212
      %p356 = pneg %p236
      %p357 = pneg %p233
      %p358 = pneg %p262
      %p359 = pneg %p259
      %p360 = scmp.lt.s32.totalorder %s21, 1
      %s361 = scalar_select %p360, %s21, 1
      %s362 = smul.addr %s361, 8
      %s363 = smul.addr %s362, 8
      %s364 = scalar_lea.vmem %s10, %s363
      %p365 = scmp.lt.s32.totalorder %s21, 1
      %s366 = scalar_select %p365, %s21, 1
      %s367 = smul.addr %s366, 8
      %s368 = smul.addr %s367, 8
      %s369 = scalar_lea.vmem %s1, %s368
      %p370 = scmp.lt.s32.totalorder %s21, 1
      %s371 = scalar_select %p370, %s21, 1
      %s372 = smul.addr %s371, 8
      %s373 = smul.addr %s372, 8
      %s374 = scalar_lea.vmem %s2, %s373
      %p375 = scmp.lt.s32.totalorder %s21, 1
      %s376 = scalar_select %p375, %s21, 1
      %s377 = smul.addr %s376, 8
      %s378 = smul.addr %s377, 8
      %s379 = scalar_lea.vmem %s10, %s378
      %vm380 = vcmask 392192
      %381 = vst.msk [vmem:[#allocation2] sm:$0xff] %vm380, 0.0
      %vm382 = vcmask 386048
      %383 = vst.msk [vmem:[#allocation2 + $0x8] sm:$0x3] %vm382, 0.0
      %s384 = scalar_lea.vmem [#allocation2], 144
      %385 = vst.msk [vmem:[%s384] sm:$0xff] %vm380, 0.0
      %386 = vst.msk [vmem:[%s384 + $0x8] sm:$0x3] %vm382, 0.0
      %vm387 = vcmask 385024
      %388 = vst.msk [vmem:[#allocation2] sm:$0x1] %vm387, 0.0
      %389 = vst.msk [vmem:[#allocation2 + $0x10] sm:$0x1] %vm387, 0.0
      %390 = vst.msk [vmem:[#allocation2 + $0x20] sm:$0x1] %vm387, 0.0
      %391 = vst.msk [vmem:[#allocation2 + $0x30] sm:$0x1] %vm387, 0.0
      %392 = vst.msk [vmem:[#allocation2 + $0x40] sm:$0x1] %vm387, 0.0
      %393 = vst.msk [vmem:[#allocation2 + $0x50] sm:$0x1] %vm387, 0.0
      %394 = vst.msk [vmem:[#allocation2 + $0x60] sm:$0x1] %vm387, 0.0
      %395 = vst.msk [vmem:[#allocation2 + $0x70] sm:$0x1] %vm387, 0.0
      %396 = vst.msk [vmem:[#allocation2 + $0x80] sm:$0x1] %vm387, 0.0
      %397 = vst.msk [vmem:[#allocation2 + $0x90] sm:$0x1] %vm387, 0.0
      %398 = vst.msk [vmem:[#allocation2 + $0x9] sm:$0x1] %vm387, 0.0
      %399 = vst.msk [vmem:[#allocation2 + $0x19] sm:$0x1] %vm387, 0.0
      %400 = vst.msk [vmem:[#allocation2 + $0x29] sm:$0x1] %vm387, 0.0
      %401 = vst.msk [vmem:[#allocation2 + $0x39] sm:$0x1] %vm387, 0.0
      %402 = vst.msk [vmem:[#allocation2 + $0x49] sm:$0x1] %vm387, 0.0
      %403 = vst.msk [vmem:[#allocation2 + $0x59] sm:$0x1] %vm387, 0.0
      %404 = vst.msk [vmem:[#allocation2 + $0x69] sm:$0x1] %vm387, 0.0
      %405 = vst.msk [vmem:[#allocation2 + $0x79] sm:$0x1] %vm387, 0.0
      %406 = vst.msk [vmem:[#allocation2 + $0x89] sm:$0x1] %vm387, 0.0
      %407 = vst.msk [vmem:[#allocation2 + $0x99] sm:$0x1] %vm387, 0.0
      %vm408 = vcmask 7168
      %409 = vst.msk [vmem:[#allocation4] sm:$0xff] %vm408, 0.0
      %vm410 = vcmask 1024
      %411 = vst.msk [vmem:[#allocation4 + $0x8] sm:$0x3] %vm410, 0.0
      %s412 = scalar_lea.vmem [#allocation4], 144
      %413 = vst.msk [vmem:[%s412] sm:$0xff] %vm408, 0.0
      %414 = vst.msk [vmem:[%s412 + $0x8] sm:$0x3] %vm410, 0.0
      %vm415 = vcmask 0
      %416 = vst.msk [vmem:[#allocation4] sm:$0x1] %vm415, 0.0
      %417 = vst.msk [vmem:[#allocation4 + $0x10] sm:$0x1] %vm415, 0.0
      %418 = vst.msk [vmem:[#allocation4 + $0x20] sm:$0x1] %vm415, 0.0
      %419 = vst.msk [vmem:[#allocation4 + $0x30] sm:$0x1] %vm415, 0.0
      %420 = vst.msk [vmem:[#allocation4 + $0x40] sm:$0x1] %vm415, 0.0
      %421 = vst.msk [vmem:[#allocation4 + $0x50] sm:$0x1] %vm415, 0.0
      %422 = vst.msk [vmem:[#allocation4 + $0x60] sm:$0x1] %vm415, 0.0
      %423 = vst.msk [vmem:[#allocation4 + $0x70] sm:$0x1] %vm415, 0.0
      %424 = vst.msk [vmem:[#allocation4 + $0x80] sm:$0x1] %vm415, 0.0
      %425 = vst.msk [vmem:[#allocation4 + $0x90] sm:$0x1] %vm415, 0.0
      %426 = vst.msk [vmem:[#allocation4 + $0x9] sm:$0x1] %vm415, 0.0
      %427 = vst.msk [vmem:[#allocation4 + $0x19] sm:$0x1] %vm415, 0.0
      %428 = vst.msk [vmem:[#allocation4 + $0x29] sm:$0x1] %vm415, 0.0
      %429 = vst.msk [vmem:[#allocation4 + $0x39] sm:$0x1] %vm415, 0.0
      %430 = vst.msk [vmem:[#allocation4 + $0x49] sm:$0x1] %vm415, 0.0
      %431 = vst.msk [vmem:[#allocation4 + $0x59] sm:$0x1] %vm415, 0.0
      %432 = vst.msk [vmem:[#allocation4 + $0x69] sm:$0x1] %vm415, 0.0
      %433 = vst.msk [vmem:[#allocation4 + $0x79] sm:$0x1] %vm415, 0.0
      %434 = vst.msk [vmem:[#allocation4 + $0x89] sm:$0x1] %vm415, 0.0
      %435 = vst.msk [vmem:[#allocation4 + $0x99] sm:$0x1] %vm415, 0.0
      %436 = vst.msk [vmem:[#allocation6] sm:$0xff] %vm380, 0.0
      %437 = vst.msk [vmem:[#allocation6 + $0x8] sm:$0x3] %vm382, 0.0
      %s438 = scalar_lea.vmem [#allocation6], 144
      %439 = vst.msk [vmem:[%s438] sm:$0xff] %vm380, 0.0
      %440 = vst.msk [vmem:[%s438 + $0x8] sm:$0x3] %vm382, 0.0
      %441 = vst.msk [vmem:[#allocation6] sm:$0x1] %vm387, 0.0
      %442 = vst.msk [vmem:[#allocation6 + $0x10] sm:$0x1] %vm387, 0.0
      %443 = vst.msk [vmem:[#allocation6 + $0x20] sm:$0x1] %vm387, 0.0
      %444 = vst.msk [vmem:[#allocation6 + $0x30] sm:$0x1] %vm387, 0.0
      %445 = vst.msk [vmem:[#allocation6 + $0x40] sm:$0x1] %vm387, 0.0
      %446 = vst.msk [vmem:[#allocation6 + $0x50] sm:$0x1] %vm387, 0.0
      %447 = vst.msk [vmem:[#allocation6 + $0x60] sm:$0x1] %vm387, 0.0
      %448 = vst.msk [vmem:[#allocation6 + $0x70] sm:$0x1] %vm387, 0.0
      %449 = vst.msk [vmem:[#allocation6 + $0x80] sm:$0x1] %vm387, 0.0
      %450 = vst.msk [vmem:[#allocation6 + $0x90] sm:$0x1] %vm387, 0.0
      %451 = vst.msk [vmem:[#allocation6 + $0x9] sm:$0x1] %vm387, 0.0
      %452 = vst.msk [vmem:[#allocation6 + $0x19] sm:$0x1] %vm387, 0.0
      %453 = vst.msk [vmem:[#allocation6 + $0x29] sm:$0x1] %vm387, 0.0
      %454 = vst.msk [vmem:[#allocation6 + $0x39] sm:$0x1] %vm387, 0.0
      %455 = vst.msk [vmem:[#allocation6 + $0x49] sm:$0x1] %vm387, 0.0
      %456 = vst.msk [vmem:[#allocation6 + $0x59] sm:$0x1] %vm387, 0.0
      %457 = vst.msk [vmem:[#allocation6 + $0x69] sm:$0x1] %vm387, 0.0
      %458 = vst.msk [vmem:[#allocation6 + $0x79] sm:$0x1] %vm387, 0.0
      %459 = vst.msk [vmem:[#allocation6 + $0x89] sm:$0x1] %vm387, 0.0
      %460 = vst.msk [vmem:[#allocation6 + $0x99] sm:$0x1] %vm387, 0.0
      %v461 = vld [vmem:[%s369] sm:$0xff]
      %v462 = vld [vmem:[%s369 + $0x8] sm:$0xff]
      %v463 = vld [vmem:[%s369 + $0x10] sm:$0xff]
      %v464 = vld [vmem:[%s369 + $0x18] sm:$0xff]
      %v465 = vld [vmem:[%s369 + $0x20] sm:$0xff]
      %v466 = vld [vmem:[%s369 + $0x28] sm:$0xff]
      %v467 = vld [vmem:[%s369 + $0x30] sm:$0xff]
      %v468 = vld [vmem:[%s369 + $0x38] sm:$0xff]
      %s469 = scalar_lea.vmem [#allocation2], 16
      %470 = vst.msk [vmem:[%s469 + $0x1] sm:$0xff] %vm380, %v461
      %471 = vst.msk [vmem:[%s469 + $0x11] sm:$0xff] %vm380, %v462
      %472 = vst.msk [vmem:[%s469 + $0x21] sm:$0xff] %vm380, %v463
      %473 = vst.msk [vmem:[%s469 + $0x31] sm:$0xff] %vm380, %v464
      %474 = vst.msk [vmem:[%s469 + $0x41] sm:$0xff] %vm380, %v465
      %475 = vst.msk [vmem:[%s469 + $0x51] sm:$0xff] %vm380, %v466
      %476 = vst.msk [vmem:[%s469 + $0x61] sm:$0xff] %vm380, %v467
      %477 = vst.msk [vmem:[%s469 + $0x71] sm:$0xff] %vm380, %v468
      %v478 = vld [vmem:[#allocation2] sm:$0xff]
      %v479 = vld [vmem:[#allocation2 + $0x10] sm:$0xff]
      %v480 = vld [vmem:[#allocation2 + $0x20] sm:$0xff]
      %v481 = vld [vmem:[#allocation2 + $0x30] sm:$0xff]
      %v482 = vld [vmem:[#allocation2 + $0x40] sm:$0xff]
      %v483 = vld [vmem:[#allocation2 + $0x50] sm:$0xff]
      %v484 = vld [vmem:[#allocation2 + $0x60] sm:$0xff]
      %v485 = vld [vmem:[#allocation2 + $0x70] sm:$0xff]
      %486 = vst.msk [vmem:[#allocation3] sm:$0xff] %vm380, %v478
      %487 = vst.msk [vmem:[#allocation3 + $0x20] sm:$0xff] %vm380, %v479
      %488 = vst.msk [vmem:[#allocation3 + $0x40] sm:$0xff] %vm380, %v480
      %489 = vst.msk [vmem:[#allocation3 + $0x60] sm:$0xff] %vm380, %v481
      %490 = vst.msk [vmem:[#allocation3 + $0x80] sm:$0xff] %vm380, %v482
      %491 = vst.msk [vmem:[#allocation3 + $0xa0] sm:$0xff] %vm380, %v483
      %492 = vst.msk [vmem:[#allocation3 + $0xc0] sm:$0xff] %vm380, %v484
      %493 = vst.msk [vmem:[#allocation3 + $0xe0] sm:$0xff] %vm380, %v485
      %v494 = vld [vmem:[#allocation2 + $0x1] sm:$0xff]
      %v495 = vld [vmem:[#allocation2 + $0x11] sm:$0xff]
      %v496 = vld [vmem:[#allocation2 + $0x21] sm:$0xff]
      %v497 = vld [vmem:[#allocation2 + $0x31] sm:$0xff]
      %v498 = vld [vmem:[#allocation2 + $0x41] sm:$0xff]
      %v499 = vld [vmem:[#allocation2 + $0x51] sm:$0xff]
      %v500 = vld [vmem:[#allocation2 + $0x61] sm:$0xff]
      %v501 = vld [vmem:[#allocation2 + $0x71] sm:$0xff]
      %510 = vrot.lane.b32.xlu0 %v494, 48
      %v511 = vpop.permute.xlu0 %510
      %512 = vrot.lane.b32.xlu0 %v495, 48
      %v513 = vpop.permute.xlu0 %512
      %514 = vrot.lane.b32.xlu0 %v496, 48
      %v515 = vpop.permute.xlu0 %514
      %516 = vrot.lane.b32.xlu0 %v497, 48
      %v517 = vpop.permute.xlu0 %516
      %518 = vrot.lane.b32.xlu0 %v498, 48
      %v519 = vpop.permute.xlu0 %518
      %520 = vrot.lane.b32.xlu0 %v499, 48
      %v521 = vpop.permute.xlu0 %520
      %522 = vrot.lane.b32.xlu0 %v500, 48
      %v523 = vpop.permute.xlu0 %522
      %524 = vrot.lane.b32.xlu0 %v501, 48
      %v525 = vpop.permute.xlu0 %524
      %vm534 = vcmask 785792
      %535 = vst.msk [vmem:[#allocation3] sm:$0xff] %vm534, %v511
      %536 = vst.msk [vmem:[#allocation3 + $0x20] sm:$0xff] %vm534, %v513
      %537 = vst.msk [vmem:[#allocation3 + $0x40] sm:$0xff] %vm534, %v515
      %538 = vst.msk [vmem:[#allocation3 + $0x60] sm:$0xff] %vm534, %v517
      %539 = vst.msk [vmem:[#allocation3 + $0x80] sm:$0xff] %vm534, %v519
      %540 = vst.msk [vmem:[#allocation3 + $0xa0] sm:$0xff] %vm534, %v521
      %541 = vst.msk [vmem:[#allocation3 + $0xc0] sm:$0xff] %vm534, %v523
      %542 = vst.msk [vmem:[#allocation3 + $0xe0] sm:$0xff] %vm534, %v525
      %v543 = vld [vmem:[#allocation2 + $0x2] sm:$0xff]
      %v544 = vld [vmem:[#allocation2 + $0x12] sm:$0xff]
      %v545 = vld [vmem:[#allocation2 + $0x22] sm:$0xff]
      %v546 = vld [vmem:[#allocation2 + $0x32] sm:$0xff]
      %v547 = vld [vmem:[#allocation2 + $0x42] sm:$0xff]
      %v548 = vld [vmem:[#allocation2 + $0x52] sm:$0xff]
      %v549 = vld [vmem:[#allocation2 + $0x62] sm:$0xff]
      %v550 = vld [vmem:[#allocation2 + $0x72] sm:$0xff]
      %559 = vrot.lane.b32.xlu0 %v543, 96
      %v560 = vpop.permute.xlu0 %559
      %561 = vrot.lane.b32.xlu0 %v544, 96
      %v562 = vpop.permute.xlu0 %561
      %563 = vrot.lane.b32.xlu0 %v545, 96
      %v564 = vpop.permute.xlu0 %563
      %565 = vrot.lane.b32.xlu0 %v546, 96
      %v566 = vpop.permute.xlu0 %565
      %567 = vrot.lane.b32.xlu0 %v547, 96
      %v568 = vpop.permute.xlu0 %567
      %569 = vrot.lane.b32.xlu0 %v548, 96
      %v570 = vpop.permute.xlu0 %569
      %571 = vrot.lane.b32.xlu0 %v549, 96
      %v572 = vpop.permute.xlu0 %571
      %573 = vrot.lane.b32.xlu0 %v550, 96
      %v574 = vpop.permute.xlu0 %573
      %vm583 = vcmask 1048320
      %584 = vst.msk [vmem:[#allocation3] sm:$0xff] %vm583, %v560
      %vm585 = vcmask 130048
      %586 = vst.msk [vmem:[#allocation3 + $0x8] sm:$0xff] %vm585, %v560
      %587 = vst.msk [vmem:[#allocation3 + $0x20] sm:$0xff] %vm583, %v562
      %588 = vst.msk [vmem:[#allocation3 + $0x28] sm:$0xff] %vm585, %v562
      %589 = vst.msk [vmem:[#allocation3 + $0x40] sm:$0xff] %vm583, %v564
      %590 = vst.msk [vmem:[#allocation3 + $0x48] sm:$0xff] %vm585, %v564
      %591 = vst.msk [vmem:[#allocation3 + $0x60] sm:$0xff] %vm583, %v566
      %592 = vst.msk [vmem:[#allocation3 + $0x68] sm:$0xff] %vm585, %v566
      %593 = vst.msk [vmem:[#allocation3 + $0x80] sm:$0xff] %vm583, %v568
      %594 = vst.msk [vmem:[#allocation3 + $0x88] sm:$0xff] %vm585, %v568
      %595 = vst.msk [vmem:[#allocation3 + $0xa0] sm:$0xff] %vm583, %v570
      %596 = vst.msk [vmem:[#allocation3 + $0xa8] sm:$0xff] %vm585, %v570
      %597 = vst.msk [vmem:[#allocation3 + $0xc0] sm:$0xff] %vm583, %v572
      %598 = vst.msk [vmem:[#allocation3 + $0xc8] sm:$0xff] %vm585, %v572
      %599 = vst.msk [vmem:[#allocation3 + $0xe0] sm:$0xff] %vm583, %v574
      %600 = vst.msk [vmem:[#allocation3 + $0xe8] sm:$0xff] %vm585, %v574
      %v601 = vld [vmem:[%s469] sm:$0xff]
      %v602 = vld [vmem:[%s469 + $0x10] sm:$0xff]
      %v603 = vld [vmem:[%s469 + $0x20] sm:$0xff]
      %v604 = vld [vmem:[%s469 + $0x30] sm:$0xff]
      %v605 = vld [vmem:[%s469 + $0x40] sm:$0xff]
      %v606 = vld [vmem:[%s469 + $0x50] sm:$0xff]
      %v607 = vld [vmem:[%s469 + $0x60] sm:$0xff]
      %v608 = vld [vmem:[%s469 + $0x70] sm:$0xff]
      %617 = vrot.lane.b32.xlu0 %v601, 16
      %v618 = vpop.permute.xlu0 %617
      %619 = vrot.lane.b32.xlu0 %v602, 16
      %v620 = vpop.permute.xlu0 %619
      %621 = vrot.lane.b32.xlu0 %v603, 16
      %v622 = vpop.permute.xlu0 %621
      %623 = vrot.lane.b32.xlu0 %v604, 16
      %v624 = vpop.permute.xlu0 %623
      %625 = vrot.lane.b32.xlu0 %v605, 16
      %v626 = vpop.permute.xlu0 %625
      %627 = vrot.lane.b32.xlu0 %v606, 16
      %v628 = vpop.permute.xlu0 %627
      %629 = vrot.lane.b32.xlu0 %v607, 16
      %v630 = vpop.permute.xlu0 %629
      %631 = vrot.lane.b32.xlu0 %v608, 16
      %v632 = vpop.permute.xlu0 %631
      %vm641 = vcmask 523392
      %642 = vst.msk [vmem:[#allocation3 + $0x8] sm:$0xff] %vm641, %v618
      %643 = vst.msk [vmem:[#allocation3 + $0x28] sm:$0xff] %vm641, %v620
      %644 = vst.msk [vmem:[#allocation3 + $0x48] sm:$0xff] %vm641, %v622
      %645 = vst.msk [vmem:[#allocation3 + $0x68] sm:$0xff] %vm641, %v624
      %646 = vst.msk [vmem:[#allocation3 + $0x88] sm:$0xff] %vm641, %v626
      %647 = vst.msk [vmem:[#allocation3 + $0xa8] sm:$0xff] %vm641, %v628
      %648 = vst.msk [vmem:[#allocation3 + $0xc8] sm:$0xff] %vm641, %v630
      %649 = vst.msk [vmem:[#allocation3 + $0xe8] sm:$0xff] %vm641, %v632
      %v650 = vld [vmem:[%s469 + $0x1] sm:$0xff]
      %v651 = vld [vmem:[%s469 + $0x11] sm:$0xff]
      %v652 = vld [vmem:[%s469 + $0x21] sm:$0xff]
      %v653 = vld [vmem:[%s469 + $0x31] sm:$0xff]
      %v654 = vld [vmem:[%s469 + $0x41] sm:$0xff]
      %v655 = vld [vmem:[%s469 + $0x51] sm:$0xff]
      %v656 = vld [vmem:[%s469 + $0x61] sm:$0xff]
      %v657 = vld [vmem:[%s469 + $0x71] sm:$0xff]
      %666 = vrot.lane.b32.xlu0 %v650, 64
      %v667 = vpop.permute.xlu0 %666
      %668 = vrot.lane.b32.xlu0 %v651, 64
      %v669 = vpop.permute.xlu0 %668
      %670 = vrot.lane.b32.xlu0 %v652, 64
      %v671 = vpop.permute.xlu0 %670
      %672 = vrot.lane.b32.xlu0 %v653, 64
      %v673 = vpop.permute.xlu0 %672
      %674 = vrot.lane.b32.xlu0 %v654, 64
      %v675 = vpop.permute.xlu0 %674
      %676 = vrot.lane.b32.xlu0 %v655, 64
      %v677 = vpop.permute.xlu0 %676
      %678 = vrot.lane.b32.xlu0 %v656, 64
      %v679 = vpop.permute.xlu0 %678
      %680 = vrot.lane.b32.xlu0 %v657, 64
      %v681 = vpop.permute.xlu0 %680
      %vm690 = vcmask 916992
      %691 = vst.msk [vmem:[#allocation3 + $0x8] sm:$0xff] %vm690, %v667
      %692 = vst.msk [vmem:[#allocation3 + $0x28] sm:$0xff] %vm690, %v669
      %693 = vst.msk [vmem:[#allocation3 + $0x48] sm:$0xff] %vm690, %v671
      %694 = vst.msk [vmem:[#allocation3 + $0x68] sm:$0xff] %vm690, %v673
      %695 = vst.msk [vmem:[#allocation3 + $0x88] sm:$0xff] %vm690, %v675
      %696 = vst.msk [vmem:[#allocation3 + $0xa8] sm:$0xff] %vm690, %v677
      %697 = vst.msk [vmem:[#allocation3 + $0xc8] sm:$0xff] %vm690, %v679
      %698 = vst.msk [vmem:[#allocation3 + $0xe8] sm:$0xff] %vm690, %v681
      %v699 = vld [vmem:[%s469 + $0x2] sm:$0xff]
      %v700 = vld [vmem:[%s469 + $0x12] sm:$0xff]
      %v701 = vld [vmem:[%s469 + $0x22] sm:$0xff]
      %v702 = vld [vmem:[%s469 + $0x32] sm:$0xff]
      %v703 = vld [vmem:[%s469 + $0x42] sm:$0xff]
      %v704 = vld [vmem:[%s469 + $0x52] sm:$0xff]
      %v705 = vld [vmem:[%s469 + $0x62] sm:$0xff]
      %v706 = vld [vmem:[%s469 + $0x72] sm:$0xff]
      %715 = vrot.lane.b32.xlu0 %v699, 112
      %v716 = vpop.permute.xlu0 %715
      %717 = vrot.lane.b32.xlu0 %v700, 112
      %v718 = vpop.permute.xlu0 %717
      %719 = vrot.lane.b32.xlu0 %v701, 112
      %v720 = vpop.permute.xlu0 %719
      %721 = vrot.lane.b32.xlu0 %v702, 112
      %v722 = vpop.permute.xlu0 %721
      %723 = vrot.lane.b32.xlu0 %v703, 112
      %v724 = vpop.permute.xlu0 %723
      %725 = vrot.lane.b32.xlu0 %v704, 112
      %v726 = vpop.permute.xlu0 %725
      %727 = vrot.lane.b32.xlu0 %v705, 112
      %v728 = vpop.permute.xlu0 %727
      %729 = vrot.lane.b32.xlu0 %v706, 112
      %v730 = vpop.permute.xlu0 %729
      %vm739 = vcmask 1048448
      %740 = vst.msk [vmem:[#allocation3 + $0x8] sm:$0xff] %vm739, %v716
      %vm741 = vcmask 261120
      %742 = vst.msk [vmem:[#allocation3 + $0x10] sm:$0xff] %vm741, %v716
      %743 = vst.msk [vmem:[#allocation3 + $0x28] sm:$0xff] %vm739, %v718
      %744 = vst.msk [vmem:[#allocation3 + $0x30] sm:$0xff] %vm741, %v718
      %745 = vst.msk [vmem:[#allocation3 + $0x48] sm:$0xff] %vm739, %v720
      %746 = vst.msk [vmem:[#allocation3 + $0x50] sm:$0xff] %vm741, %v720
      %747 = vst.msk [vmem:[#allocation3 + $0x68] sm:$0xff] %vm739, %v722
      %748 = vst.msk [vmem:[#allocation3 + $0x70] sm:$0xff] %vm741, %v722
      %749 = vst.msk [vmem:[#allocation3 + $0x88] sm:$0xff] %vm739, %v724
      %750 = vst.msk [vmem:[#allocation3 + $0x90] sm:$0xff] %vm741, %v724
      %751 = vst.msk [vmem:[#allocation3 + $0xa8] sm:$0xff] %vm739, %v726
      %752 = vst.msk [vmem:[#allocation3 + $0xb0] sm:$0xff] %vm741, %v726
      %753 = vst.msk [vmem:[#allocation3 + $0xc8] sm:$0xff] %vm739, %v728
      %754 = vst.msk [vmem:[#allocation3 + $0xd0] sm:$0xff] %vm741, %v728
      %755 = vst.msk [vmem:[#allocation3 + $0xe8] sm:$0xff] %vm739, %v730
      %756 = vst.msk [vmem:[#allocation3 + $0xf0] sm:$0xff] %vm741, %v730
      %s757 = scalar_lea.vmem [#allocation2], 32
      %v758 = vld [vmem:[%s757] sm:$0xff]
      %v759 = vld [vmem:[%s757 + $0x10] sm:$0xff]
      %v760 = vld [vmem:[%s757 + $0x20] sm:$0xff]
      %v761 = vld [vmem:[%s757 + $0x30] sm:$0xff]
      %v762 = vld [vmem:[%s757 + $0x40] sm:$0xff]
      %v763 = vld [vmem:[%s757 + $0x50] sm:$0xff]
      %v764 = vld [vmem:[%s757 + $0x60] sm:$0xff]
      %v765 = vld [vmem:[%s757 + $0x70] sm:$0xff]
      %774 = vrot.lane.b32.xlu0 %v758, 32
      %v775 = vpop.permute.xlu0 %774
      %776 = vrot.lane.b32.xlu0 %v759, 32
      %v777 = vpop.permute.xlu0 %776
      %778 = vrot.lane.b32.xlu0 %v760, 32
      %v779 = vpop.permute.xlu0 %778
      %780 = vrot.lane.b32.xlu0 %v761, 32
      %v781 = vpop.permute.xlu0 %780
      %782 = vrot.lane.b32.xlu0 %v762, 32
      %v783 = vpop.permute.xlu0 %782
      %784 = vrot.lane.b32.xlu0 %v763, 32
      %v785 = vpop.permute.xlu0 %784
      %786 = vrot.lane.b32.xlu0 %v764, 32
      %v787 = vpop.permute.xlu0 %786
      %788 = vrot.lane.b32.xlu0 %v765, 32
      %v789 = vpop.permute.xlu0 %788
      %vm798 = vcmask 654592
      %799 = vst.msk [vmem:[#allocation3 + $0x10] sm:$0xff] %vm798, %v775
      %800 = vst.msk [vmem:[#allocation3 + $0x30] sm:$0xff] %vm798, %v777
      %801 = vst.msk [vmem:[#allocation3 + $0x50] sm:$0xff] %vm798, %v779
      %802 = vst.msk [vmem:[#allocation3 + $0x70] sm:$0xff] %vm798, %v781
      %803 = vst.msk [vmem:[#allocation3 + $0x90] sm:$0xff] %vm798, %v783
      %804 = vst.msk [vmem:[#allocation3 + $0xb0] sm:$0xff] %vm798, %v785
      %805 = vst.msk [vmem:[#allocation3 + $0xd0] sm:$0xff] %vm798, %v787
      %806 = vst.msk [vmem:[#allocation3 + $0xf0] sm:$0xff] %vm798, %v789
      %v807 = vld [vmem:[%s757 + $0x1] sm:$0xff]
      %v808 = vld [vmem:[%s757 + $0x11] sm:$0xff]
      %v809 = vld [vmem:[%s757 + $0x21] sm:$0xff]
      %v810 = vld [vmem:[%s757 + $0x31] sm:$0xff]
      %v811 = vld [vmem:[%s757 + $0x41] sm:$0xff]
      %v812 = vld [vmem:[%s757 + $0x51] sm:$0xff]
      %v813 = vld [vmem:[%s757 + $0x61] sm:$0xff]
      %v814 = vld [vmem:[%s757 + $0x71] sm:$0xff]
      %823 = vrot.lane.b32.xlu0 %v807, 80
      %v824 = vpop.permute.xlu0 %823
      %825 = vrot.lane.b32.xlu0 %v808, 80
      %v826 = vpop.permute.xlu0 %825
      %827 = vrot.lane.b32.xlu0 %v809, 80
      %v828 = vpop.permute.xlu0 %827
      %829 = vrot.lane.b32.xlu0 %v810, 80
      %v830 = vpop.permute.xlu0 %829
      %831 = vrot.lane.b32.xlu0 %v811, 80
      %v832 = vpop.permute.xlu0 %831
      %833 = vrot.lane.b32.xlu0 %v812, 80
      %v834 = vpop.permute.xlu0 %833
      %835 = vrot.lane.b32.xlu0 %v813, 80
      %v836 = vpop.permute.xlu0 %835
      %837 = vrot.lane.b32.xlu0 %v814, 80
      %v838 = vpop.permute.xlu0 %837
      %vm847 = vcmask 1048192
      %848 = vst.msk [vmem:[#allocation3 + $0x10] sm:$0xff] %vm847, %v824
      %849 = vst.msk [vmem:[#allocation3 + $0x30] sm:$0xff] %vm847, %v826
      %850 = vst.msk [vmem:[#allocation3 + $0x50] sm:$0xff] %vm847, %v828
      %851 = vst.msk [vmem:[#allocation3 + $0x70] sm:$0xff] %vm847, %v830
      %852 = vst.msk [vmem:[#allocation3 + $0x90] sm:$0xff] %vm847, %v832
      %853 = vst.msk [vmem:[#allocation3 + $0xb0] sm:$0xff] %vm847, %v834
      %854 = vst.msk [vmem:[#allocation3 + $0xd0] sm:$0xff] %vm847, %v836
      %855 = vst.msk [vmem:[#allocation3 + $0xf0] sm:$0xff] %vm847, %v838
      %v856 = vld [vmem:[%s757 + $0x2] sm:$0xff]
      %v857 = vld [vmem:[%s757 + $0x12] sm:$0xff]
      %v858 = vld [vmem:[%s757 + $0x22] sm:$0xff]
      %v859 = vld [vmem:[%s757 + $0x32] sm:$0xff]
      %v860 = vld [vmem:[%s757 + $0x42] sm:$0xff]
      %v861 = vld [vmem:[%s757 + $0x52] sm:$0xff]
      %v862 = vld [vmem:[%s757 + $0x62] sm:$0xff]
      %v863 = vld [vmem:[%s757 + $0x72] sm:$0xff]
      %864 = vst.msk [vmem:[#allocation3 + $0x18] sm:$0xff] %vm380, %v856
      %865 = vst.msk [vmem:[#allocation3 + $0x38] sm:$0xff] %vm380, %v857
      %866 = vst.msk [vmem:[#allocation3 + $0x58] sm:$0xff] %vm380, %v858
      %867 = vst.msk [vmem:[#allocation3 + $0x78] sm:$0xff] %vm380, %v859
      %868 = vst.msk [vmem:[#allocation3 + $0x98] sm:$0xff] %vm380, %v860
      %869 = vst.msk [vmem:[#allocation3 + $0xb8] sm:$0xff] %vm380, %v861
      %870 = vst.msk [vmem:[#allocation3 + $0xd8] sm:$0xff] %vm380, %v862
      %871 = vst.msk [vmem:[#allocation3 + $0xf8] sm:$0xff] %vm380, %v863
      %v872 = vld [vmem:[#allocation3] sm:$0xff]
      %v873 = vld [vmem:[#allocation3 + $0x8] sm:$0xff]
      %v874 = vld [vmem:[#allocation3 + $0x10] sm:$0xff]
      %v875 = vld [vmem:[#allocation3 + $0x18] sm:$0xff]
      %v876 = vld [vmem:[#allocation3 + $0x20] sm:$0xff]
      %v877 = vld [vmem:[#allocation3 + $0x28] sm:$0xff]
      %v878 = vld [vmem:[#allocation3 + $0x30] sm:$0xff]
      %v879 = vld [vmem:[#allocation3 + $0x38] sm:$0xff]
      %v880 = vld [vmem:[#allocation3 + $0x40] sm:$0xff]
      %v881 = vld [vmem:[#allocation3 + $0x48] sm:$0xff]
      %v882 = vld [vmem:[#allocation3 + $0x50] sm:$0xff]
      %v883 = vld [vmem:[#allocation3 + $0x58] sm:$0xff]
      %v884 = vld [vmem:[#allocation3 + $0x60] sm:$0xff]
      %v885 = vld [vmem:[#allocation3 + $0x68] sm:$0xff]
      %v886 = vld [vmem:[#allocation3 + $0x70] sm:$0xff]
      %v887 = vld [vmem:[#allocation3 + $0x78] sm:$0xff]
      %v888 = vld [vmem:[#allocation3 + $0x80] sm:$0xff]
      %v889 = vld [vmem:[#allocation3 + $0x88] sm:$0xff]
      %v890 = vld [vmem:[#allocation3 + $0x90] sm:$0xff]
      %v891 = vld [vmem:[#allocation3 + $0x98] sm:$0xff]
      %v892 = vld [vmem:[#allocation3 + $0xa0] sm:$0xff]
      %v893 = vld [vmem:[#allocation3 + $0xa8] sm:$0xff]
      %v894 = vld [vmem:[#allocation3 + $0xb0] sm:$0xff]
      %v895 = vld [vmem:[#allocation3 + $0xb8] sm:$0xff]
      %v896 = vld [vmem:[#allocation3 + $0xc0] sm:$0xff]
      %v897 = vld [vmem:[#allocation3 + $0xc8] sm:$0xff]
      %v898 = vld [vmem:[#allocation3 + $0xd0] sm:$0xff]
      %v899 = vld [vmem:[#allocation3 + $0xd8] sm:$0xff]
      %v900 = vld [vmem:[#allocation3 + $0xe0] sm:$0xff]
      %v901 = vld [vmem:[#allocation3 + $0xe8] sm:$0xff]
      %v902 = vld [vmem:[#allocation3 + $0xf0] sm:$0xff]
      %v903 = vld [vmem:[#allocation3 + $0xf8] sm:$0xff]
      %v904 = vld [vmem:[%s3] sm:$0xff]
      %v905 = vld [vmem:[%s3 + $0x8] sm:$0xff]
      %v906 = vld [vmem:[%s3 + $0x10] sm:$0xff]
      %v907 = vld [vmem:[%s3 + $0x18] sm:$0xff]
      %v908 = vld [vmem:[%s3 + $0x20] sm:$0xff]
      %v909 = vld [vmem:[%s3 + $0x28] sm:$0xff]
      %v910 = vld [vmem:[%s3 + $0x30] sm:$0xff]
      %v911 = vld [vmem:[%s3 + $0x38] sm:$0xff]
      %v912 = vld [vmem:[%s3 + $0x40] sm:$0xff]
      %v913 = vld [vmem:[%s3 + $0x48] sm:$0xff]
      %v914 = vld [vmem:[%s3 + $0x50] sm:$0xff]
      %v915 = vld [vmem:[%s3 + $0x58] sm:$0xff]
      %v916 = vld [vmem:[%s3 + $0x60] sm:$0xff]
      %v917 = vld [vmem:[%s3 + $0x68] sm:$0xff]
      %v918 = vld [vmem:[%s3 + $0x70] sm:$0xff]
      %v919 = vld [vmem:[%s3 + $0x78] sm:$0xff]
      %v920 = vld [vmem:[%s3 + $0x80] sm:$0xff]
      %v921 = vld [vmem:[%s3 + $0x88] sm:$0xff]
      %v922 = vld [vmem:[%s3 + $0x90] sm:$0xff]
      %v923 = vld [vmem:[%s3 + $0x98] sm:$0xff]
      %v924 = vld [vmem:[%s3 + $0xa0] sm:$0xff]
      %v925 = vld [vmem:[%s3 + $0xa8] sm:$0xff]
      %v926 = vld [vmem:[%s3 + $0xb0] sm:$0xff]
      %v927 = vld [vmem:[%s3 + $0xb8] sm:$0xff]
      %v928 = vld [vmem:[%s3 + $0xc0] sm:$0xff]
      %v929 = vld [vmem:[%s3 + $0xc8] sm:$0xff]
      %v930 = vld [vmem:[%s3 + $0xd0] sm:$0xff]
      %v931 = vld [vmem:[%s3 + $0xd8] sm:$0xff]
      %v932 = vld [vmem:[%s3 + $0xe0] sm:$0xff]
      %v933 = vld [vmem:[%s3 + $0xe8] sm:$0xff]
      %v934 = vld [vmem:[%s3 + $0xf0] sm:$0xff]
      %v935 = vld [vmem:[%s3 + $0xf8] sm:$0xff]
      %v936 = vld [vmem:[%s3 + $0x100] sm:$0xff]
      %v937 = vld [vmem:[%s3 + $0x108] sm:$0xff]
      %v938 = vld [vmem:[%s3 + $0x110] sm:$0xff]
      %v939 = vld [vmem:[%s3 + $0x118] sm:$0xff]
      %v940 = vld [vmem:[%s3 + $0x120] sm:$0xff]
      %v941 = vld [vmem:[%s3 + $0x128] sm:$0xff]
      %v942 = vld [vmem:[%s3 + $0x130] sm:$0xff]
      %v943 = vld [vmem:[%s3 + $0x138] sm:$0xff]
      %v944 = vld [vmem:[%s3 + $0x140] sm:$0xff]
      %v945 = vld [vmem:[%s3 + $0x148] sm:$0xff]
      %v946 = vld [vmem:[%s3 + $0x150] sm:$0xff]
      %v947 = vld [vmem:[%s3 + $0x158] sm:$0xff]
      %v948 = vld [vmem:[%s3 + $0x160] sm:$0xff]
      %v949 = vld [vmem:[%s3 + $0x168] sm:$0xff]
      %v950 = vld [vmem:[%s3 + $0x170] sm:$0xff]
      %v951 = vld [vmem:[%s3 + $0x178] sm:$0xff]
      %v952 = vld [vmem:[%s3 + $0x180] sm:$0xff]
      %v953 = vld [vmem:[%s3 + $0x188] sm:$0xff]
      %v954 = vld [vmem:[%s3 + $0x190] sm:$0xff]
      %v955 = vld [vmem:[%s3 + $0x198] sm:$0xff]
      %v956 = vld [vmem:[%s3 + $0x1a0] sm:$0xff]
      %v957 = vld [vmem:[%s3 + $0x1a8] sm:$0xff]
      %v958 = vld [vmem:[%s4] sm:$0x1]
      %v960 = vperm.slane %v958, 0
      %v963 = vsel %vm380, %v875, 0
      %v966 = vsel %vm380, %v879, 0
      %v969 = vsel %vm380, %v883, 0
      %v972 = vsel %vm380, %v887, 0
      %v975 = vsel %vm380, %v891, 0
      %v978 = vsel %vm380, %v895, 0
      %v981 = vsel %vm380, %v899, 0
      %v984 = vsel %vm380, %v903, 0
      %986 = vmatpush.msra.mxu0 %v919
      %987 = vmatpush.msra.mxu0 %v918
      %988 = vmatpush.msra.mxu0 %v917
      %989 = vmatpush.msra.mxu0 %v916
      %990 = vmatpush.msra.mxu0 %v915
      %991 = vmatpush.msra.mxu0 %v914
      %992 = vmatpush.msra.mxu0 %v913
      %993 = vmatpush.msra.mxu0 %v912
      %994 = vmatpush.msra.mxu0 %v911
      %995 = vmatpush.msra.mxu0 %v910
      %996 = vmatpush.msra.mxu0 %v909
      %997 = vmatpush.msra.mxu0 %v908
      %998 = vmatpush.msra.mxu0 %v907
      %999 = vmatpush.msra.mxu0 %v906
      %1000 = vmatpush.msra.mxu0 %v905
      %1001 = vmatpush.msra.mxu0 %v904
      %1002 = vmatmul.f32.gmra.mxu0 %v872
      %v1003 = vpop.f32.mrf.mxu0
      %v1004 = vadd.f32 %v960, %v1003
      %1005 = vmatmul.f32.gmra.mxu0 %v876
      %v1006 = vpop.f32.mrf.mxu0
      %v1007 = vadd.f32 %v960, %v1006
      %1008 = vmatmul.f32.gmra.mxu0 %v880
      %v1009 = vpop.f32.mrf.mxu0
      %v1010 = vadd.f32 %v960, %v1009
      %1011 = vmatmul.f32.gmra.mxu0 %v884
      %v1012 = vpop.f32.mrf.mxu0
      %v1013 = vadd.f32 %v960, %v1012
      %1014 = vmatmul.f32.gmra.mxu0 %v888
      %v1015 = vpop.f32.mrf.mxu0
      %v1016 = vadd.f32 %v960, %v1015
      %1017 = vmatmul.f32.gmra.mxu0 %v892
      %v1018 = vpop.f32.mrf.mxu0
      %v1019 = vadd.f32 %v960, %v1018
      %1020 = vmatmul.f32.gmra.mxu0 %v896
      %v1021 = vpop.f32.mrf.mxu0
      %v1022 = vadd.f32 %v960, %v1021
      %1023 = vmatmul.f32.gmra.mxu0 %v900
      %v1024 = vpop.f32.mrf.mxu0
      %v1025 = vadd.f32 %v960, %v1024
      %1026 = vdwg.mxu0
      %1027 = vmatpush.msra.mxu0 %v935
      %1028 = vmatpush.msra.mxu0 %v934
      %1029 = vmatpush.msra.mxu0 %v933
      %1030 = vmatpush.msra.mxu0 %v932
      %1031 = vmatpush.msra.mxu0 %v931
      %1032 = vmatpush.msra.mxu0 %v930
      %1033 = vmatpush.msra.mxu0 %v929
      %1034 = vmatpush.msra.mxu0 %v928
      %1035 = vmatpush.msra.mxu0 %v927
      %1036 = vmatpush.msra.mxu0 %v926
      %1037 = vmatpush.msra.mxu0 %v925
      %1038 = vmatpush.msra.mxu0 %v924
      %1039 = vmatpush.msra.mxu0 %v923
      %1040 = vmatpush.msra.mxu0 %v922
      %1041 = vmatpush.msra.mxu0 %v921
      %1042 = vmatpush.msra.mxu0 %v920
      %1043 = vmatmul.f32.gmra.mxu0 %v873
      %v1044 = vpop.f32.mrf.mxu0
      %v1045 = vadd.f32 %v1004, %v1044
      %1046 = vmatmul.f32.gmra.mxu0 %v877
      %v1047 = vpop.f32.mrf.mxu0
      %v1048 = vadd.f32 %v1007, %v1047
      %1049 = vmatmul.f32.gmra.mxu0 %v881
      %v1050 = vpop.f32.mrf.mxu0
      %v1051 = vadd.f32 %v1010, %v1050
      %1052 = vmatmul.f32.gmra.mxu0 %v885
      %v1053 = vpop.f32.mrf.mxu0
      %v1054 = vadd.f32 %v1013, %v1053
      %1055 = vmatmul.f32.gmra.mxu0 %v889
      %v1056 = vpop.f32.mrf.mxu0
      %v1057 = vadd.f32 %v1016, %v1056
      %1058 = vmatmul.f32.gmra.mxu0 %v893
      %v1059 = vpop.f32.mrf.mxu0
      %v1060 = vadd.f32 %v1019, %v1059
      %1061 = vmatmul.f32.gmra.mxu0 %v897
      %v1062 = vpop.f32.mrf.mxu0
      %v1063 = vadd.f32 %v1022, %v1062
      %1064 = vmatmul.f32.gmra.mxu0 %v901
      %v1065 = vpop.f32.mrf.mxu0
      %v1066 = vadd.f32 %v1025, %v1065
      %1067 = vdwg.mxu0
      %1068 = vmatpush.msra.mxu0 %v951
      %1069 = vmatpush.msra.mxu0 %v950
      %1070 = vmatpush.msra.mxu0 %v949
      %1071 = vmatpush.msra.mxu0 %v948
      %1072 = vmatpush.msra.mxu0 %v947
      %1073 = vmatpush.msra.mxu0 %v946
      %1074 = vmatpush.msra.mxu0 %v945
      %1075 = vmatpush.msra.mxu0 %v944
      %1076 = vmatpush.msra.mxu0 %v943
      %1077 = vmatpush.msra.mxu0 %v942
      %1078 = vmatpush.msra.mxu0 %v941
      %1079 = vmatpush.msra.mxu0 %v940
      %1080 = vmatpush.msra.mxu0 %v939
      %1081 = vmatpush.msra.mxu0 %v938
      %1082 = vmatpush.msra.mxu0 %v937
      %1083 = vmatpush.msra.mxu0 %v936
      %1084 = vmatmul.f32.gmra.mxu0 %v874
      %v1085 = vpop.f32.mrf.mxu0
      %v1086 = vadd.f32 %v1045, %v1085
      %1087 = vmatmul.f32.gmra.mxu0 %v878
      %v1088 = vpop.f32.mrf.mxu0
      %v1089 = vadd.f32 %v1048, %v1088
      %1090 = vmatmul.f32.gmra.mxu0 %v882
      %v1091 = vpop.f32.mrf.mxu0
      %v1092 = vadd.f32 %v1051, %v1091
      %1093 = vmatmul.f32.gmra.mxu0 %v886
      %v1094 = vpop.f32.mrf.mxu0
      %v1095 = vadd.f32 %v1054, %v1094
      %1096 = vmatmul.f32.gmra.mxu0 %v890
      %v1097 = vpop.f32.mrf.mxu0
      %v1098 = vadd.f32 %v1057, %v1097
      %1099 = vmatmul.f32.gmra.mxu0 %v894
      %v1100 = vpop.f32.mrf.mxu0
      %v1101 = vadd.f32 %v1060, %v1100
      %1102 = vmatmul.f32.gmra.mxu0 %v898
      %v1103 = vpop.f32.mrf.mxu0
      %v1104 = vadd.f32 %v1063, %v1103
      %1105 = vmatmul.f32.gmra.mxu0 %v902
      %v1106 = vpop.f32.mrf.mxu0
      %v1107 = vadd.f32 %v1066, %v1106
      %1108 = vdwg.mxu0
      %1109 = vmatpush.msra.mxu0 0.0
      %1110 = vmatpush.msra.mxu0 0.0
      %1111 = vmatpush.msra.mxu0 0.0
      %1112 = vmatpush.msra.mxu0 0.0
      %1113 = vmatpush.msra.mxu0 0.0
      %1114 = vmatpush.msra.mxu0 0.0
      %1115 = vmatpush.msra.mxu0 0.0
      %1116 = vmatpush.msra.mxu0 0.0
      %1117 = vmatpush.msra.mxu0 0.0
      %1118 = vmatpush.msra.mxu0 0.0
      %1119 = vmatpush.msra.mxu0 %v957
      %1120 = vmatpush.msra.mxu0 %v956
      %1121 = vmatpush.msra.mxu0 %v955
      %1122 = vmatpush.msra.mxu0 %v954
      %1123 = vmatpush.msra.mxu0 %v953
      %1124 = vmatpush.msra.mxu0 %v952
      %1125 = vmatmul.f32.gmra.mxu0 %v963
      %v1126 = vpop.f32.mrf.mxu0
      %v1127 = vadd.f32 %v1086, %v1126
      %1128 = vmatmul.f32.gmra.mxu0 %v966
      %v1129 = vpop.f32.mrf.mxu0
      %v1130 = vadd.f32 %v1089, %v1129
      %1131 = vmatmul.f32.gmra.mxu0 %v969
      %v1132 = vpop.f32.mrf.mxu0
      %v1133 = vadd.f32 %v1092, %v1132
      %1134 = vmatmul.f32.gmra.mxu0 %v972
      %v1135 = vpop.f32.mrf.mxu0
      %v1136 = vadd.f32 %v1095, %v1135
      %1137 = vmatmul.f32.gmra.mxu0 %v975
      %v1138 = vpop.f32.mrf.mxu0
      %v1139 = vadd.f32 %v1098, %v1138
      %1140 = vmatmul.f32.gmra.mxu0 %v978
      %v1141 = vpop.f32.mrf.mxu0
      %v1142 = vadd.f32 %v1101, %v1141
      %1143 = vmatmul.f32.gmra.mxu0 %v981
      %v1144 = vpop.f32.mrf.mxu0
      %v1145 = vadd.f32 %v1104, %v1144
      %1146 = vmatmul.f32.gmra.mxu0 %v984
      %v1147 = vpop.f32.mrf.mxu0
      %v1148 = vadd.f32 %v1107, %v1147
      %1149 = vdwg.mxu0
      %v1150 = vmax.f32 %v1127, 0.0
      %v1151 = vmax.f32 %v1130, 0.0
      %v1152 = vmax.f32 %v1133, 0.0
      %v1153 = vmax.f32 %v1136, 0.0
      %v1154 = vmax.f32 %v1139, 0.0
      %v1155 = vmax.f32 %v1142, 0.0
      %v1156 = vmax.f32 %v1145, 0.0
      %v1157 = vmax.f32 %v1148, 0.0
      %v1158 = vld [vmem:[%s374] sm:$0xff]
      %v1159 = vld [vmem:[%s374 + $0x8] sm:$0xff]
      %v1160 = vld [vmem:[%s374 + $0x10] sm:$0xff]
      %v1161 = vld [vmem:[%s374 + $0x18] sm:$0xff]
      %v1162 = vld [vmem:[%s374 + $0x20] sm:$0xff]
      %v1163 = vld [vmem:[%s374 + $0x28] sm:$0xff]
      %v1164 = vld [vmem:[%s374 + $0x30] sm:$0xff]
      %v1165 = vld [vmem:[%s374 + $0x38] sm:$0xff]
      %s1166 = scalar_lea.vmem [#allocation4], 16
      %1167 = vst.msk [vmem:[%s1166 + $0x1] sm:$0xff] %vm408, %v1158
      %1168 = vst.msk [vmem:[%s1166 + $0x11] sm:$0xff] %vm408, %v1159
      %1169 = vst.msk [vmem:[%s1166 + $0x21] sm:$0xff] %vm408, %v1160
      %1170 = vst.msk [vmem:[%s1166 + $0x31] sm:$0xff] %vm408, %v1161
      %1171 = vst.msk [vmem:[%s1166 + $0x41] sm:$0xff] %vm408, %v1162
      %1172 = vst.msk [vmem:[%s1166 + $0x51] sm:$0xff] %vm408, %v1163
      %1173 = vst.msk [vmem:[%s1166 + $0x61] sm:$0xff] %vm408, %v1164
      %1174 = vst.msk [vmem:[%s1166 + $0x71] sm:$0xff] %vm408, %v1165
      %v1175 = vld [vmem:[#allocation4] sm:$0xff]
      %v1176 = vld [vmem:[#allocation4 + $0x10] sm:$0xff]
      %v1177 = vld [vmem:[#allocation4 + $0x20] sm:$0xff]
      %v1178 = vld [vmem:[#allocation4 + $0x30] sm:$0xff]
      %v1179 = vld [vmem:[#allocation4 + $0x40] sm:$0xff]
      %v1180 = vld [vmem:[#allocation4 + $0x50] sm:$0xff]
      %v1181 = vld [vmem:[#allocation4 + $0x60] sm:$0xff]
      %v1182 = vld [vmem:[#allocation4 + $0x70] sm:$0xff]
      %1183 = vst.msk [vmem:[#allocation5] sm:$0xff] %vm408, %v1175
      %1184 = vst.msk [vmem:[#allocation5 + $0x8] sm:$0xff] %vm408, %v1176
      %1185 = vst.msk [vmem:[#allocation5 + $0x10] sm:$0xff] %vm408, %v1177
      %1186 = vst.msk [vmem:[#allocation5 + $0x18] sm:$0xff] %vm408, %v1178
      %1187 = vst.msk [vmem:[#allocation5 + $0x20] sm:$0xff] %vm408, %v1179
      %1188 = vst.msk [vmem:[#allocation5 + $0x28] sm:$0xff] %vm408, %v1180
      %1189 = vst.msk [vmem:[#allocation5 + $0x30] sm:$0xff] %vm408, %v1181
      %1190 = vst.msk [vmem:[#allocation5 + $0x38] sm:$0xff] %vm408, %v1182
      %v1191 = vld [vmem:[#allocation4 + $0x1] sm:$0xff]
      %v1192 = vld [vmem:[#allocation4 + $0x11] sm:$0xff]
      %v1193 = vld [vmem:[#allocation4 + $0x21] sm:$0xff]
      %v1194 = vld [vmem:[#allocation4 + $0x31] sm:$0xff]
      %v1195 = vld [vmem:[#allocation4 + $0x41] sm:$0xff]
      %v1196 = vld [vmem:[#allocation4 + $0x51] sm:$0xff]
      %v1197 = vld [vmem:[#allocation4 + $0x61] sm:$0xff]
      %v1198 = vld [vmem:[#allocation4 + $0x71] sm:$0xff]
      %1207 = vrot.lane.b32.xlu0 %v1191, 1
      %v1208 = vpop.permute.xlu0 %1207
      %1209 = vrot.lane.b32.xlu0 %v1192, 1
      %v1210 = vpop.permute.xlu0 %1209
      %1211 = vrot.lane.b32.xlu0 %v1193, 1
      %v1212 = vpop.permute.xlu0 %1211
      %1213 = vrot.lane.b32.xlu0 %v1194, 1
      %v1214 = vpop.permute.xlu0 %1213
      %1215 = vrot.lane.b32.xlu0 %v1195, 1
      %v1216 = vpop.permute.xlu0 %1215
      %1217 = vrot.lane.b32.xlu0 %v1196, 1
      %v1218 = vpop.permute.xlu0 %1217
      %1219 = vrot.lane.b32.xlu0 %v1197, 1
      %v1220 = vpop.permute.xlu0 %1219
      %1221 = vrot.lane.b32.xlu0 %v1198, 1
      %v1222 = vpop.permute.xlu0 %1221
      %vm1231 = vcmask 15368
      %1232 = vst.msk [vmem:[#allocation5] sm:$0xff] %vm1231, %v1208
      %1233 = vst.msk [vmem:[#allocation5 + $0x8] sm:$0xff] %vm1231, %v1210
      %1234 = vst.msk [vmem:[#allocation5 + $0x10] sm:$0xff] %vm1231, %v1212
      %1235 = vst.msk [vmem:[#allocation5 + $0x18] sm:$0xff] %vm1231, %v1214
      %1236 = vst.msk [vmem:[#allocation5 + $0x20] sm:$0xff] %vm1231, %v1216
      %1237 = vst.msk [vmem:[#allocation5 + $0x28] sm:$0xff] %vm1231, %v1218
      %1238 = vst.msk [vmem:[#allocation5 + $0x30] sm:$0xff] %vm1231, %v1220
      %1239 = vst.msk [vmem:[#allocation5 + $0x38] sm:$0xff] %vm1231, %v1222
      %v1240 = vld [vmem:[#allocation4 + $0x2] sm:$0xff]
      %v1241 = vld [vmem:[#allocation4 + $0x12] sm:$0xff]
      %v1242 = vld [vmem:[#allocation4 + $0x22] sm:$0xff]
      %v1243 = vld [vmem:[#allocation4 + $0x32] sm:$0xff]
      %v1244 = vld [vmem:[#allocation4 + $0x42] sm:$0xff]
      %v1245 = vld [vmem:[#allocation4 + $0x52] sm:$0xff]
      %v1246 = vld [vmem:[#allocation4 + $0x62] sm:$0xff]
      %v1247 = vld [vmem:[#allocation4 + $0x72] sm:$0xff]
      %1256 = vrot.lane.b32.xlu0 %v1240, 2
      %v1257 = vpop.permute.xlu0 %1256
      %1258 = vrot.lane.b32.xlu0 %v1241, 2
      %v1259 = vpop.permute.xlu0 %1258
      %1260 = vrot.lane.b32.xlu0 %v1242, 2
      %v1261 = vpop.permute.xlu0 %1260
      %1262 = vrot.lane.b32.xlu0 %v1243, 2
      %v1263 = vpop.permute.xlu0 %1262
      %1264 = vrot.lane.b32.xlu0 %v1244, 2
      %v1265 = vpop.permute.xlu0 %1264
      %1266 = vrot.lane.b32.xlu0 %v1245, 2
      %v1267 = vpop.permute.xlu0 %1266
      %1268 = vrot.lane.b32.xlu0 %v1246, 2
      %v1269 = vpop.permute.xlu0 %1268
      %1270 = vrot.lane.b32.xlu0 %v1247, 2
      %v1271 = vpop.permute.xlu0 %1270
      %vm1280 = vcmask 23568
      %1281 = vst.msk [vmem:[#allocation5] sm:$0xff] %vm1280, %v1257
      %1282 = vst.msk [vmem:[#allocation5 + $0x8] sm:$0xff] %vm1280, %v1259
      %1283 = vst.msk [vmem:[#allocation5 + $0x10] sm:$0xff] %vm1280, %v1261
      %1284 = vst.msk [vmem:[#allocation5 + $0x18] sm:$0xff] %vm1280, %v1263
      %1285 = vst.msk [vmem:[#allocation5 + $0x20] sm:$0xff] %vm1280, %v1265
      %1286 = vst.msk [vmem:[#allocation5 + $0x28] sm:$0xff] %vm1280, %v1267
      %1287 = vst.msk [vmem:[#allocation5 + $0x30] sm:$0xff] %vm1280, %v1269
      %1288 = vst.msk [vmem:[#allocation5 + $0x38] sm:$0xff] %vm1280, %v1271
      %v1289 = vld [vmem:[%s1166] sm:$0xff]
      %v1290 = vld [vmem:[%s1166 + $0x10] sm:$0xff]
      %v1291 = vld [vmem:[%s1166 + $0x20] sm:$0xff]
      %v1292 = vld [vmem:[%s1166 + $0x30] sm:$0xff]
      %v1293 = vld [vmem:[%s1166 + $0x40] sm:$0xff]
      %v1294 = vld [vmem:[%s1166 + $0x50] sm:$0xff]
      %v1295 = vld [vmem:[%s1166 + $0x60] sm:$0xff]
      %v1296 = vld [vmem:[%s1166 + $0x70] sm:$0xff]
      %1305 = vrot.lane.b32.xlu0 %v1289, 3
      %v1306 = vpop.permute.xlu0 %1305
      %1307 = vrot.lane.b32.xlu0 %v1290, 3
      %v1308 = vpop.permute.xlu0 %1307
      %1309 = vrot.lane.b32.xlu0 %v1291, 3
      %v1310 = vpop.permute.xlu0 %1309
      %1311 = vrot.lane.b32.xlu0 %v1292, 3
      %v1312 = vpop.permute.xlu0 %1311
      %1313 = vrot.lane.b32.xlu0 %v1293, 3
      %v1314 = vpop.permute.xlu0 %1313
      %1315 = vrot.lane.b32.xlu0 %v1294, 3
      %v1316 = vpop.permute.xlu0 %1315
      %1317 = vrot.lane.b32.xlu0 %v1295, 3
      %v1318 = vpop.permute.xlu0 %1317
      %1319 = vrot.lane.b32.xlu0 %v1296, 3
      %v1320 = vpop.permute.xlu0 %1319
      %vm1329 = vcmask 31768
      %1330 = vst.msk [vmem:[#allocation5] sm:$0xff] %vm1329, %v1306
      %1331 = vst.msk [vmem:[#allocation5 + $0x8] sm:$0xff] %vm1329, %v1308
      %1332 = vst.msk [vmem:[#allocation5 + $0x10] sm:$0xff] %vm1329, %v1310
      %1333 = vst.msk [vmem:[#allocation5 + $0x18] sm:$0xff] %vm1329, %v1312
      %1334 = vst.msk [vmem:[#allocation5 + $0x20] sm:$0xff] %vm1329, %v1314
      %1335 = vst.msk [vmem:[#allocation5 + $0x28] sm:$0xff] %vm1329, %v1316
      %1336 = vst.msk [vmem:[#allocation5 + $0x30] sm:$0xff] %vm1329, %v1318
      %1337 = vst.msk [vmem:[#allocation5 + $0x38] sm:$0xff] %vm1329, %v1320
      %v1338 = vld [vmem:[%s1166 + $0x1] sm:$0xff]
      %v1339 = vld [vmem:[%s1166 + $0x11] sm:$0xff]
      %v1340 = vld [vmem:[%s1166 + $0x21] sm:$0xff]
      %v1341 = vld [vmem:[%s1166 + $0x31] sm:$0xff]
      %v1342 = vld [vmem:[%s1166 + $0x41] sm:$0xff]
      %v1343 = vld [vmem:[%s1166 + $0x51] sm:$0xff]
      %v1344 = vld [vmem:[%s1166 + $0x61] sm:$0xff]
      %v1345 = vld [vmem:[%s1166 + $0x71] sm:$0xff]
      %1354 = vrot.lane.b32.xlu0 %v1338, 4
      %v1355 = vpop.permute.xlu0 %1354
      %1356 = vrot.lane.b32.xlu0 %v1339, 4
      %v1357 = vpop.permute.xlu0 %1356
      %1358 = vrot.lane.b32.xlu0 %v1340, 4
      %v1359 = vpop.permute.xlu0 %1358
      %1360 = vrot.lane.b32.xlu0 %v1341, 4
      %v1361 = vpop.permute.xlu0 %1360
      %1362 = vrot.lane.b32.xlu0 %v1342, 4
      %v1363 = vpop.permute.xlu0 %1362
      %1364 = vrot.lane.b32.xlu0 %v1343, 4
      %v1365 = vpop.permute.xlu0 %1364
      %1366 = vrot.lane.b32.xlu0 %v1344, 4
      %v1367 = vpop.permute.xlu0 %1366
      %1368 = vrot.lane.b32.xlu0 %v1345, 4
      %v1369 = vpop.permute.xlu0 %1368
      %vm1378 = vcmask 39968
      %1379 = vst.msk [vmem:[#allocation5] sm:$0xff] %vm1378, %v1355
      %1380 = vst.msk [vmem:[#allocation5 + $0x8] sm:$0xff] %vm1378, %v1357
      %1381 = vst.msk [vmem:[#allocation5 + $0x10] sm:$0xff] %vm1378, %v1359
      %1382 = vst.msk [vmem:[#allocation5 + $0x18] sm:$0xff] %vm1378, %v1361
      %1383 = vst.msk [vmem:[#allocation5 + $0x20] sm:$0xff] %vm1378, %v1363
      %1384 = vst.msk [vmem:[#allocation5 + $0x28] sm:$0xff] %vm1378, %v1365
      %1385 = vst.msk [vmem:[#allocation5 + $0x30] sm:$0xff] %vm1378, %v1367
      %1386 = vst.msk [vmem:[#allocation5 + $0x38] sm:$0xff] %vm1378, %v1369
      %v1387 = vld [vmem:[%s1166 + $0x2] sm:$0xff]
      %v1388 = vld [vmem:[%s1166 + $0x12] sm:$0xff]
      %v1389 = vld [vmem:[%s1166 + $0x22] sm:$0xff]
      %v1390 = vld [vmem:[%s1166 + $0x32] sm:$0xff]
      %v1391 = vld [vmem:[%s1166 + $0x42] sm:$0xff]
      %v1392 = vld [vmem:[%s1166 + $0x52] sm:$0xff]
      %v1393 = vld [vmem:[%s1166 + $0x62] sm:$0xff]
      %v1394 = vld [vmem:[%s1166 + $0x72] sm:$0xff]
      %1403 = vrot.lane.b32.xlu0 %v1387, 5
      %v1404 = vpop.permute.xlu0 %1403
      %1405 = vrot.lane.b32.xlu0 %v1388, 5
      %v1406 = vpop.permute.xlu0 %1405
      %1407 = vrot.lane.b32.xlu0 %v1389, 5
      %v1408 = vpop.permute.xlu0 %1407
      %1409 = vrot.lane.b32.xlu0 %v1390, 5
      %v1410 = vpop.permute.xlu0 %1409
      %1411 = vrot.lane.b32.xlu0 %v1391, 5
      %v1412 = vpop.permute.xlu0 %1411
      %1413 = vrot.lane.b32.xlu0 %v1392, 5
      %v1414 = vpop.permute.xlu0 %1413
      %1415 = vrot.lane.b32.xlu0 %v1393, 5
      %v1416 = vpop.permute.xlu0 %1415
      %1417 = vrot.lane.b32.xlu0 %v1394, 5
      %v1418 = vpop.permute.xlu0 %1417
      %vm1427 = vcmask 48168
      %1428 = vst.msk [vmem:[#allocation5] sm:$0xff] %vm1427, %v1404
      %1429 = vst.msk [vmem:[#allocation5 + $0x8] sm:$0xff] %vm1427, %v1406
      %1430 = vst.msk [vmem:[#allocation5 + $0x10] sm:$0xff] %vm1427, %v1408
      %1431 = vst.msk [vmem:[#allocation5 + $0x18] sm:$0xff] %vm1427, %v1410
      %1432 = vst.msk [vmem:[#allocation5 + $0x20] sm:$0xff] %vm1427, %v1412
      %1433 = vst.msk [vmem:[#allocation5 + $0x28] sm:$0xff] %vm1427, %v1414
      %1434 = vst.msk [vmem:[#allocation5 + $0x30] sm:$0xff] %vm1427, %v1416
      %1435 = vst.msk [vmem:[#allocation5 + $0x38] sm:$0xff] %vm1427, %v1418
      %s1436 = scalar_lea.vmem [#allocation4], 32
      %v1437 = vld [vmem:[%s1436] sm:$0xff]
      %v1438 = vld [vmem:[%s1436 + $0x10] sm:$0xff]
      %v1439 = vld [vmem:[%s1436 + $0x20] sm:$0xff]
      %v1440 = vld [vmem:[%s1436 + $0x30] sm:$0xff]
      %v1441 = vld [vmem:[%s1436 + $0x40] sm:$0xff]
      %v1442 = vld [vmem:[%s1436 + $0x50] sm:$0xff]
      %v1443 = vld [vmem:[%s1436 + $0x60] sm:$0xff]
      %v1444 = vld [vmem:[%s1436 + $0x70] sm:$0xff]
      %1453 = vrot.lane.b32.xlu0 %v1437, 6
      %v1454 = vpop.permute.xlu0 %1453
      %1455 = vrot.lane.b32.xlu0 %v1438, 6
      %v1456 = vpop.permute.xlu0 %1455
      %1457 = vrot.lane.b32.xlu0 %v1439, 6
      %v1458 = vpop.permute.xlu0 %1457
      %1459 = vrot.lane.b32.xlu0 %v1440, 6
      %v1460 = vpop.permute.xlu0 %1459
      %1461 = vrot.lane.b32.xlu0 %v1441, 6
      %v1462 = vpop.permute.xlu0 %1461
      %1463 = vrot.lane.b32.xlu0 %v1442, 6
      %v1464 = vpop.permute.xlu0 %1463
      %1465 = vrot.lane.b32.xlu0 %v1443, 6
      %v1466 = vpop.permute.xlu0 %1465
      %1467 = vrot.lane.b32.xlu0 %v1444, 6
      %v1468 = vpop.permute.xlu0 %1467
      %vm1477 = vcmask 56368
      %1478 = vst.msk [vmem:[#allocation5] sm:$0xff] %vm1477, %v1454
      %1479 = vst.msk [vmem:[#allocation5 + $0x8] sm:$0xff] %vm1477, %v1456
      %1480 = vst.msk [vmem:[#allocation5 + $0x10] sm:$0xff] %vm1477, %v1458
      %1481 = vst.msk [vmem:[#allocation5 + $0x18] sm:$0xff] %vm1477, %v1460
      %1482 = vst.msk [vmem:[#allocation5 + $0x20] sm:$0xff] %vm1477, %v1462
      %1483 = vst.msk [vmem:[#allocation5 + $0x28] sm:$0xff] %vm1477, %v1464
      %1484 = vst.msk [vmem:[#allocation5 + $0x30] sm:$0xff] %vm1477, %v1466
      %1485 = vst.msk [vmem:[#allocation5 + $0x38] sm:$0xff] %vm1477, %v1468
      %v1486 = vld [vmem:[%s1436 + $0x1] sm:$0xff]
      %v1487 = vld [vmem:[%s1436 + $0x11] sm:$0xff]
      %v1488 = vld [vmem:[%s1436 + $0x21] sm:$0xff]
      %v1489 = vld [vmem:[%s1436 + $0x31] sm:$0xff]
      %v1490 = vld [vmem:[%s1436 + $0x41] sm:$0xff]
      %v1491 = vld [vmem:[%s1436 + $0x51] sm:$0xff]
      %v1492 = vld [vmem:[%s1436 + $0x61] sm:$0xff]
      %v1493 = vld [vmem:[%s1436 + $0x71] sm:$0xff]
      %1502 = vrot.lane.b32.xlu0 %v1486, 7
      %v1503 = vpop.permute.xlu0 %1502
      %1504 = vrot.lane.b32.xlu0 %v1487, 7
      %v1505 = vpop.permute.xlu0 %1504
      %1506 = vrot.lane.b32.xlu0 %v1488, 7
      %v1507 = vpop.permute.xlu0 %1506
      %1508 = vrot.lane.b32.xlu0 %v1489, 7
      %v1509 = vpop.permute.xlu0 %1508
      %1510 = vrot.lane.b32.xlu0 %v1490, 7
      %v1511 = vpop.permute.xlu0 %1510
      %1512 = vrot.lane.b32.xlu0 %v1491, 7
      %v1513 = vpop.permute.xlu0 %1512
      %1514 = vrot.lane.b32.xlu0 %v1492, 7
      %v1515 = vpop.permute.xlu0 %1514
      %1516 = vrot.lane.b32.xlu0 %v1493, 7
      %v1517 = vpop.permute.xlu0 %1516
      %vm1526 = vcmask 64568
      %1527 = vst.msk [vmem:[#allocation5] sm:$0xff] %vm1526, %v1503
      %1528 = vst.msk [vmem:[#allocation5 + $0x8] sm:$0xff] %vm1526, %v1505
      %1529 = vst.msk [vmem:[#allocation5 + $0x10] sm:$0xff] %vm1526, %v1507
      %1530 = vst.msk [vmem:[#allocation5 + $0x18] sm:$0xff] %vm1526, %v1509
      %1531 = vst.msk [vmem:[#allocation5 + $0x20] sm:$0xff] %vm1526, %v1511
      %1532 = vst.msk [vmem:[#allocation5 + $0x28] sm:$0xff] %vm1526, %v1513
      %1533 = vst.msk [vmem:[#allocation5 + $0x30] sm:$0xff] %vm1526, %v1515
      %1534 = vst.msk [vmem:[#allocation5 + $0x38] sm:$0xff] %vm1526, %v1517
      %v1535 = vld [vmem:[%s1436 + $0x2] sm:$0xff]
      %v1536 = vld [vmem:[%s1436 + $0x12] sm:$0xff]
      %v1537 = vld [vmem:[%s1436 + $0x22] sm:$0xff]
      %v1538 = vld [vmem:[%s1436 + $0x32] sm:$0xff]
      %v1539 = vld [vmem:[%s1436 + $0x42] sm:$0xff]
      %v1540 = vld [vmem:[%s1436 + $0x52] sm:$0xff]
      %v1541 = vld [vmem:[%s1436 + $0x62] sm:$0xff]
      %v1542 = vld [vmem:[%s1436 + $0x72] sm:$0xff]
      %1551 = vrot.lane.b32.xlu0 %v1535, 8
      %v1552 = vpop.permute.xlu0 %1551
      %1553 = vrot.lane.b32.xlu0 %v1536, 8
      %v1554 = vpop.permute.xlu0 %1553
      %1555 = vrot.lane.b32.xlu0 %v1537, 8
      %v1556 = vpop.permute.xlu0 %1555
      %1557 = vrot.lane.b32.xlu0 %v1538, 8
      %v1558 = vpop.permute.xlu0 %1557
      %1559 = vrot.lane.b32.xlu0 %v1539, 8
      %v1560 = vpop.permute.xlu0 %1559
      %1561 = vrot.lane.b32.xlu0 %v1540, 8
      %v1562 = vpop.permute.xlu0 %1561
      %1563 = vrot.lane.b32.xlu0 %v1541, 8
      %v1564 = vpop.permute.xlu0 %1563
      %1565 = vrot.lane.b32.xlu0 %v1542, 8
      %v1566 = vpop.permute.xlu0 %1565
      %vm1575 = vcmask 72768
      %1576 = vst.msk [vmem:[#allocation5] sm:$0xff] %vm1575, %v1552
      %1577 = vst.msk [vmem:[#allocation5 + $0x8] sm:$0xff] %vm1575, %v1554
      %1578 = vst.msk [vmem:[#allocation5 + $0x10] sm:$0xff] %vm1575, %v1556
      %1579 = vst.msk [vmem:[#allocation5 + $0x18] sm:$0xff] %vm1575, %v1558
      %1580 = vst.msk [vmem:[#allocation5 + $0x20] sm:$0xff] %vm1575, %v1560
      %1581 = vst.msk [vmem:[#allocation5 + $0x28] sm:$0xff] %vm1575, %v1562
      %1582 = vst.msk [vmem:[#allocation5 + $0x30] sm:$0xff] %vm1575, %v1564
      %1583 = vst.msk [vmem:[#allocation5 + $0x38] sm:$0xff] %vm1575, %v1566
      %v1584 = vld [vmem:[#allocation5] sm:$0xff]
      %v1585 = vld [vmem:[#allocation5 + $0x8] sm:$0xff]
      %v1586 = vld [vmem:[#allocation5 + $0x10] sm:$0xff]
      %v1587 = vld [vmem:[#allocation5 + $0x18] sm:$0xff]
      %v1588 = vld [vmem:[#allocation5 + $0x20] sm:$0xff]
      %v1589 = vld [vmem:[#allocation5 + $0x28] sm:$0xff]
      %v1590 = vld [vmem:[#allocation5 + $0x30] sm:$0xff]
      %v1591 = vld [vmem:[#allocation5 + $0x38] sm:$0xff]
      %v1592 = vld [vmem:[%s5] sm:$0xff]
      %v1593 = vld [vmem:[%s5 + $0x8] sm:$0x1]
      %v1594 = vld [vmem:[%s6] sm:$0x1]
      %v1596 = vperm.slane %v1594, 0
      %vm1598 = vcmask 72704
      %v1600 = vsel %vm1598, %v1584, 0
      %v1603 = vsel %vm1598, %v1585, 0
      %v1606 = vsel %vm1598, %v1586, 0
      %v1609 = vsel %vm1598, %v1587, 0
      %v1612 = vsel %vm1598, %v1588, 0
      %v1615 = vsel %vm1598, %v1589, 0
      %v1618 = vsel %vm1598, %v1590, 0
      %v1621 = vsel %vm1598, %v1591, 0
      %vm1623 = vcmask 1040384
      %v1625 = vsel %vm1623, %v1593, 0
      %1627 = vmatpush.msra.mxu0 0.0
      %1628 = vmatpush.msra.mxu0 0.0
      %1629 = vmatpush.msra.mxu0 0.0
      %1630 = vmatpush.msra.mxu0 0.0
      %1631 = vmatpush.msra.mxu0 0.0
      %1632 = vmatpush.msra.mxu0 0.0
      %1633 = vmatpush.msra.mxu0 0.0
      %1634 = vmatpush.msra.mxu0 0.0
      %1635 = vmatpush.msra.mxu0 0.0
      %1636 = vmatpush.msra.mxu0 0.0
      %1637 = vmatpush.msra.mxu0 0.0
      %1638 = vmatpush.msra.mxu0 0.0
      %1639 = vmatpush.msra.mxu0 0.0
      %1640 = vmatpush.msra.mxu0 0.0
      %1641 = vmatpush.msra.mxu0 %v1625
      %1642 = vmatpush.msra.mxu0 %v1592
      %1643 = vmatmul.f32.gmra.mxu0 %v1600
      %v1644 = vpop.f32.mrf.mxu0
      %v1645 = vadd.f32 %v1596, %v1644
      %1646 = vmatmul.f32.gmra.mxu0 %v1603
      %v1647 = vpop.f32.mrf.mxu0
      %v1648 = vadd.f32 %v1596, %v1647
      %1649 = vmatmul.f32.gmra.mxu0 %v1606
      %v1650 = vpop.f32.mrf.mxu0
      %v1651 = vadd.f32 %v1596, %v1650
      %1652 = vmatmul.f32.gmra.mxu0 %v1609
      %v1653 = vpop.f32.mrf.mxu0
      %v1654 = vadd.f32 %v1596, %v1653
      %1655 = vmatmul.f32.gmra.mxu0 %v1612
      %v1656 = vpop.f32.mrf.mxu0
      %v1657 = vadd.f32 %v1596, %v1656
      %1658 = vmatmul.f32.gmra.mxu0 %v1615
      %v1659 = vpop.f32.mrf.mxu0
      %v1660 = vadd.f32 %v1596, %v1659
      %1661 = vmatmul.f32.gmra.mxu0 %v1618
      %v1662 = vpop.f32.mrf.mxu0
      %v1663 = vadd.f32 %v1596, %v1662
      %1664 = vmatmul.f32.gmra.mxu0 %v1621
      %v1665 = vpop.f32.mrf.mxu0
      %v1666 = vadd.f32 %v1596, %v1665
      %1667 = vdwg.mxu0
      %v1668 = vmax.f32 %v1645, 0.0
      %v1669 = vmax.f32 %v1648, 0.0
      %v1670 = vmax.f32 %v1651, 0.0
      %v1671 = vmax.f32 %v1654, 0.0
      %v1672 = vmax.f32 %v1657, 0.0
      %v1673 = vmax.f32 %v1660, 0.0
      %v1674 = vmax.f32 %v1663, 0.0
      %v1675 = vmax.f32 %v1666, 0.0
      %v1676 = vsel %vm380, %v1668, 0.0
      %v1677 = vsel %vm380, %v1669, 0.0
      %v1678 = vadd.f32 %v1676, %v1677
      %v1679 = vsel %vm380, %v1670, 0.0
      %v1680 = vadd.f32 %v1678, %v1679
      %v1681 = vsel %vm380, %v1671, 0.0
      %v1682 = vadd.f32 %v1680, %v1681
      %v1683 = vsel %vm380, %v1672, 0.0
      %v1684 = vadd.f32 %v1682, %v1683
      %v1685 = vsel %vm380, %v1673, 0.0
      %v1686 = vadd.f32 %v1684, %v1685
      %v1687 = vsel %vm380, %v1674, 0.0
      %v1688 = vadd.f32 %v1686, %v1687
      %v1689 = vsel %vm380, %v1675, 0.0
      %v1690 = vadd.f32 %v1688, %v1689
      %v1691 = vrot.slane %v1690, 4
      %v1692 = vadd.f32 %v1690, %v1691
      %v1693 = vrot.slane %v1692, 2
      %v1694 = vadd.f32 %v1692, %v1693
      %v1695 = vrot.slane %v1694, 1
      %v1696 = vadd.f32 %v1694, %v1695
      %v1697 = vrcp.pop 64.0
      %v1698 = vmul.f32 64.0, %v1697
      %v1699 = vsub.f32 1.0, %v1698
      %v1700 = vmul.f32 %v1697, %v1699
      %v1701 = vadd.f32 %v1697, %v1700
      %vm1702 = vweird.f32 %v1697
      %v1703 = vsel %vm1702, %v1697, %v1701
      %v1704 = vmul.f32 %v1696, %v1703
      %s1705 = scalar_lea.vmem [#allocation6], 16
      %1706 = vst.msk [vmem:[%s1705 + $0x1] sm:$0xff] %vm380, %v1150
      %1707 = vst.msk [vmem:[%s1705 + $0x11] sm:$0xff] %vm380, %v1151
      %1708 = vst.msk [vmem:[%s1705 + $0x21] sm:$0xff] %vm380, %v1152
      %1709 = vst.msk [vmem:[%s1705 + $0x31] sm:$0xff] %vm380, %v1153
      %1710 = vst.msk [vmem:[%s1705 + $0x41] sm:$0xff] %vm380, %v1154
      %1711 = vst.msk [vmem:[%s1705 + $0x51] sm:$0xff] %vm380, %v1155
      %1712 = vst.msk [vmem:[%s1705 + $0x61] sm:$0xff] %vm380, %v1156
      %1713 = vst.msk [vmem:[%s1705 + $0x71] sm:$0xff] %vm380, %v1157
      %v1714 = vld [vmem:[#allocation6] sm:$0xff]
      %v1715 = vld [vmem:[#allocation6 + $0x10] sm:$0xff]
      %v1716 = vld [vmem:[#allocation6 + $0x20] sm:$0xff]
      %v1717 = vld [vmem:[#allocation6 + $0x30] sm:$0xff]
      %v1718 = vld [vmem:[#allocation6 + $0x40] sm:$0xff]
      %v1719 = vld [vmem:[#allocation6 + $0x50] sm:$0xff]
      %v1720 = vld [vmem:[#allocation6 + $0x60] sm:$0xff]
      %v1721 = vld [vmem:[#allocation6 + $0x70] sm:$0xff]
      %1722 = vst.msk [vmem:[#allocation7] sm:$0xff] %vm380, %v1714
      %1723 = vst.msk [vmem:[#allocation7 + $0x20] sm:$0xff] %vm380, %v1715
      %1724 = vst.msk [vmem:[#allocation7 + $0x40] sm:$0xff] %vm380, %v1716
      %1725 = vst.msk [vmem:[#allocation7 + $0x60] sm:$0xff] %vm380, %v1717
      %1726 = vst.msk [vmem:[#allocation7 + $0x80] sm:$0xff] %vm380, %v1718
      %1727 = vst.msk [vmem:[#allocation7 + $0xa0] sm:$0xff] %vm380, %v1719
      %1728 = vst.msk [vmem:[#allocation7 + $0xc0] sm:$0xff] %vm380, %v1720
      %1729 = vst.msk [vmem:[#allocation7 + $0xe0] sm:$0xff] %vm380, %v1721
      %v1730 = vld [vmem:[#allocation6 + $0x1] sm:$0xff]
      %v1731 = vld [vmem:[#allocation6 + $0x11] sm:$0xff]
      %v1732 = vld [vmem:[#allocation6 + $0x21] sm:$0xff]
      %v1733 = vld [vmem:[#allocation6 + $0x31] sm:$0xff]
      %v1734 = vld [vmem:[#allocation6 + $0x41] sm:$0xff]
      %v1735 = vld [vmem:[#allocation6 + $0x51] sm:$0xff]
      %v1736 = vld [vmem:[#allocation6 + $0x61] sm:$0xff]
      %v1737 = vld [vmem:[#allocation6 + $0x71] sm:$0xff]
      %1746 = vrot.lane.b32.xlu0 %v1730, 48
      %v1747 = vpop.permute.xlu0 %1746
      %1748 = vrot.lane.b32.xlu0 %v1731, 48
      %v1749 = vpop.permute.xlu0 %1748
      %1750 = vrot.lane.b32.xlu0 %v1732, 48
      %v1751 = vpop.permute.xlu0 %1750
      %1752 = vrot.lane.b32.xlu0 %v1733, 48
      %v1753 = vpop.permute.xlu0 %1752
      %1754 = vrot.lane.b32.xlu0 %v1734, 48
      %v1755 = vpop.permute.xlu0 %1754
      %1756 = vrot.lane.b32.xlu0 %v1735, 48
      %v1757 = vpop.permute.xlu0 %1756
      %1758 = vrot.lane.b32.xlu0 %v1736, 48
      %v1759 = vpop.permute.xlu0 %1758
      %1760 = vrot.lane.b32.xlu0 %v1737, 48
      %v1761 = vpop.permute.xlu0 %1760
      %1770 = vst.msk [vmem:[#allocation7] sm:$0xff] %vm534, %v1747
      %1771 = vst.msk [vmem:[#allocation7 + $0x20] sm:$0xff] %vm534, %v1749
      %1772 = vst.msk [vmem:[#allocation7 + $0x40] sm:$0xff] %vm534, %v1751
      %1773 = vst.msk [vmem:[#allocation7 + $0x60] sm:$0xff] %vm534, %v1753
      %1774 = vst.msk [vmem:[#allocation7 + $0x80] sm:$0xff] %vm534, %v1755
      %1775 = vst.msk [vmem:[#allocation7 + $0xa0] sm:$0xff] %vm534, %v1757
      %1776 = vst.msk [vmem:[#allocation7 + $0xc0] sm:$0xff] %vm534, %v1759
      %1777 = vst.msk [vmem:[#allocation7 + $0xe0] sm:$0xff] %vm534, %v1761
      %v1778 = vld [vmem:[#allocation6 + $0x2] sm:$0xff]
      %v1779 = vld [vmem:[#allocation6 + $0x12] sm:$0xff]
      %v1780 = vld [vmem:[#allocation6 + $0x22] sm:$0xff]
      %v1781 = vld [vmem:[#allocation6 + $0x32] sm:$0xff]
      %v1782 = vld [vmem:[#allocation6 + $0x42] sm:$0xff]
      %v1783 = vld [vmem:[#allocation6 + $0x52] sm:$0xff]
      %v1784 = vld [vmem:[#allocation6 + $0x62] sm:$0xff]
      %v1785 = vld [vmem:[#allocation6 + $0x72] sm:$0xff]
      %1794 = vrot.lane.b32.xlu0 %v1778, 96
      %v1795 = vpop.permute.xlu0 %1794
      %1796 = vrot.lane.b32.xlu0 %v1779, 96
      %v1797 = vpop.permute.xlu0 %1796
      %1798 = vrot.lane.b32.xlu0 %v1780, 96
      %v1799 = vpop.permute.xlu0 %1798
      %1800 = vrot.lane.b32.xlu0 %v1781, 96
      %v1801 = vpop.permute.xlu0 %1800
      %1802 = vrot.lane.b32.xlu0 %v1782, 96
      %v1803 = vpop.permute.xlu0 %1802
      %1804 = vrot.lane.b32.xlu0 %v1783, 96
      %v1805 = vpop.permute.xlu0 %1804
      %1806 = vrot.lane.b32.xlu0 %v1784, 96
      %v1807 = vpop.permute.xlu0 %1806
      %1808 = vrot.lane.b32.xlu0 %v1785, 96
      %v1809 = vpop.permute.xlu0 %1808
      %1818 = vst.msk [vmem:[#allocation7] sm:$0xff] %vm583, %v1795
      %1819 = vst.msk [vmem:[#allocation7 + $0x8] sm:$0xff] %vm585, %v1795
      %1820 = vst.msk [vmem:[#allocation7 + $0x20] sm:$0xff] %vm583, %v1797
      %1821 = vst.msk [vmem:[#allocation7 + $0x28] sm:$0xff] %vm585, %v1797
      %1822 = vst.msk [vmem:[#allocation7 + $0x40] sm:$0xff] %vm583, %v1799
      %1823 = vst.msk [vmem:[#allocation7 + $0x48] sm:$0xff] %vm585, %v1799
      %1824 = vst.msk [vmem:[#allocation7 + $0x60] sm:$0xff] %vm583, %v1801
      %1825 = vst.msk [vmem:[#allocation7 + $0x68] sm:$0xff] %vm585, %v1801
      %1826 = vst.msk [vmem:[#allocation7 + $0x80] sm:$0xff] %vm583, %v1803
      %1827 = vst.msk [vmem:[#allocation7 + $0x88] sm:$0xff] %vm585, %v1803
      %1828 = vst.msk [vmem:[#allocation7 + $0xa0] sm:$0xff] %vm583, %v1805
      %1829 = vst.msk [vmem:[#allocation7 + $0xa8] sm:$0xff] %vm585, %v1805
      %1830 = vst.msk [vmem:[#allocation7 + $0xc0] sm:$0xff] %vm583, %v1807
      %1831 = vst.msk [vmem:[#allocation7 + $0xc8] sm:$0xff] %vm585, %v1807
      %1832 = vst.msk [vmem:[#allocation7 + $0xe0] sm:$0xff] %vm583, %v1809
      %1833 = vst.msk [vmem:[#allocation7 + $0xe8] sm:$0xff] %vm585, %v1809
      %v1834 = vld [vmem:[%s1705] sm:$0xff]
      %v1835 = vld [vmem:[%s1705 + $0x10] sm:$0xff]
      %v1836 = vld [vmem:[%s1705 + $0x20] sm:$0xff]
      %v1837 = vld [vmem:[%s1705 + $0x30] sm:$0xff]
      %v1838 = vld [vmem:[%s1705 + $0x40] sm:$0xff]
      %v1839 = vld [vmem:[%s1705 + $0x50] sm:$0xff]
      %v1840 = vld [vmem:[%s1705 + $0x60] sm:$0xff]
      %v1841 = vld [vmem:[%s1705 + $0x70] sm:$0xff]
      %1850 = vrot.lane.b32.xlu0 %v1834, 16
      %v1851 = vpop.permute.xlu0 %1850
      %1852 = vrot.lane.b32.xlu0 %v1835, 16
      %v1853 = vpop.permute.xlu0 %1852
      %1854 = vrot.lane.b32.xlu0 %v1836, 16
      %v1855 = vpop.permute.xlu0 %1854
      %1856 = vrot.lane.b32.xlu0 %v1837, 16
      %v1857 = vpop.permute.xlu0 %1856
      %1858 = vrot.lane.b32.xlu0 %v1838, 16
      %v1859 = vpop.permute.xlu0 %1858
      %1860 = vrot.lane.b32.xlu0 %v1839, 16
      %v1861 = vpop.permute.xlu0 %1860
      %1862 = vrot.lane.b32.xlu0 %v1840, 16
      %v1863 = vpop.permute.xlu0 %1862
      %1864 = vrot.lane.b32.xlu0 %v1841, 16
      %v1865 = vpop.permute.xlu0 %1864
      %1874 = vst.msk [vmem:[#allocation7 + $0x8] sm:$0xff] %vm641, %v1851
      %1875 = vst.msk [vmem:[#allocation7 + $0x28] sm:$0xff] %vm641, %v1853
      %1876 = vst.msk [vmem:[#allocation7 + $0x48] sm:$0xff] %vm641, %v1855
      %1877 = vst.msk [vmem:[#allocation7 + $0x68] sm:$0xff] %vm641, %v1857
      %1878 = vst.msk [vmem:[#allocation7 + $0x88] sm:$0xff] %vm641, %v1859
      %1879 = vst.msk [vmem:[#allocation7 + $0xa8] sm:$0xff] %vm641, %v1861
      %1880 = vst.msk [vmem:[#allocation7 + $0xc8] sm:$0xff] %vm641, %v1863
      %1881 = vst.msk [vmem:[#allocation7 + $0xe8] sm:$0xff] %vm641, %v1865
      %v1882 = vld [vmem:[%s1705 + $0x1] sm:$0xff]
      %v1883 = vld [vmem:[%s1705 + $0x11] sm:$0xff]
      %v1884 = vld [vmem:[%s1705 + $0x21] sm:$0xff]
      %v1885 = vld [vmem:[%s1705 + $0x31] sm:$0xff]
      %v1886 = vld [vmem:[%s1705 + $0x41] sm:$0xff]
      %v1887 = vld [vmem:[%s1705 + $0x51] sm:$0xff]
      %v1888 = vld [vmem:[%s1705 + $0x61] sm:$0xff]
      %v1889 = vld [vmem:[%s1705 + $0x71] sm:$0xff]
      %1898 = vrot.lane.b32.xlu0 %v1882, 64
      %v1899 = vpop.permute.xlu0 %1898
      %1900 = vrot.lane.b32.xlu0 %v1883, 64
      %v1901 = vpop.permute.xlu0 %1900
      %1902 = vrot.lane.b32.xlu0 %v1884, 64
      %v1903 = vpop.permute.xlu0 %1902
      %1904 = vrot.lane.b32.xlu0 %v1885, 64
      %v1905 = vpop.permute.xlu0 %1904
      %1906 = vrot.lane.b32.xlu0 %v1886, 64
      %v1907 = vpop.permute.xlu0 %1906
      %1908 = vrot.lane.b32.xlu0 %v1887, 64
      %v1909 = vpop.permute.xlu0 %1908
      %1910 = vrot.lane.b32.xlu0 %v1888, 64
      %v1911 = vpop.permute.xlu0 %1910
      %1912 = vrot.lane.b32.xlu0 %v1889, 64
      %v1913 = vpop.permute.xlu0 %1912
      %1922 = vst.msk [vmem:[#allocation7 + $0x8] sm:$0xff] %vm690, %v1899
      %1923 = vst.msk [vmem:[#allocation7 + $0x28] sm:$0xff] %vm690, %v1901
      %1924 = vst.msk [vmem:[#allocation7 + $0x48] sm:$0xff] %vm690, %v1903
      %1925 = vst.msk [vmem:[#allocation7 + $0x68] sm:$0xff] %vm690, %v1905
      %1926 = vst.msk [vmem:[#allocation7 + $0x88] sm:$0xff] %vm690, %v1907
      %1927 = vst.msk [vmem:[#allocation7 + $0xa8] sm:$0xff] %vm690, %v1909
      %1928 = vst.msk [vmem:[#allocation7 + $0xc8] sm:$0xff] %vm690, %v1911
      %1929 = vst.msk [vmem:[#allocation7 + $0xe8] sm:$0xff] %vm690, %v1913
      %v1930 = vld [vmem:[%s1705 + $0x2] sm:$0xff]
      %v1931 = vld [vmem:[%s1705 + $0x12] sm:$0xff]
      %v1932 = vld [vmem:[%s1705 + $0x22] sm:$0xff]
      %v1933 = vld [vmem:[%s1705 + $0x32] sm:$0xff]
      %v1934 = vld [vmem:[%s1705 + $0x42] sm:$0xff]
      %v1935 = vld [vmem:[%s1705 + $0x52] sm:$0xff]
      %v1936 = vld [vmem:[%s1705 + $0x62] sm:$0xff]
      %v1937 = vld [vmem:[%s1705 + $0x72] sm:$0xff]
      %1946 = vrot.lane.b32.xlu0 %v1930, 112
      %v1947 = vpop.permute.xlu0 %1946
      %1948 = vrot.lane.b32.xlu0 %v1931, 112
      %v1949 = vpop.permute.xlu0 %1948
      %1950 = vrot.lane.b32.xlu0 %v1932, 112
      %v1951 = vpop.permute.xlu0 %1950
      %1952 = vrot.lane.b32.xlu0 %v1933, 112
      %v1953 = vpop.permute.xlu0 %1952
      %1954 = vrot.lane.b32.xlu0 %v1934, 112
      %v1955 = vpop.permute.xlu0 %1954
      %1956 = vrot.lane.b32.xlu0 %v1935, 112
      %v1957 = vpop.permute.xlu0 %1956
      %1958 = vrot.lane.b32.xlu0 %v1936, 112
      %v1959 = vpop.permute.xlu0 %1958
      %1960 = vrot.lane.b32.xlu0 %v1937, 112
      %v1961 = vpop.permute.xlu0 %1960
      %1970 = vst.msk [vmem:[#allocation7 + $0x8] sm:$0xff] %vm739, %v1947
      %1971 = vst.msk [vmem:[#allocation7 + $0x10] sm:$0xff] %vm741, %v1947
      %1972 = vst.msk [vmem:[#allocation7 + $0x28] sm:$0xff] %vm739, %v1949
      %1973 = vst.msk [vmem:[#allocation7 + $0x30] sm:$0xff] %vm741, %v1949
      %1974 = vst.msk [vmem:[#allocation7 + $0x48] sm:$0xff] %vm739, %v1951
      %1975 = vst.msk [vmem:[#allocation7 + $0x50] sm:$0xff] %vm741, %v1951
      %1976 = vst.msk [vmem:[#allocation7 + $0x68] sm:$0xff] %vm739, %v1953
      %1977 = vst.msk [vmem:[#allocation7 + $0x70] sm:$0xff] %vm741, %v1953
      %1978 = vst.msk [vmem:[#allocation7 + $0x88] sm:$0xff] %vm739, %v1955
      %1979 = vst.msk [vmem:[#allocation7 + $0x90] sm:$0xff] %vm741, %v1955
      %1980 = vst.msk [vmem:[#allocation7 + $0xa8] sm:$0xff] %vm739, %v1957
      %1981 = vst.msk [vmem:[#allocation7 + $0xb0] sm:$0xff] %vm741, %v1957
      %1982 = vst.msk [vmem:[#allocation7 + $0xc8] sm:$0xff] %vm739, %v1959
      %1983 = vst.msk [vmem:[#allocation7 + $0xd0] sm:$0xff] %vm741, %v1959
      %1984 = vst.msk [vmem:[#allocation7 + $0xe8] sm:$0xff] %vm739, %v1961
      %1985 = vst.msk [vmem:[#allocation7 + $0xf0] sm:$0xff] %vm741, %v1961
      %s1986 = scalar_lea.vmem [#allocation6], 32
      %v1987 = vld [vmem:[%s1986] sm:$0xff]
      %v1988 = vld [vmem:[%s1986 + $0x10] sm:$0xff]
      %v1989 = vld [vmem:[%s1986 + $0x20] sm:$0xff]
      %v1990 = vld [vmem:[%s1986 + $0x30] sm:$0xff]
      %v1991 = vld [vmem:[%s1986 + $0x40] sm:$0xff]
      %v1992 = vld [vmem:[%s1986 + $0x50] sm:$0xff]
      %v1993 = vld [vmem:[%s1986 + $0x60] sm:$0xff]
      %v1994 = vld [vmem:[%s1986 + $0x70] sm:$0xff]
      %2003 = vrot.lane.b32.xlu0 %v1987, 32
      %v2004 = vpop.permute.xlu0 %2003
      %2005 = vrot.lane.b32.xlu0 %v1988, 32
      %v2006 = vpop.permute.xlu0 %2005
      %2007 = vrot.lane.b32.xlu0 %v1989, 32
      %v2008 = vpop.permute.xlu0 %2007
      %2009 = vrot.lane.b32.xlu0 %v1990, 32
      %v2010 = vpop.permute.xlu0 %2009
      %2011 = vrot.lane.b32.xlu0 %v1991, 32
      %v2012 = vpop.permute.xlu0 %2011
      %2013 = vrot.lane.b32.xlu0 %v1992, 32
      %v2014 = vpop.permute.xlu0 %2013
      %2015 = vrot.lane.b32.xlu0 %v1993, 32
      %v2016 = vpop.permute.xlu0 %2015
      %2017 = vrot.lane.b32.xlu0 %v1994, 32
      %v2018 = vpop.permute.xlu0 %2017
      %2027 = vst.msk [vmem:[#allocation7 + $0x10] sm:$0xff] %vm798, %v2004
      %2028 = vst.msk [vmem:[#allocation7 + $0x30] sm:$0xff] %vm798, %v2006
      %2029 = vst.msk [vmem:[#allocation7 + $0x50] sm:$0xff] %vm798, %v2008
      %2030 = vst.msk [vmem:[#allocation7 + $0x70] sm:$0xff] %vm798, %v2010
      %2031 = vst.msk [vmem:[#allocation7 + $0x90] sm:$0xff] %vm798, %v2012
      %2032 = vst.msk [vmem:[#allocation7 + $0xb0] sm:$0xff] %vm798, %v2014
      %2033 = vst.msk [vmem:[#allocation7 + $0xd0] sm:$0xff] %vm798, %v2016
      %2034 = vst.msk [vmem:[#allocation7 + $0xf0] sm:$0xff] %vm798, %v2018
      %v2035 = vld [vmem:[%s1986 + $0x1] sm:$0xff]
      %v2036 = vld [vmem:[%s1986 + $0x11] sm:$0xff]
      %v2037 = vld [vmem:[%s1986 + $0x21] sm:$0xff]
      %v2038 = vld [vmem:[%s1986 + $0x31] sm:$0xff]
      %v2039 = vld [vmem:[%s1986 + $0x41] sm:$0xff]
      %v2040 = vld [vmem:[%s1986 + $0x51] sm:$0xff]
      %v2041 = vld [vmem:[%s1986 + $0x61] sm:$0xff]
      %v2042 = vld [vmem:[%s1986 + $0x71] sm:$0xff]
      %2051 = vrot.lane.b32.xlu0 %v2035, 80
      %v2052 = vpop.permute.xlu0 %2051
      %2053 = vrot.lane.b32.xlu0 %v2036, 80
      %v2054 = vpop.permute.xlu0 %2053
      %2055 = vrot.lane.b32.xlu0 %v2037, 80
      %v2056 = vpop.permute.xlu0 %2055
      %2057 = vrot.lane.b32.xlu0 %v2038, 80
      %v2058 = vpop.permute.xlu0 %2057
      %2059 = vrot.lane.b32.xlu0 %v2039, 80
      %v2060 = vpop.permute.xlu0 %2059
      %2061 = vrot.lane.b32.xlu0 %v2040, 80
      %v2062 = vpop.permute.xlu0 %2061
      %2063 = vrot.lane.b32.xlu0 %v2041, 80
      %v2064 = vpop.permute.xlu0 %2063
      %2065 = vrot.lane.b32.xlu0 %v2042, 80
      %v2066 = vpop.permute.xlu0 %2065
      %2075 = vst.msk [vmem:[#allocation7 + $0x10] sm:$0xff] %vm847, %v2052
      %2076 = vst.msk [vmem:[#allocation7 + $0x30] sm:$0xff] %vm847, %v2054
      %2077 = vst.msk [vmem:[#allocation7 + $0x50] sm:$0xff] %vm847, %v2056
      %2078 = vst.msk [vmem:[#allocation7 + $0x70] sm:$0xff] %vm847, %v2058
      %2079 = vst.msk [vmem:[#allocation7 + $0x90] sm:$0xff] %vm847, %v2060
      %2080 = vst.msk [vmem:[#allocation7 + $0xb0] sm:$0xff] %vm847, %v2062
      %2081 = vst.msk [vmem:[#allocation7 + $0xd0] sm:$0xff] %vm847, %v2064
      %2082 = vst.msk [vmem:[#allocation7 + $0xf0] sm:$0xff] %vm847, %v2066
      %v2083 = vld [vmem:[%s1986 + $0x2] sm:$0xff]
      %v2084 = vld [vmem:[%s1986 + $0x12] sm:$0xff]
      %v2085 = vld [vmem:[%s1986 + $0x22] sm:$0xff]
      %v2086 = vld [vmem:[%s1986 + $0x32] sm:$0xff]
      %v2087 = vld [vmem:[%s1986 + $0x42] sm:$0xff]
      %v2088 = vld [vmem:[%s1986 + $0x52] sm:$0xff]
      %v2089 = vld [vmem:[%s1986 + $0x62] sm:$0xff]
      %v2090 = vld [vmem:[%s1986 + $0x72] sm:$0xff]
      %2091 = vst.msk [vmem:[#allocation7 + $0x18] sm:$0xff] %vm380, %v2083
      %2092 = vst.msk [vmem:[#allocation7 + $0x38] sm:$0xff] %vm380, %v2084
      %2093 = vst.msk [vmem:[#allocation7 + $0x58] sm:$0xff] %vm380, %v2085
      %2094 = vst.msk [vmem:[#allocation7 + $0x78] sm:$0xff] %vm380, %v2086
      %2095 = vst.msk [vmem:[#allocation7 + $0x98] sm:$0xff] %vm380, %v2087
      %2096 = vst.msk [vmem:[#allocation7 + $0xb8] sm:$0xff] %vm380, %v2088
      %2097 = vst.msk [vmem:[#allocation7 + $0xd8] sm:$0xff] %vm380, %v2089
      %2098 = vst.msk [vmem:[#allocation7 + $0xf8] sm:$0xff] %vm380, %v2090
      %v2099 = vld [vmem:[#allocation7] sm:$0xff]
      %v2100 = vld [vmem:[#allocation7 + $0x8] sm:$0xff]
      %v2101 = vld [vmem:[#allocation7 + $0x10] sm:$0xff]
      %v2102 = vld [vmem:[#allocation7 + $0x18] sm:$0xff]
      %v2103 = vld [vmem:[#allocation7 + $0x20] sm:$0xff]
      %v2104 = vld [vmem:[#allocation7 + $0x28] sm:$0xff]
      %v2105 = vld [vmem:[#allocation7 + $0x30] sm:$0xff]
      %v2106 = vld [vmem:[#allocation7 + $0x38] sm:$0xff]
      %v2107 = vld [vmem:[#allocation7 + $0x40] sm:$0xff]
      %v2108 = vld [vmem:[#allocation7 + $0x48] sm:$0xff]
      %v2109 = vld [vmem:[#allocation7 + $0x50] sm:$0xff]
      %v2110 = vld [vmem:[#allocation7 + $0x58] sm:$0xff]
      %v2111 = vld [vmem:[#allocation7 + $0x60] sm:$0xff]
      %v2112 = vld [vmem:[#allocation7 + $0x68] sm:$0xff]
      %v2113 = vld [vmem:[#allocation7 + $0x70] sm:$0xff]
      %v2114 = vld [vmem:[#allocation7 + $0x78] sm:$0xff]
      %v2115 = vld [vmem:[#allocation7 + $0x80] sm:$0xff]
      %v2116 = vld [vmem:[#allocation7 + $0x88] sm:$0xff]
      %v2117 = vld [vmem:[#allocation7 + $0x90] sm:$0xff]
      %v2118 = vld [vmem:[#allocation7 + $0x98] sm:$0xff]
      %v2119 = vld [vmem:[#allocation7 + $0xa0] sm:$0xff]
      %v2120 = vld [vmem:[#allocation7 + $0xa8] sm:$0xff]
      %v2121 = vld [vmem:[#allocation7 + $0xb0] sm:$0xff]
      %v2122 = vld [vmem:[#allocation7 + $0xb8] sm:$0xff]
      %v2123 = vld [vmem:[#allocation7 + $0xc0] sm:$0xff]
      %v2124 = vld [vmem:[#allocation7 + $0xc8] sm:$0xff]
      %v2125 = vld [vmem:[#allocation7 + $0xd0] sm:$0xff]
      %v2126 = vld [vmem:[#allocation7 + $0xd8] sm:$0xff]
      %v2127 = vld [vmem:[#allocation7 + $0xe0] sm:$0xff]
      %v2128 = vld [vmem:[#allocation7 + $0xe8] sm:$0xff]
      %v2129 = vld [vmem:[#allocation7 + $0xf0] sm:$0xff]
      %v2130 = vld [vmem:[#allocation7 + $0xf8] sm:$0xff]
      %v2131 = vld [vmem:[%s7] sm:$0xff]
      %v2132 = vld [vmem:[%s7 + $0x8] sm:$0xff]
      %v2133 = vld [vmem:[%s7 + $0x10] sm:$0xff]
      %v2134 = vld [vmem:[%s7 + $0x18] sm:$0xff]
      %v2135 = vld [vmem:[%s7 + $0x20] sm:$0xff]
      %v2136 = vld [vmem:[%s7 + $0x28] sm:$0xff]
      %v2137 = vld [vmem:[%s7 + $0x30] sm:$0xff]
      %v2138 = vld [vmem:[%s7 + $0x38] sm:$0xff]
      %v2139 = vld [vmem:[%s7 + $0x40] sm:$0xff]
      %v2140 = vld [vmem:[%s7 + $0x48] sm:$0xff]
      %v2141 = vld [vmem:[%s7 + $0x50] sm:$0xff]
      %v2142 = vld [vmem:[%s7 + $0x58] sm:$0xff]
      %v2143 = vld [vmem:[%s7 + $0x60] sm:$0xff]
      %v2144 = vld [vmem:[%s7 + $0x68] sm:$0xff]
      %v2145 = vld [vmem:[%s7 + $0x70] sm:$0xff]
      %v2146 = vld [vmem:[%s7 + $0x78] sm:$0xff]
      %v2147 = vld [vmem:[%s7 + $0x80] sm:$0xff]
      %v2148 = vld [vmem:[%s7 + $0x88] sm:$0xff]
      %v2149 = vld [vmem:[%s7 + $0x90] sm:$0xff]
      %v2150 = vld [vmem:[%s7 + $0x98] sm:$0xff]
      %v2151 = vld [vmem:[%s7 + $0xa0] sm:$0xff]
      %v2152 = vld [vmem:[%s7 + $0xa8] sm:$0xff]
      %v2153 = vld [vmem:[%s7 + $0xb0] sm:$0xff]
      %v2154 = vld [vmem:[%s7 + $0xb8] sm:$0xff]
      %v2155 = vld [vmem:[%s7 + $0xc0] sm:$0xff]
      %v2156 = vld [vmem:[%s7 + $0xc8] sm:$0xff]
      %v2157 = vld [vmem:[%s7 + $0xd0] sm:$0xff]
      %v2158 = vld [vmem:[%s7 + $0xd8] sm:$0xff]
      %v2159 = vld [vmem:[%s7 + $0xe0] sm:$0xff]
      %v2160 = vld [vmem:[%s7 + $0xe8] sm:$0xff]
      %v2161 = vld [vmem:[%s7 + $0xf0] sm:$0xff]
      %v2162 = vld [vmem:[%s7 + $0xf8] sm:$0xff]
      %v2163 = vld [vmem:[%s7 + $0x100] sm:$0xff]
      %v2164 = vld [vmem:[%s7 + $0x108] sm:$0xff]
      %v2165 = vld [vmem:[%s7 + $0x110] sm:$0xff]
      %v2166 = vld [vmem:[%s7 + $0x118] sm:$0xff]
      %v2167 = vld [vmem:[%s7 + $0x120] sm:$0xff]
      %v2168 = vld [vmem:[%s7 + $0x128] sm:$0xff]
      %v2169 = vld [vmem:[%s7 + $0x130] sm:$0xff]
      %v2170 = vld [vmem:[%s7 + $0x138] sm:$0xff]
      %v2171 = vld [vmem:[%s7 + $0x140] sm:$0xff]
      %v2172 = vld [vmem:[%s7 + $0x148] sm:$0xff]
      %v2173 = vld [vmem:[%s7 + $0x150] sm:$0xff]
      %v2174 = vld [vmem:[%s7 + $0x158] sm:$0xff]
      %v2175 = vld [vmem:[%s7 + $0x160] sm:$0xff]
      %v2176 = vld [vmem:[%s7 + $0x168] sm:$0xff]
      %v2177 = vld [vmem:[%s7 + $0x170] sm:$0xff]
      %v2178 = vld [vmem:[%s7 + $0x178] sm:$0xff]
      %v2179 = vld [vmem:[%s7 + $0x180] sm:$0xff]
      %v2180 = vld [vmem:[%s7 + $0x188] sm:$0xff]
      %v2181 = vld [vmem:[%s7 + $0x190] sm:$0xff]
      %v2182 = vld [vmem:[%s7 + $0x198] sm:$0xff]
      %v2183 = vld [vmem:[%s7 + $0x1a0] sm:$0xff]
      %v2184 = vld [vmem:[%s7 + $0x1a8] sm:$0xff]
      %v2185 = vld [vmem:[%s8] sm:$0xff]
      %v2186 = vld [vmem:[%s8 + $0x8] sm:$0xff]
      %v2187 = vld [vmem:[%s8 + $0x10] sm:$0xff]
      %v2188 = vld [vmem:[%s8 + $0x18] sm:$0xff]
      %v2189 = vld [vmem:[%s8 + $0x20] sm:$0xff]
      %v2190 = vld [vmem:[%s8 + $0x28] sm:$0xff]
      %v2191 = vld [vmem:[%s8 + $0x30] sm:$0xff]
      %v2192 = vld [vmem:[%s8 + $0x38] sm:$0xff]
      %v2193 = vld [vmem:[%s8 + $0x40] sm:$0xff]
      %v2194 = vld [vmem:[%s8 + $0x48] sm:$0xff]
      %v2195 = vld [vmem:[%s8 + $0x50] sm:$0xff]
      %v2196 = vld [vmem:[%s8 + $0x58] sm:$0xff]
      %v2197 = vld [vmem:[%s8 + $0x60] sm:$0xff]
      %v2198 = vld [vmem:[%s8 + $0x68] sm:$0xff]
      %v2199 = vld [vmem:[%s8 + $0x70] sm:$0xff]
      %v2200 = vld [vmem:[%s8 + $0x78] sm:$0xff]
      %v2201 = vld [vmem:[%s8 + $0x80] sm:$0xff]
      %v2202 = vld [vmem:[%s8 + $0x88] sm:$0xff]
      %v2203 = vld [vmem:[%s8 + $0x90] sm:$0xff]
      %v2204 = vld [vmem:[%s8 + $0x98] sm:$0xff]
      %v2205 = vld [vmem:[%s8 + $0xa0] sm:$0xff]
      %v2206 = vld [vmem:[%s8 + $0xa8] sm:$0xff]
      %v2207 = vld [vmem:[%s8 + $0xb0] sm:$0xff]
      %v2208 = vld [vmem:[%s8 + $0xb8] sm:$0xff]
      %v2209 = vld [vmem:[%s8 + $0xc0] sm:$0xff]
      %v2210 = vld [vmem:[%s8 + $0xc8] sm:$0xff]
      %v2211 = vld [vmem:[%s8 + $0xd0] sm:$0xff]
      %v2212 = vld [vmem:[%s8 + $0xd8] sm:$0xff]
      %v2213 = vld [vmem:[%s8 + $0xe0] sm:$0xff]
      %v2214 = vld [vmem:[%s8 + $0xe8] sm:$0xff]
      %v2215 = vld [vmem:[%s8 + $0xf0] sm:$0xff]
      %v2216 = vld [vmem:[%s8 + $0xf8] sm:$0xff]
      %v2217 = vld [vmem:[%s8 + $0x100] sm:$0xff]
      %v2218 = vld [vmem:[%s8 + $0x108] sm:$0xff]
      %v2219 = vld [vmem:[%s8 + $0x110] sm:$0xff]
      %v2220 = vld [vmem:[%s8 + $0x118] sm:$0xff]
      %v2221 = vld [vmem:[%s8 + $0x120] sm:$0xff]
      %v2222 = vld [vmem:[%s8 + $0x128] sm:$0xff]
      %v2223 = vld [vmem:[%s8 + $0x130] sm:$0xff]
      %v2224 = vld [vmem:[%s8 + $0x138] sm:$0xff]
      %v2225 = vld [vmem:[%s8 + $0x140] sm:$0xff]
      %v2226 = vld [vmem:[%s8 + $0x148] sm:$0xff]
      %v2227 = vld [vmem:[%s8 + $0x150] sm:$0xff]
      %v2228 = vld [vmem:[%s8 + $0x158] sm:$0xff]
      %v2229 = vld [vmem:[%s8 + $0x160] sm:$0xff]
      %v2230 = vld [vmem:[%s8 + $0x168] sm:$0xff]
      %v2231 = vld [vmem:[%s8 + $0x170] sm:$0xff]
      %v2232 = vld [vmem:[%s8 + $0x178] sm:$0xff]
      %v2233 = vld [vmem:[%s8 + $0x180] sm:$0xff]
      %v2234 = vld [vmem:[%s8 + $0x188] sm:$0xff]
      %v2235 = vld [vmem:[%s8 + $0x190] sm:$0xff]
      %v2236 = vld [vmem:[%s8 + $0x198] sm:$0xff]
      %v2237 = vld [vmem:[%s8 + $0x1a0] sm:$0xff]
      %v2238 = vld [vmem:[%s8 + $0x1a8] sm:$0xff]
      %v2240 = vsel %vm380, %v1704, 0
      %2242 = vmatpush.msra.mxu0 0.0
      %2243 = vmatpush.msra.mxu0 0.0
      %2244 = vmatpush.msra.mxu0 0.0
      %2245 = vmatpush.msra.mxu0 0.0
      %2246 = vmatpush.msra.mxu0 0.0
      %2247 = vmatpush.msra.mxu0 0.0
      %2248 = vmatpush.msra.mxu0 0.0
      %2249 = vmatpush.msra.mxu0 0.0
      %2250 = vmatpush.msra.mxu0 0.0
      %2251 = vmatpush.msra.mxu0 0.0
      %2252 = vmatpush.msra.mxu0 %v2230
      %2253 = vmatpush.msra.mxu0 %v2221
      %2254 = vmatpush.msra.mxu0 %v2212
      %2255 = vmatpush.msra.mxu0 %v2203
      %2256 = vmatpush.msra.mxu0 %v2194
      %2257 = vmatpush.msra.mxu0 %v2185
      %2258 = vmatmul.f32.gmra.mxu0 %v2240
      %v2259 = vpop.f32.mrf.mxu0
      %v2260 = vadd.f32 0.0, %v2259
      %2261 = vdwg.mxu0
      %2262 = vmatpush.msra.mxu0 0.0
      %2263 = vmatpush.msra.mxu0 0.0
      %2264 = vmatpush.msra.mxu0 0.0
      %2265 = vmatpush.msra.mxu0 0.0
      %2266 = vmatpush.msra.mxu0 0.0
      %2267 = vmatpush.msra.mxu0 0.0
      %2268 = vmatpush.msra.mxu0 0.0
      %2269 = vmatpush.msra.mxu0 0.0
      %2270 = vmatpush.msra.mxu0 0.0
      %2271 = vmatpush.msra.mxu0 0.0
      %2272 = vmatpush.msra.mxu0 %v2231
      %2273 = vmatpush.msra.mxu0 %v2222
      %2274 = vmatpush.msra.mxu0 %v2213
      %2275 = vmatpush.msra.mxu0 %v2204
      %2276 = vmatpush.msra.mxu0 %v2195
      %2277 = vmatpush.msra.mxu0 %v2186
      %2278 = vmatmul.f32.gmra.mxu0 %v2240
      %v2279 = vpop.f32.mrf.mxu0
      %v2280 = vadd.f32 0.0, %v2279
      %2281 = vdwg.mxu0
      %2282 = vmatpush.msra.mxu0 0.0
      %2283 = vmatpush.msra.mxu0 0.0
      %2284 = vmatpush.msra.mxu0 0.0
      %2285 = vmatpush.msra.mxu0 0.0
      %2286 = vmatpush.msra.mxu0 0.0
      %2287 = vmatpush.msra.mxu0 0.0
      %2288 = vmatpush.msra.mxu0 0.0
      %2289 = vmatpush.msra.mxu0 0.0
      %2290 = vmatpush.msra.mxu0 0.0
      %2291 = vmatpush.msra.mxu0 0.0
      %2292 = vmatpush.msra.mxu0 %v2232
      %2293 = vmatpush.msra.mxu0 %v2223
      %2294 = vmatpush.msra.mxu0 %v2214
      %2295 = vmatpush.msra.mxu0 %v2205
      %2296 = vmatpush.msra.mxu0 %v2196
      %2297 = vmatpush.msra.mxu0 %v2187
      %2298 = vmatmul.f32.gmra.mxu0 %v2240
      %v2299 = vpop.f32.mrf.mxu0
      %v2300 = vadd.f32 0.0, %v2299
      %2301 = vdwg.mxu0
      %2302 = vmatpush.msra.mxu0 0.0
      %2303 = vmatpush.msra.mxu0 0.0
      %2304 = vmatpush.msra.mxu0 0.0
      %2305 = vmatpush.msra.mxu0 0.0
      %2306 = vmatpush.msra.mxu0 0.0
      %2307 = vmatpush.msra.mxu0 0.0
      %2308 = vmatpush.msra.mxu0 0.0
      %2309 = vmatpush.msra.mxu0 0.0
      %2310 = vmatpush.msra.mxu0 0.0
      %2311 = vmatpush.msra.mxu0 0.0
      %2312 = vmatpush.msra.mxu0 %v2233
      %2313 = vmatpush.msra.mxu0 %v2224
      %2314 = vmatpush.msra.mxu0 %v2215
      %2315 = vmatpush.msra.mxu0 %v2206
      %2316 = vmatpush.msra.mxu0 %v2197
      %2317 = vmatpush.msra.mxu0 %v2188
      %2318 = vmatmul.f32.gmra.mxu0 %v2240
      %v2319 = vpop.f32.mrf.mxu0
      %v2320 = vadd.f32 0.0, %v2319
      %2321 = vdwg.mxu0
      %2322 = vmatpush.msra.mxu0 0.0
      %2323 = vmatpush.msra.mxu0 0.0
      %2324 = vmatpush.msra.mxu0 0.0
      %2325 = vmatpush.msra.mxu0 0.0
      %2326 = vmatpush.msra.mxu0 0.0
      %2327 = vmatpush.msra.mxu0 0.0
      %2328 = vmatpush.msra.mxu0 0.0
      %2329 = vmatpush.msra.mxu0 0.0
      %2330 = vmatpush.msra.mxu0 0.0
      %2331 = vmatpush.msra.mxu0 0.0
      %2332 = vmatpush.msra.mxu0 %v2234
      %2333 = vmatpush.msra.mxu0 %v2225
      %2334 = vmatpush.msra.mxu0 %v2216
      %2335 = vmatpush.msra.mxu0 %v2207
      %2336 = vmatpush.msra.mxu0 %v2198
      %2337 = vmatpush.msra.mxu0 %v2189
      %2338 = vmatmul.f32.gmra.mxu0 %v2240
      %v2339 = vpop.f32.mrf.mxu0
      %v2340 = vadd.f32 0.0, %v2339
      %2341 = vdwg.mxu0
      %2342 = vmatpush.msra.mxu0 0.0
      %2343 = vmatpush.msra.mxu0 0.0
      %2344 = vmatpush.msra.mxu0 0.0
      %2345 = vmatpush.msra.mxu0 0.0
      %2346 = vmatpush.msra.mxu0 0.0
      %2347 = vmatpush.msra.mxu0 0.0
      %2348 = vmatpush.msra.mxu0 0.0
      %2349 = vmatpush.msra.mxu0 0.0
      %2350 = vmatpush.msra.mxu0 0.0
      %2351 = vmatpush.msra.mxu0 0.0
      %2352 = vmatpush.msra.mxu0 %v2235
      %2353 = vmatpush.msra.mxu0 %v2226
      %2354 = vmatpush.msra.mxu0 %v2217
      %2355 = vmatpush.msra.mxu0 %v2208
      %2356 = vmatpush.msra.mxu0 %v2199
      %2357 = vmatpush.msra.mxu0 %v2190
      %2358 = vmatmul.f32.gmra.mxu0 %v2240
      %v2359 = vpop.f32.mrf.mxu0
      %v2360 = vadd.f32 0.0, %v2359
      %2361 = vdwg.mxu0
      %2362 = vmatpush.msra.mxu0 0.0
      %2363 = vmatpush.msra.mxu0 0.0
      %2364 = vmatpush.msra.mxu0 0.0
      %2365 = vmatpush.msra.mxu0 0.0
      %2366 = vmatpush.msra.mxu0 0.0
      %2367 = vmatpush.msra.mxu0 0.0
      %2368 = vmatpush.msra.mxu0 0.0
      %2369 = vmatpush.msra.mxu0 0.0
      %2370 = vmatpush.msra.mxu0 0.0
      %2371 = vmatpush.msra.mxu0 0.0
      %2372 = vmatpush.msra.mxu0 %v2236
      %2373 = vmatpush.msra.mxu0 %v2227
      %2374 = vmatpush.msra.mxu0 %v2218
      %2375 = vmatpush.msra.mxu0 %v2209
      %2376 = vmatpush.msra.mxu0 %v2200
      %2377 = vmatpush.msra.mxu0 %v2191
      %2378 = vmatmul.f32.gmra.mxu0 %v2240
      %v2379 = vpop.f32.mrf.mxu0
      %v2380 = vadd.f32 0.0, %v2379
      %2381 = vdwg.mxu0
      %2382 = vmatpush.msra.mxu0 0.0
      %2383 = vmatpush.msra.mxu0 0.0
      %2384 = vmatpush.msra.mxu0 0.0
      %2385 = vmatpush.msra.mxu0 0.0
      %2386 = vmatpush.msra.mxu0 0.0
      %2387 = vmatpush.msra.mxu0 0.0
      %2388 = vmatpush.msra.mxu0 0.0
      %2389 = vmatpush.msra.mxu0 0.0
      %2390 = vmatpush.msra.mxu0 0.0
      %2391 = vmatpush.msra.mxu0 0.0
      %2392 = vmatpush.msra.mxu0 %v2237
      %2393 = vmatpush.msra.mxu0 %v2228
      %2394 = vmatpush.msra.mxu0 %v2219
      %2395 = vmatpush.msra.mxu0 %v2210
      %2396 = vmatpush.msra.mxu0 %v2201
      %2397 = vmatpush.msra.mxu0 %v2192
      %2398 = vmatmul.f32.gmra.mxu0 %v2240
      %v2399 = vpop.f32.mrf.mxu0
      %v2400 = vadd.f32 0.0, %v2399
      %2401 = vdwg.mxu0
      %2402 = vmatpush.msra.mxu0 0.0
      %2403 = vmatpush.msra.mxu0 0.0
      %2404 = vmatpush.msra.mxu0 0.0
      %2405 = vmatpush.msra.mxu0 0.0
      %2406 = vmatpush.msra.mxu0 0.0
      %2407 = vmatpush.msra.mxu0 0.0
      %2408 = vmatpush.msra.mxu0 0.0
      %2409 = vmatpush.msra.mxu0 0.0
      %2410 = vmatpush.msra.mxu0 0.0
      %2411 = vmatpush.msra.mxu0 0.0
      %2412 = vmatpush.msra.mxu0 %v2238
      %2413 = vmatpush.msra.mxu0 %v2229
      %2414 = vmatpush.msra.mxu0 %v2220
      %2415 = vmatpush.msra.mxu0 %v2211
      %2416 = vmatpush.msra.mxu0 %v2202
      %2417 = vmatpush.msra.mxu0 %v2193
      %2418 = vmatmul.f32.gmra.mxu0 %v2240
      %v2419 = vpop.f32.mrf.mxu0
      %v2420 = vadd.f32 0.0, %v2419
      %2421 = vdwg.mxu0
      %v2422 = vld [vmem:[%s0] sm:$0xff]
      %v2423 = vld [vmem:[%s0 + $0x8] sm:$0xff]
      %v2424 = vld [vmem:[%s0 + $0x10] sm:$0xff]
      %v2425 = vld [vmem:[%s0 + $0x18] sm:$0xff]
      %v2426 = vld [vmem:[%s0 + $0x20] sm:$0xff]
      %v2427 = vld [vmem:[%s0 + $0x28] sm:$0xff]
      %v2428 = vld [vmem:[%s0 + $0x30] sm:$0xff]
      %v2429 = vld [vmem:[%s0 + $0x38] sm:$0xff]
      %2431 = vset.pattern.permute.xlu0 0
      %2432 = vperm.xlu0 %2431, %v2422
      %v2433 = vpop.permute.xlu0 %2432
      %2436 = vset.pattern.permute.xlu0 0
      %2437 = vperm.xlu0 %2436, %v2423
      %v2438 = vpop.permute.xlu0 %2437
      %2441 = vset.pattern.permute.xlu0 0
      %2442 = vperm.xlu0 %2441, %v2424
      %v2443 = vpop.permute.xlu0 %2442
      %2446 = vset.pattern.permute.xlu0 0
      %2447 = vperm.xlu0 %2446, %v2425
      %v2448 = vpop.permute.xlu0 %2447
      %2451 = vset.pattern.permute.xlu0 0
      %2452 = vperm.xlu0 %2451, %v2426
      %v2453 = vpop.permute.xlu0 %2452
      %2456 = vset.pattern.permute.xlu0 0
      %2457 = vperm.xlu0 %2456, %v2427
      %v2458 = vpop.permute.xlu0 %2457
      %2461 = vset.pattern.permute.xlu0 0
      %2462 = vperm.xlu0 %2461, %v2428
      %v2463 = vpop.permute.xlu0 %2462
      %2466 = vset.pattern.permute.xlu0 0
      %2467 = vperm.xlu0 %2466, %v2429
      %v2468 = vpop.permute.xlu0 %2467
      %v2470 = vperm.slane %v2260, 0
      %v2471 = vmul.f32 %v2433, %v2470
      %v2472 = vmul.f32 %v2438, %v2470
      %v2473 = vmul.f32 %v2443, %v2470
      %v2474 = vmul.f32 %v2448, %v2470
      %v2475 = vmul.f32 %v2453, %v2470
      %v2476 = vmul.f32 %v2458, %v2470
      %v2477 = vmul.f32 %v2463, %v2470
      %v2478 = vmul.f32 %v2468, %v2470
      %v2480 = vsel %vm380, %v2102, 0
      %v2483 = vsel %vm380, %v2106, 0
      %v2486 = vsel %vm380, %v2110, 0
      %v2489 = vsel %vm380, %v2114, 0
      %v2492 = vsel %vm380, %v2118, 0
      %v2495 = vsel %vm380, %v2122, 0
      %v2498 = vsel %vm380, %v2126, 0
      %v2501 = vsel %vm380, %v2130, 0
      %2503 = vmatpush.msra.mxu0 %v2146
      %2504 = vmatpush.msra.mxu0 %v2145
      %2505 = vmatpush.msra.mxu0 %v2144
      %2506 = vmatpush.msra.mxu0 %v2143
      %2507 = vmatpush.msra.mxu0 %v2142
      %2508 = vmatpush.msra.mxu0 %v2141
      %2509 = vmatpush.msra.mxu0 %v2140
      %2510 = vmatpush.msra.mxu0 %v2139
      %2511 = vmatpush.msra.mxu0 %v2138
      %2512 = vmatpush.msra.mxu0 %v2137
      %2513 = vmatpush.msra.mxu0 %v2136
      %2514 = vmatpush.msra.mxu0 %v2135
      %2515 = vmatpush.msra.mxu0 %v2134
      %2516 = vmatpush.msra.mxu0 %v2133
      %2517 = vmatpush.msra.mxu0 %v2132
      %2518 = vmatpush.msra.mxu0 %v2131
      %2519 = vmatmul.f32.gmra.mxu0 %v2099
      %v2520 = vpop.f32.mrf.mxu0
      %v2521 = vadd.f32 %v2471, %v2520
      %2522 = vmatmul.f32.gmra.mxu0 %v2103
      %v2523 = vpop.f32.mrf.mxu0
      %v2524 = vadd.f32 %v2472, %v2523
      %2525 = vmatmul.f32.gmra.mxu0 %v2107
      %v2526 = vpop.f32.mrf.mxu0
      %v2527 = vadd.f32 %v2473, %v2526
      %2528 = vmatmul.f32.gmra.mxu0 %v2111
      %v2529 = vpop.f32.mrf.mxu0
      %v2530 = vadd.f32 %v2474, %v2529
      %2531 = vmatmul.f32.gmra.mxu0 %v2115
      %v2532 = vpop.f32.mrf.mxu0
      %v2533 = vadd.f32 %v2475, %v2532
      %2534 = vmatmul.f32.gmra.mxu0 %v2119
      %v2535 = vpop.f32.mrf.mxu0
      %v2536 = vadd.f32 %v2476, %v2535
      %2537 = vmatmul.f32.gmra.mxu0 %v2123
      %v2538 = vpop.f32.mrf.mxu0
      %v2539 = vadd.f32 %v2477, %v2538
      %2540 = vmatmul.f32.gmra.mxu0 %v2127
      %v2541 = vpop.f32.mrf.mxu0
      %v2542 = vadd.f32 %v2478, %v2541
      %2543 = vdwg.mxu0
      %2544 = vmatpush.msra.mxu0 %v2162
      %2545 = vmatpush.msra.mxu0 %v2161
      %2546 = vmatpush.msra.mxu0 %v2160
      %2547 = vmatpush.msra.mxu0 %v2159
      %2548 = vmatpush.msra.mxu0 %v2158
      %2549 = vmatpush.msra.mxu0 %v2157
      %2550 = vmatpush.msra.mxu0 %v2156
      %2551 = vmatpush.msra.mxu0 %v2155
      %2552 = vmatpush.msra.mxu0 %v2154
      %2553 = vmatpush.msra.mxu0 %v2153
      %2554 = vmatpush.msra.mxu0 %v2152
      %2555 = vmatpush.msra.mxu0 %v2151
      %2556 = vmatpush.msra.mxu0 %v2150
      %2557 = vmatpush.msra.mxu0 %v2149
      %2558 = vmatpush.msra.mxu0 %v2148
      %2559 = vmatpush.msra.mxu0 %v2147
      %2560 = vmatmul.f32.gmra.mxu0 %v2100
      %v2561 = vpop.f32.mrf.mxu0
      %v2562 = vadd.f32 %v2521, %v2561
      %2563 = vmatmul.f32.gmra.mxu0 %v2104
      %v2564 = vpop.f32.mrf.mxu0
      %v2565 = vadd.f32 %v2524, %v2564
      %2566 = vmatmul.f32.gmra.mxu0 %v2108
      %v2567 = vpop.f32.mrf.mxu0
      %v2568 = vadd.f32 %v2527, %v2567
      %2569 = vmatmul.f32.gmra.mxu0 %v2112
      %v2570 = vpop.f32.mrf.mxu0
      %v2571 = vadd.f32 %v2530, %v2570
      %2572 = vmatmul.f32.gmra.mxu0 %v2116
      %v2573 = vpop.f32.mrf.mxu0
      %v2574 = vadd.f32 %v2533, %v2573
      %2575 = vmatmul.f32.gmra.mxu0 %v2120
      %v2576 = vpop.f32.mrf.mxu0
      %v2577 = vadd.f32 %v2536, %v2576
      %2578 = vmatmul.f32.gmra.mxu0 %v2124
      %v2579 = vpop.f32.mrf.mxu0
      %v2580 = vadd.f32 %v2539, %v2579
      %2581 = vmatmul.f32.gmra.mxu0 %v2128
      %v2582 = vpop.f32.mrf.mxu0
      %v2583 = vadd.f32 %v2542, %v2582
      %2584 = vdwg.mxu0
      %2585 = vmatpush.msra.mxu0 %v2178
      %2586 = vmatpush.msra.mxu0 %v2177
      %2587 = vmatpush.msra.mxu0 %v2176
      %2588 = vmatpush.msra.mxu0 %v2175
      %2589 = vmatpush.msra.mxu0 %v2174
      %2590 = vmatpush.msra.mxu0 %v2173
      %2591 = vmatpush.msra.mxu0 %v2172
      %2592 = vmatpush.msra.mxu0 %v2171
      %2593 = vmatpush.msra.mxu0 %v2170
      %2594 = vmatpush.msra.mxu0 %v2169
      %2595 = vmatpush.msra.mxu0 %v2168
      %2596 = vmatpush.msra.mxu0 %v2167
      %2597 = vmatpush.msra.mxu0 %v2166
      %2598 = vmatpush.msra.mxu0 %v2165
      %2599 = vmatpush.msra.mxu0 %v2164
      %2600 = vmatpush.msra.mxu0 %v2163
      %2601 = vmatmul.f32.gmra.mxu0 %v2101
      %v2602 = vpop.f32.mrf.mxu0
      %v2603 = vadd.f32 %v2562, %v2602
      %2604 = vmatmul.f32.gmra.mxu0 %v2105
      %v2605 = vpop.f32.mrf.mxu0
      %v2606 = vadd.f32 %v2565, %v2605
      %2607 = vmatmul.f32.gmra.mxu0 %v2109
      %v2608 = vpop.f32.mrf.mxu0
      %v2609 = vadd.f32 %v2568, %v2608
      %2610 = vmatmul.f32.gmra.mxu0 %v2113
      %v2611 = vpop.f32.mrf.mxu0
      %v2612 = vadd.f32 %v2571, %v2611
      %2613 = vmatmul.f32.gmra.mxu0 %v2117
      %v2614 = vpop.f32.mrf.mxu0
      %v2615 = vadd.f32 %v2574, %v2614
      %2616 = vmatmul.f32.gmra.mxu0 %v2121
      %v2617 = vpop.f32.mrf.mxu0
      %v2618 = vadd.f32 %v2577, %v2617
      %2619 = vmatmul.f32.gmra.mxu0 %v2125
      %v2620 = vpop.f32.mrf.mxu0
      %v2621 = vadd.f32 %v2580, %v2620
      %2622 = vmatmul.f32.gmra.mxu0 %v2129
      %v2623 = vpop.f32.mrf.mxu0
      %v2624 = vadd.f32 %v2583, %v2623
      %2625 = vdwg.mxu0
      %2626 = vmatpush.msra.mxu0 0.0
      %2627 = vmatpush.msra.mxu0 0.0
      %2628 = vmatpush.msra.mxu0 0.0
      %2629 = vmatpush.msra.mxu0 0.0
      %2630 = vmatpush.msra.mxu0 0.0
      %2631 = vmatpush.msra.mxu0 0.0
      %2632 = vmatpush.msra.mxu0 0.0
      %2633 = vmatpush.msra.mxu0 0.0
      %2634 = vmatpush.msra.mxu0 0.0
      %2635 = vmatpush.msra.mxu0 0.0
      %2636 = vmatpush.msra.mxu0 %v2184
      %2637 = vmatpush.msra.mxu0 %v2183
      %2638 = vmatpush.msra.mxu0 %v2182
      %2639 = vmatpush.msra.mxu0 %v2181
      %2640 = vmatpush.msra.mxu0 %v2180
      %2641 = vmatpush.msra.mxu0 %v2179
      %2642 = vmatmul.f32.gmra.mxu0 %v2480
      %v2643 = vpop.f32.mrf.mxu0
      %v2644 = vadd.f32 %v2603, %v2643
      %2645 = vmatmul.f32.gmra.mxu0 %v2483
      %v2646 = vpop.f32.mrf.mxu0
      %v2647 = vadd.f32 %v2606, %v2646
      %2648 = vmatmul.f32.gmra.mxu0 %v2486
      %v2649 = vpop.f32.mrf.mxu0
      %v2650 = vadd.f32 %v2609, %v2649
      %2651 = vmatmul.f32.gmra.mxu0 %v2489
      %v2652 = vpop.f32.mrf.mxu0
      %v2653 = vadd.f32 %v2612, %v2652
      %2654 = vmatmul.f32.gmra.mxu0 %v2492
      %v2655 = vpop.f32.mrf.mxu0
      %v2656 = vadd.f32 %v2615, %v2655
      %2657 = vmatmul.f32.gmra.mxu0 %v2495
      %v2658 = vpop.f32.mrf.mxu0
      %v2659 = vadd.f32 %v2618, %v2658
      %2660 = vmatmul.f32.gmra.mxu0 %v2498
      %v2661 = vpop.f32.mrf.mxu0
      %v2662 = vadd.f32 %v2621, %v2661
      %2663 = vmatmul.f32.gmra.mxu0 %v2501
      %v2664 = vpop.f32.mrf.mxu0
      %v2665 = vadd.f32 %v2624, %v2664
      %2666 = vdwg.mxu0
      %2667 = vset.pattern.permute.xlu0 1
      %2668 = vperm.xlu0 %2667, %v2422
      %v2669 = vpop.permute.xlu0 %2668
      %2671 = vset.pattern.permute.xlu0 1
      %2672 = vperm.xlu0 %2671, %v2423
      %v2673 = vpop.permute.xlu0 %2672
      %2675 = vset.pattern.permute.xlu0 1
      %2676 = vperm.xlu0 %2675, %v2424
      %v2677 = vpop.permute.xlu0 %2676
      %2679 = vset.pattern.permute.xlu0 1
      %2680 = vperm.xlu0 %2679, %v2425
      %v2681 = vpop.permute.xlu0 %2680
      %2683 = vset.pattern.permute.xlu0 1
      %2684 = vperm.xlu0 %2683, %v2426
      %v2685 = vpop.permute.xlu0 %2684
      %2687 = vset.pattern.permute.xlu0 1
      %2688 = vperm.xlu0 %2687, %v2427
      %v2689 = vpop.permute.xlu0 %2688
      %2691 = vset.pattern.permute.xlu0 1
      %2692 = vperm.xlu0 %2691, %v2428
      %v2693 = vpop.permute.xlu0 %2692
      %2695 = vset.pattern.permute.xlu0 1
      %2696 = vperm.xlu0 %2695, %v2429
      %v2697 = vpop.permute.xlu0 %2696
      %v2699 = vperm.slane %v2280, 0
      %v2700 = vmul.f32 %v2669, %v2699
      %v2701 = vmul.f32 %v2673, %v2699
      %v2702 = vmul.f32 %v2677, %v2699
      %v2703 = vmul.f32 %v2681, %v2699
      %v2704 = vmul.f32 %v2685, %v2699
      %v2705 = vmul.f32 %v2689, %v2699
      %v2706 = vmul.f32 %v2693, %v2699
      %v2707 = vmul.f32 %v2697, %v2699
      %v2708 = vadd.f32 %v2644, %v2700
      %v2709 = vadd.f32 %v2647, %v2701
      %v2710 = vadd.f32 %v2650, %v2702
      %v2711 = vadd.f32 %v2653, %v2703
      %v2712 = vadd.f32 %v2656, %v2704
      %v2713 = vadd.f32 %v2659, %v2705
      %v2714 = vadd.f32 %v2662, %v2706
      %v2715 = vadd.f32 %v2665, %v2707
      %2716 = vset.pattern.permute.xlu0 2
      %2717 = vperm.xlu0 %2716, %v2422
      %v2718 = vpop.permute.xlu0 %2717
      %2720 = vset.pattern.permute.xlu0 2
      %2721 = vperm.xlu0 %2720, %v2423
      %v2722 = vpop.permute.xlu0 %2721
      %2724 = vset.pattern.permute.xlu0 2
      %2725 = vperm.xlu0 %2724, %v2424
      %v2726 = vpop.permute.xlu0 %2725
      %2728 = vset.pattern.permute.xlu0 2
      %2729 = vperm.xlu0 %2728, %v2425
      %v2730 = vpop.permute.xlu0 %2729
      %2732 = vset.pattern.permute.xlu0 2
      %2733 = vperm.xlu0 %2732, %v2426
      %v2734 = vpop.permute.xlu0 %2733
      %2736 = vset.pattern.permute.xlu0 2
      %2737 = vperm.xlu0 %2736, %v2427
      %v2738 = vpop.permute.xlu0 %2737
      %2740 = vset.pattern.permute.xlu0 2
      %2741 = vperm.xlu0 %2740, %v2428
      %v2742 = vpop.permute.xlu0 %2741
      %2744 = vset.pattern.permute.xlu0 2
      %2745 = vperm.xlu0 %2744, %v2429
      %v2746 = vpop.permute.xlu0 %2745
      %v2748 = vperm.slane %v2300, 0
      %v2749 = vmul.f32 %v2718, %v2748
      %v2750 = vmul.f32 %v2722, %v2748
      %v2751 = vmul.f32 %v2726, %v2748
      %v2752 = vmul.f32 %v2730, %v2748
      %v2753 = vmul.f32 %v2734, %v2748
      %v2754 = vmul.f32 %v2738, %v2748
      %v2755 = vmul.f32 %v2742, %v2748
      %v2756 = vmul.f32 %v2746, %v2748
      %v2757 = vadd.f32 %v2708, %v2749
      %v2758 = vadd.f32 %v2709, %v2750
      %v2759 = vadd.f32 %v2710, %v2751
      %v2760 = vadd.f32 %v2711, %v2752
      %v2761 = vadd.f32 %v2712, %v2753
      %v2762 = vadd.f32 %v2713, %v2754
      %v2763 = vadd.f32 %v2714, %v2755
      %v2764 = vadd.f32 %v2715, %v2756
      %2765 = vset.pattern.permute.xlu0 3
      %2766 = vperm.xlu0 %2765, %v2422
      %v2767 = vpop.permute.xlu0 %2766
      %2769 = vset.pattern.permute.xlu0 3
      %2770 = vperm.xlu0 %2769, %v2423
      %v2771 = vpop.permute.xlu0 %2770
      %2773 = vset.pattern.permute.xlu0 3
      %2774 = vperm.xlu0 %2773, %v2424
      %v2775 = vpop.permute.xlu0 %2774
      %2777 = vset.pattern.permute.xlu0 3
      %2778 = vperm.xlu0 %2777, %v2425
      %v2779 = vpop.permute.xlu0 %2778
      %2781 = vset.pattern.permute.xlu0 3
      %2782 = vperm.xlu0 %2781, %v2426
      %v2783 = vpop.permute.xlu0 %2782
      %2785 = vset.pattern.permute.xlu0 3
      %2786 = vperm.xlu0 %2785, %v2427
      %v2787 = vpop.permute.xlu0 %2786
      %2789 = vset.pattern.permute.xlu0 3
      %2790 = vperm.xlu0 %2789, %v2428
      %v2791 = vpop.permute.xlu0 %2790
      %2793 = vset.pattern.permute.xlu0 3
      %2794 = vperm.xlu0 %2793, %v2429
      %v2795 = vpop.permute.xlu0 %2794
      %v2797 = vperm.slane %v2320, 0
      %v2798 = vmul.f32 %v2767, %v2797
      %v2799 = vmul.f32 %v2771, %v2797
      %v2800 = vmul.f32 %v2775, %v2797
      %v2801 = vmul.f32 %v2779, %v2797
      %v2802 = vmul.f32 %v2783, %v2797
      %v2803 = vmul.f32 %v2787, %v2797
      %v2804 = vmul.f32 %v2791, %v2797
      %v2805 = vmul.f32 %v2795, %v2797
      %v2806 = vadd.f32 %v2757, %v2798
      %v2807 = vadd.f32 %v2758, %v2799
      %v2808 = vadd.f32 %v2759, %v2800
      %v2809 = vadd.f32 %v2760, %v2801
      %v2810 = vadd.f32 %v2761, %v2802
      %v2811 = vadd.f32 %v2762, %v2803
      %v2812 = vadd.f32 %v2763, %v2804
      %v2813 = vadd.f32 %v2764, %v2805
      %2814 = vset.pattern.permute.xlu0 4
      %2815 = vperm.xlu0 %2814, %v2422
      %v2816 = vpop.permute.xlu0 %2815
      %2818 = vset.pattern.permute.xlu0 4
      %2819 = vperm.xlu0 %2818, %v2423
      %v2820 = vpop.permute.xlu0 %2819
      %2822 = vset.pattern.permute.xlu0 4
      %2823 = vperm.xlu0 %2822, %v2424
      %v2824 = vpop.permute.xlu0 %2823
      %2826 = vset.pattern.permute.xlu0 4
      %2827 = vperm.xlu0 %2826, %v2425
      %v2828 = vpop.permute.xlu0 %2827
      %2830 = vset.pattern.permute.xlu0 4
      %2831 = vperm.xlu0 %2830, %v2426
      %v2832 = vpop.permute.xlu0 %2831
      %2834 = vset.pattern.permute.xlu0 4
      %2835 = vperm.xlu0 %2834, %v2427
      %v2836 = vpop.permute.xlu0 %2835
      %2838 = vset.pattern.permute.xlu0 4
      %2839 = vperm.xlu0 %2838, %v2428
      %v2840 = vpop.permute.xlu0 %2839
      %2842 = vset.pattern.permute.xlu0 4
      %2843 = vperm.xlu0 %2842, %v2429
      %v2844 = vpop.permute.xlu0 %2843
      %v2846 = vperm.slane %v2340, 0
      %v2847 = vmul.f32 %v2816, %v2846
      %v2848 = vmul.f32 %v2820, %v2846
      %v2849 = vmul.f32 %v2824, %v2846
      %v2850 = vmul.f32 %v2828, %v2846
      %v2851 = vmul.f32 %v2832, %v2846
      %v2852 = vmul.f32 %v2836, %v2846
      %v2853 = vmul.f32 %v2840, %v2846
      %v2854 = vmul.f32 %v2844, %v2846
      %v2855 = vadd.f32 %v2806, %v2847
      %v2856 = vadd.f32 %v2807, %v2848
      %v2857 = vadd.f32 %v2808, %v2849
      %v2858 = vadd.f32 %v2809, %v2850
      %v2859 = vadd.f32 %v2810, %v2851
      %v2860 = vadd.f32 %v2811, %v2852
      %v2861 = vadd.f32 %v2812, %v2853
      %v2862 = vadd.f32 %v2813, %v2854
      %2863 = vset.pattern.permute.xlu0 5
      %2864 = vperm.xlu0 %2863, %v2422
      %v2865 = vpop.permute.xlu0 %2864
      %2867 = vset.pattern.permute.xlu0 5
      %2868 = vperm.xlu0 %2867, %v2423
      %v2869 = vpop.permute.xlu0 %2868
      %2871 = vset.pattern.permute.xlu0 5
      %2872 = vperm.xlu0 %2871, %v2424
      %v2873 = vpop.permute.xlu0 %2872
      %2875 = vset.pattern.permute.xlu0 5
      %2876 = vperm.xlu0 %2875, %v2425
      %v2877 = vpop.permute.xlu0 %2876
      %2879 = vset.pattern.permute.xlu0 5
      %2880 = vperm.xlu0 %2879, %v2426
      %v2881 = vpop.permute.xlu0 %2880
      %2883 = vset.pattern.permute.xlu0 5
      %2884 = vperm.xlu0 %2883, %v2427
      %v2885 = vpop.permute.xlu0 %2884
      %2887 = vset.pattern.permute.xlu0 5
      %2888 = vperm.xlu0 %2887, %v2428
      %v2889 = vpop.permute.xlu0 %2888
      %2891 = vset.pattern.permute.xlu0 5
      %2892 = vperm.xlu0 %2891, %v2429
      %v2893 = vpop.permute.xlu0 %2892
      %v2895 = vperm.slane %v2360, 0
      %v2896 = vmul.f32 %v2865, %v2895
      %v2897 = vmul.f32 %v2869, %v2895
      %v2898 = vmul.f32 %v2873, %v2895
      %v2899 = vmul.f32 %v2877, %v2895
      %v2900 = vmul.f32 %v2881, %v2895
      %v2901 = vmul.f32 %v2885, %v2895
      %v2902 = vmul.f32 %v2889, %v2895
      %v2903 = vmul.f32 %v2893, %v2895
      %v2904 = vadd.f32 %v2855, %v2896
      %v2905 = vadd.f32 %v2856, %v2897
      %v2906 = vadd.f32 %v2857, %v2898
      %v2907 = vadd.f32 %v2858, %v2899
      %v2908 = vadd.f32 %v2859, %v2900
      %v2909 = vadd.f32 %v2860, %v2901
      %v2910 = vadd.f32 %v2861, %v2902
      %v2911 = vadd.f32 %v2862, %v2903
      %2912 = vset.pattern.permute.xlu0 6
      %2913 = vperm.xlu0 %2912, %v2422
      %v2914 = vpop.permute.xlu0 %2913
      %2916 = vset.pattern.permute.xlu0 6
      %2917 = vperm.xlu0 %2916, %v2423
      %v2918 = vpop.permute.xlu0 %2917
      %2920 = vset.pattern.permute.xlu0 6
      %2921 = vperm.xlu0 %2920, %v2424
      %v2922 = vpop.permute.xlu0 %2921
      %2924 = vset.pattern.permute.xlu0 6
      %2925 = vperm.xlu0 %2924, %v2425
      %v2926 = vpop.permute.xlu0 %2925
      %2928 = vset.pattern.permute.xlu0 6
      %2929 = vperm.xlu0 %2928, %v2426
      %v2930 = vpop.permute.xlu0 %2929
      %2932 = vset.pattern.permute.xlu0 6
      %2933 = vperm.xlu0 %2932, %v2427
      %v2934 = vpop.permute.xlu0 %2933
      %2936 = vset.pattern.permute.xlu0 6
      %2937 = vperm.xlu0 %2936, %v2428
      %v2938 = vpop.permute.xlu0 %2937
      %2940 = vset.pattern.permute.xlu0 6
      %2941 = vperm.xlu0 %2940, %v2429
      %v2942 = vpop.permute.xlu0 %2941
      %v2944 = vperm.slane %v2380, 0
      %v2945 = vmul.f32 %v2914, %v2944
      %v2946 = vmul.f32 %v2918, %v2944
      %v2947 = vmul.f32 %v2922, %v2944
      %v2948 = vmul.f32 %v2926, %v2944
      %v2949 = vmul.f32 %v2930, %v2944
      %v2950 = vmul.f32 %v2934, %v2944
      %v2951 = vmul.f32 %v2938, %v2944
      %v2952 = vmul.f32 %v2942, %v2944
      %v2953 = vadd.f32 %v2904, %v2945
      %v2954 = vadd.f32 %v2905, %v2946
      %v2955 = vadd.f32 %v2906, %v2947
      %v2956 = vadd.f32 %v2907, %v2948
      %v2957 = vadd.f32 %v2908, %v2949
      %v2958 = vadd.f32 %v2909, %v2950
      %v2959 = vadd.f32 %v2910, %v2951
      %v2960 = vadd.f32 %v2911, %v2952
      %2961 = vset.pattern.permute.xlu0 7
      %2962 = vperm.xlu0 %2961, %v2422
      %v2963 = vpop.permute.xlu0 %2962
      %2965 = vset.pattern.permute.xlu0 7
      %2966 = vperm.xlu0 %2965, %v2423
      %v2967 = vpop.permute.xlu0 %2966
      %2969 = vset.pattern.permute.xlu0 7
      %2970 = vperm.xlu0 %2969, %v2424
      %v2971 = vpop.permute.xlu0 %2970
      %2973 = vset.pattern.permute.xlu0 7
      %2974 = vperm.xlu0 %2973, %v2425
      %v2975 = vpop.permute.xlu0 %2974
      %2977 = vset.pattern.permute.xlu0 7
      %2978 = vperm.xlu0 %2977, %v2426
      %v2979 = vpop.permute.xlu0 %2978
      %2981 = vset.pattern.permute.xlu0 7
      %2982 = vperm.xlu0 %2981, %v2427
      %v2983 = vpop.permute.xlu0 %2982
      %2985 = vset.pattern.permute.xlu0 7
      %2986 = vperm.xlu0 %2985, %v2428
      %v2987 = vpop.permute.xlu0 %2986
      %2989 = vset.pattern.permute.xlu0 7
      %2990 = vperm.xlu0 %2989, %v2429
      %v2991 = vpop.permute.xlu0 %2990
      %v2993 = vperm.slane %v2400, 0
      %v2994 = vmul.f32 %v2963, %v2993
      %v2995 = vmul.f32 %v2967, %v2993
      %v2996 = vmul.f32 %v2971, %v2993
      %v2997 = vmul.f32 %v2975, %v2993
      %v2998 = vmul.f32 %v2979, %v2993
      %v2999 = vmul.f32 %v2983, %v2993
      %v3000 = vmul.f32 %v2987, %v2993
      %v3001 = vmul.f32 %v2991, %v2993
      %v3002 = vadd.f32 %v2953, %v2994
      %v3003 = vadd.f32 %v2954, %v2995
      %v3004 = vadd.f32 %v2955, %v2996
      %v3005 = vadd.f32 %v2956, %v2997
      %v3006 = vadd.f32 %v2957, %v2998
      %v3007 = vadd.f32 %v2958, %v2999
      %v3008 = vadd.f32 %v2959, %v3000
      %v3009 = vadd.f32 %v2960, %v3001
      %3010 = vset.pattern.permute.xlu0 8
      %3011 = vperm.xlu0 %3010, %v2422
      %v3012 = vpop.permute.xlu0 %3011
      %3014 = vset.pattern.permute.xlu0 8
      %3015 = vperm.xlu0 %3014, %v2423
      %v3016 = vpop.permute.xlu0 %3015
      %3018 = vset.pattern.permute.xlu0 8
      %3019 = vperm.xlu0 %3018, %v2424
      %v3020 = vpop.permute.xlu0 %3019
      %3022 = vset.pattern.permute.xlu0 8
      %3023 = vperm.xlu0 %3022, %v2425
      %v3024 = vpop.permute.xlu0 %3023
      %3026 = vset.pattern.permute.xlu0 8
      %3027 = vperm.xlu0 %3026, %v2426
      %v3028 = vpop.permute.xlu0 %3027
      %3030 = vset.pattern.permute.xlu0 8
      %3031 = vperm.xlu0 %3030, %v2427
      %v3032 = vpop.permute.xlu0 %3031
      %3034 = vset.pattern.permute.xlu0 8
      %3035 = vperm.xlu0 %3034, %v2428
      %v3036 = vpop.permute.xlu0 %3035
      %3038 = vset.pattern.permute.xlu0 8
      %3039 = vperm.xlu0 %3038, %v2429
      %v3040 = vpop.permute.xlu0 %3039
      %v3042 = vperm.slane %v2420, 0
      %v3043 = vmul.f32 %v3012, %v3042
      %v3044 = vmul.f32 %v3016, %v3042
      %v3045 = vmul.f32 %v3020, %v3042
      %v3046 = vmul.f32 %v3024, %v3042
      %v3047 = vmul.f32 %v3028, %v3042
      %v3048 = vmul.f32 %v3032, %v3042
      %v3049 = vmul.f32 %v3036, %v3042
      %v3050 = vmul.f32 %v3040, %v3042
      %v3051 = vadd.f32 %v3002, %v3043
      %v3052 = vadd.f32 %v3003, %v3044
      %v3053 = vadd.f32 %v3004, %v3045
      %v3054 = vadd.f32 %v3005, %v3046
      %v3055 = vadd.f32 %v3006, %v3047
      %v3056 = vadd.f32 %v3007, %v3048
      %v3057 = vadd.f32 %v3008, %v3049
      %v3058 = vadd.f32 %v3009, %v3050
      %v3059 = vld [vmem:[%s9] sm:$0x1]
      %v3061 = vperm.slane %v3059, 0
      %v3063 = vadd.f32 %v3051, %v3061
      %v3064 = vadd.f32 %v3052, %v3061
      %v3065 = vadd.f32 %v3053, %v3061
      %v3066 = vadd.f32 %v3054, %v3061
      %v3067 = vadd.f32 %v3055, %v3061
      %v3068 = vadd.f32 %v3056, %v3061
      %v3069 = vadd.f32 %v3057, %v3061
      %v3070 = vadd.f32 %v3058, %v3061
      %3071 = vst [vmem:[%s379] sm:$0xff] %v3063
      %3072 = vst [vmem:[%s379 + $0x8] sm:$0xff] %v3064
      %3073 = vst [vmem:[%s379 + $0x10] sm:$0xff] %v3065
      %3074 = vst [vmem:[%s379 + $0x18] sm:$0xff] %v3066
      %3075 = vst [vmem:[%s379 + $0x20] sm:$0xff] %v3067
      %3076 = vst [vmem:[%s379 + $0x28] sm:$0xff] %v3068
      %3077 = vst [vmem:[%s379 + $0x30] sm:$0xff] %v3069
      %3078 = vst [vmem:[%s379 + $0x38] sm:$0xff] %v3070
      %p3079 = scmp.lt.s32.totalorder %s21, 1
      %s3080 = scalar_select %p3079, %s21, 1
      %s3081 = smul.addr %s3080, 8
      %s3082 = smul.addr %s3081, 8
      %s3083 = scalar_lea.vmem %s10, %s3082
      // Predicated region
      $region61: #{watermark_extraction_forward.1} parent=59 // pred_check
        %p3084 = pneg %p259
      $region62: #{watermark_extraction_forward.1} parent=59 // pred_check_branch
        %3086 = sbr.rel (%p3084) target = $region64
      $region63: #{watermark_extraction_forward.1} parent=59 // pred_region
        _
      $region64: #{watermark_extraction_forward.1} parent=59 // pred_fallthru
        _
    $region60: #{watermark_extraction_forward.1} parent=5 // pred_fallthru
      _
    %p3087 = scmp.le.s32.totalorder 2, %s16
    // Predicated region
    $region65: #{watermark_extraction_forward.1} parent=5 // pred_check
      %p3088 = pneg %p3087
    $region66: #{watermark_extraction_forward.1} parent=5 // pred_check_branch
      %3090 = sbr.rel (%p3088) target = $region68
    $region67: #{watermark_extraction_forward.1} parent=5 // pred_region
      %s3091 = ssub.s32 %s16, 2
      // Predicated region
      $region69: #{watermark_extraction_forward.1} parent=67 // pred_check
        %p3092 = pneg %p265
      $region70: #{watermark_extraction_forward.1} parent=67 // pred_check_branch
        %3094 = sbr.rel (%p3092) target = $region72
      $region71: #{watermark_extraction_forward.1} parent=67 // pred_region
        %p3095 = scmp.lt.s32.totalorder %s22, 1
        %s3096 = scalar_select %p3095, %s22, 1
        %s3097 = smul.addr %s3096, 8
        %s3098 = smul.addr %s3097, 8
        %s3099 = scalar_lea.vmem %s10, %s3098
      $region72: #{watermark_extraction_forward.1} parent=67 // pred_fallthru
        _
    $region68: #{watermark_extraction_forward.1} parent=5 // pred_fallthru
      _
  $region6: #{watermark_extraction_forward.1} parent=0 // loop_footer
    %s20 = sadd.s32 1, %s16
  $region7: #{watermark_extraction_forward.1} parent=0 // loop_footer_branch
    %15 = sbr.rel target = $region3
  $region8: #{watermark_extraction_forward.1} parent=0 // loop_exit
    _

</llo_original>
